<compile_context>
chip_gen: v6e
topology: v6e:2x2x1
jax: 0.10.0
libtpu: 0.0.40
codegen_flags: <defaults>
</compile_context>

<pallas_src>
import jax
import jax.numpy as jnp
from jax import lax
from jax.experimental import pallas as pl
from jax.experimental.pallas import tpu as pltpu  # noqa: F401  (no scratch needed in v2)

H_PAD = 128      # padded hidden size     (real H = 50)
F_PAD = 128      # padded input features  (real F = 4)
C_PAD = 128      # padded output classes  (real C = 1)


# ----------------------------- Fused Pallas kernel -----------------------------

def fused_lstm_kernel(x_ref, wih0_ref, whh0_ref, b0_ref,
                      w1_ref, b1_ref, lw_ref, lb_ref, out_ref):
    """Fused 2-layer LSTM (batch=1), wavefront-interleaved, + Linear head.

    x_ref:    (T, F_PAD)            padded input sequence (f32)
    wih0_ref: (F_PAD, 4*H_PAD)      layer-0 input->gates weights, gate order (i, f, o, g)
    whh0_ref: (H_PAD, 4*H_PAD)      layer-0 hidden->gates weights
    b0_ref:   (1, 4*H_PAD)          layer-0 packed (b_ih + b_hh), f32
    w1_ref:   (2*H_PAD, 4*H_PAD)    layer-1 fused [Wih1; Whh1]: rows [0,H) multiply h0, [H,2H) multiply h1
    b1_ref:   (1, 4*H_PAD)          layer-1 packed bias, f32
    lw_ref:   (H_PAD, C_PAD)        linear head weight (pre-transposed, padded)
    lb_ref:   (1, C_PAD)            linear head bias (padded, f32)
    out_ref:  (1, C_PAD)            lane-dense output (sliced to n_classes in the wrapper)
    """
    T = x_ref.shape[0]
    Hp = whh0_ref.shape[0]
    wdt = whh0_ref.dtype          # f32 or bf16 (MXU operands only; state math stays f32)

    # Hoisted layer-0 input projection: one (T, 4Hp) MXU matmul, result kept in vregs.
    pre0 = jnp.dot(x_ref[...].astype(wdt), wih0_ref[...],
                   preferred_element_type=jnp.float32) + b0_ref[...]

    def lstm_cell(gates, c):
        # Packed gate order (i, f, o, g): one sigmoid over 3*Hp lanes, one tanh over Hp lanes.
        sig = jax.nn.sigmoid(gates[:, :3 * Hp])
        i_g = sig[:, 0:Hp]
        f_g = sig[:, Hp:2 * Hp]
        o_g = sig[:, 2 * Hp:3 * Hp]
        g_g = jnp.tanh(gates[:, 3 * Hp:])
        c = f_g * c + i_g * g_g
        h = o_g * jnp.tanh(c)
        return h, c

    zeros = jnp.zeros((1, Hp), jnp.float32)
    h0, c0 = zeros, zeros         # layer-0 state (f32, lives in vregs)
    h1, c1 = zeros, zeros         # layer-1 state (f32, lives in vregs)

    # Wavefront schedule (fully unrolled, T+1 super-steps):
    #   super-step s runs layer-0 step s (for s < T) and layer-1 step s-1 (for s >= 1).
    # Both matmuls read only pre-super-step state, so they are independent within a super-step.
    for s in range(T + 1):
        gates1 = None
        if s >= 1:
            # layer-1 step s-1: consumes h0_{s-1} (current h0, BEFORE layer-0 updates it) and h1_{s-2}.
            lhs1 = jnp.concatenate([h0, h1], axis=1).astype(wdt)          # (1, 2*Hp)
            gates1 = jnp.dot(lhs1, w1_ref[...],
                             preferred_element_type=jnp.float32) + b1_ref[...]
        if s < T:
            # layer-0 step s: hoisted pre-gates (static slice, in vregs) + recurrent matmul.
            gates0 = pre0[s:s + 1, :] + jnp.dot(
                h0.astype(wdt), whh0_ref[...], preferred_element_type=jnp.float32)
            h0, c0 = lstm_cell(gates0, c0)
        if gates1 is not None:
            h1, c1 = lstm_cell(gates1, c1)

    # Linear head on the last layer-1 hidden state only (lane-dense (1, C_PAD) store).
    out_ref[...] = (jnp.dot(h1.astype(lw_ref.dtype), lw_ref[...],
                            preferred_element_type=jnp.float32) + lb_ref[...])


# ----------------------------- Wrapper -----------------------------

def lstm_predictor_forward(x, packed, n_classes):
    """Matches LSTMPredictor.forward: x (T, F) -> (1, n_classes)."""
    T, F = x.shape
    x_p = jnp.pad(x.astype(jnp.float32), ((0, 0), (0, F_PAD - F)))

    def spec2(shape):
        return pl.BlockSpec(shape, lambda: (0, 0))

    args = (x_p, packed["wih0"], packed["whh0"], packed["b0"],
            packed["w1"], packed["b1"], packed["lin_w"], packed["lin_b"])

    out = pl.pallas_call(
        fused_lstm_kernel,
        out_shape=jax.ShapeDtypeStruct((1, C_PAD), jnp.float32),
        in_specs=[spec2(a.shape) for a in args],
        out_specs=pl.BlockSpec((1, C_PAD), lambda: (0, 0)),
    )(*args)
    return out[:, :n_classes]


# ----------------------------- Param init (PyTorch layout) & packing -----------------------------

def init_torch_style_params(key, n_features, n_hidden, n_layers, n_classes):
    """PyTorch nn.LSTM / nn.Linear layout: w_ih (4H, in), w_hh (4H, H), gate order (i, f, g, o)."""
    k = float(1.0 / (n_hidden ** 0.5))
    params = {"lstm": []}
    for layer in range(n_layers):
        in_dim = n_features if layer == 0 else n_hidden
        key, k1, k2, k3, k4 = jax.random.split(key, 5)
        params["lstm"].append(dict(
            w_ih=jax.random.uniform(k1, (4 * n_hidden, in_dim), jnp.float32, -k, k),
            w_hh=jax.random.uniform(k2, (4 * n_hidden, n_hidden), jnp.float32, -k, k),
            b_ih=jax.random.uniform(k3, (4 * n_hidden,), jnp.float32, -k, k),
            b_hh=jax.random.uniform(k4, (4 * n_hidden,), jnp.float32, -k, k),
        ))
    key, k5, k6 = jax.random.split(key, 3)
    params["lin_w"] = jax.random.uniform(k5, (n_classes, n_hidden), jnp.float32, -k, k)
    params["lin_b"] = jax.random.uniform(k6, (n_classes,), jnp.float32, -k, k)
    return params


def _pack_gate_matrix(w, H, H_pad, in_pad, dtype):
    """(4H, in) PyTorch gate order (i,f,g,o) -> (in_pad, 4*H_pad) packed order (i,f,o,g), zero-padded."""
    i, f, g, o = jnp.split(w, 4, axis=0)
    cols = []
    for gm in (i, f, o, g):
        gt = gm.T                                                   # (in, H)
        gt = jnp.pad(gt, ((0, in_pad - gt.shape[0]), (0, H_pad - H)))
        cols.append(gt)
    return jnp.concatenate(cols, axis=1).astype(dtype)              # (in_pad, 4*H_pad)


def _pack_gate_bias(b_ih, b_hh, H, H_pad):
    b = b_ih + b_hh
    i, f, g, o = jnp.split(b, 4)
    parts = [jnp.pad(p, (0, H_pad - H)) for p in (i, f, o, g)]
    return jnp.concatenate(parts)[None, :].astype(jnp.float32)      # (1, 4*H_pad), kept f32


def prepare_packed_params(params, n_features, n_hidden, weight_dtype=jnp.float32):
    """Pack + pad PyTorch-layout params. Matrices cast to weight_dtype (f32 or bf16); biases stay f32."""
    H = n_hidden
    l0, l1 = params["lstm"]
    packed = {
        "wih0": _pack_gate_matrix(l0["w_ih"], H, H_PAD, F_PAD, weight_dtype),
        "whh0": _pack_gate_matrix(l0["w_hh"], H, H_PAD, H_PAD, weight_dtype),
        "b0": _pack_gate_bias(l0["b_ih"], l0["b_hh"], H, H_PAD),
        # Layer-1 fused RHS: rows [0, H_PAD) multiply h0 (layer-1 input), rows [H_PAD, 2*H_PAD) multiply h1.
        "w1": jnp.concatenate(
            [_pack_gate_matrix(l1["w_ih"], H, H_PAD, H_PAD, weight_dtype),
             _pack_gate_matrix(l1["w_hh"], H, H_PAD, H_PAD, weight_dtype)], axis=0),
        "b1": _pack_gate_bias(l1["b_ih"], l1["b_hh"], H, H_PAD),
    }
    lw = params["lin_w"].T                                          # (H, C)
    packed["lin_w"] = jnp.pad(
        lw, ((0, H_PAD - lw.shape[0]), (0, C_PAD - lw.shape[1]))).astype(weight_dtype)
    packed["lin_b"] = jnp.pad(
        params["lin_b"], (0, C_PAD - params["lin_b"].shape[0]))[None, :].astype(jnp.float32)
    return packed


# ----------------------------- Pure-JAX reference -----------------------------

def reference_forward(x, params, matmul_dtype=jnp.float32):
    """Matches torch.nn.LSTM (gate order i,f,g,o, zero init) + nn.Linear on the last timestep.

    matmul_dtype=jnp.bfloat16 emulates the kernel's bf16-operand / f32-accumulate MXU variant
    (weights AND matmul LHS rounded to bf16; all state math and accumulation in f32).
    """
    dt = matmul_dtype
    h_seq = x
    for lp in params["lstm"]:
        H = lp["w_hh"].shape[1]
        wih_t = lp["w_ih"].T.astype(dt)      # (in, 4H)
        whh_t = lp["w_hh"].T.astype(dt)      # (H, 4H)
        b = lp["b_ih"] + lp["b_hh"]

        def step(carry, x_t, wih_t=wih_t, whh_t=whh_t, b=b):
            h, c = carry
            gates = (jnp.dot(x_t.astype(dt), wih_t, preferred_element_type=jnp.float32)
                     + jnp.dot(h.astype(dt), whh_t, preferred_element_type=jnp.float32) + b)
            i, f, g, o = jnp.split(gates, 4)
            i = jax.nn.sigmoid(i); f = jax.nn.sigmoid(f)
            g = jnp.tanh(g);       o = jax.nn.sigmoid(o)
            c = f * c + i * g
            h = o * jnp.tanh(c)
            return (h, c), h

        init = (jnp.zeros((H,), jnp.float32), jnp.zeros((H,), jnp.float32))
        _, h_seq = lax.scan(step, init, h_seq)
    last = h_seq[-1]
    out = (jnp.dot(last.astype(dt), params["lin_w"].T.astype(dt),
                   preferred_element_type=jnp.float32) + params["lin_b"])
    return out[None, :]


# ----------------------------- Main -----------------------------

if __name__ == "__main__":
    n_features = 4
    n_hidden = 50
    n_layers = 2
    n_classes = 1
    seq_len = 8

    key = jax.random.PRNGKey(0)
    key, pkey, xkey = jax.random.split(key, 3)
    params = init_torch_style_params(pkey, n_features, n_hidden, n_layers, n_classes)
    x = jax.random.normal(xkey, (seq_len, n_features), dtype=jnp.float32)

    # --- f32 weights: tight check against the PyTorch-semantics reference ---
    packed_f32 = prepare_packed_params(params, n_features, n_hidden, jnp.float32)
    out_f32 = jax.block_until_ready(lstm_predictor_forward(x, packed_f32, n_classes))
    ref_f32 = reference_forward(x, params, jnp.float32)
    assert out_f32.shape == (1, n_classes), out_f32.shape
    assert jnp.allclose(out_f32, ref_f32, atol=1e-4, rtol=1e-4), (out_f32, ref_f32)

    # --- bf16 weights (v6e/v7x MXU + halved weight DMA); state/accumulation stay f32 ---
    packed_bf16 = prepare_packed_params(params, n_features, n_hidden, jnp.bfloat16)
    out_bf16 = jax.block_until_ready(lstm_predictor_forward(x, packed_bf16, n_classes))
    ref_bf16 = reference_forward(x, params, jnp.bfloat16)   # same operand rounding as the kernel
    assert jnp.allclose(out_bf16, ref_bf16, atol=5e-3, rtol=5e-3), (out_bf16, ref_bf16)

    print("KERNEL_OK")
</pallas_src>

<mosaic_0001>
module attributes {stable_mosaic.version = 11 : i64} {
  func.func @fused_lstm_kernel(%arg0: memref<8x128xf32, #tpu.memory_space<vmem>>, %arg1: memref<128x512xf32, #tpu.memory_space<vmem>>, %arg2: memref<128x512xf32, #tpu.memory_space<vmem>>, %arg3: memref<1x512xf32, #tpu.memory_space<vmem>>, %arg4: memref<256x512xf32, #tpu.memory_space<vmem>>, %arg5: memref<1x512xf32, #tpu.memory_space<vmem>>, %arg6: memref<128x128xf32, #tpu.memory_space<vmem>>, %arg7: memref<1x128xf32, #tpu.memory_space<vmem>>, %arg8: memref<1x128xf32, #tpu.memory_space<vmem>>) attributes {dimension_semantics = [], scalar_prefetch = 0 : i64, scratch_operands = 0 : i64, tpu.core_type = #tpu.core_type<tc>} {
    %c0 = arith.constant 0 : index
    %c0_0 = arith.constant 0 : index
    %0 = vector.load %arg0[%c0, %c0_0] : memref<8x128xf32, #tpu.memory_space<vmem>>, vector<8x128xf32>
    %c0_1 = arith.constant 0 : index
    %c0_2 = arith.constant 0 : index
    %1 = vector.load %arg1[%c0_1, %c0_2] : memref<128x512xf32, #tpu.memory_space<vmem>>, vector<128x512xf32>
    %cst = arith.constant dense<0.000000e+00> : vector<8x512xf32>
    %2 = tpu.matmul %0, %1, %cst {dimension_numbers = #tpu.dot_dimension_numbers<[1], [0], [0], [1], [0, 0, 1, 1], [], []>} : vector<8x128xf32>, vector<128x512xf32>, vector<8x512xf32> -> vector<8x512xf32>
    %c0_3 = arith.constant 0 : index
    %c0_4 = arith.constant 0 : index
    %3 = vector.load %arg3[%c0_3, %c0_4] : memref<1x512xf32, #tpu.memory_space<vmem>>, vector<1x512xf32>
    %4 = vector.broadcast %3 : vector<1x512xf32> to vector<8x512xf32>
    %5 = arith.addf %2, %4 : vector<8x512xf32>
    %cst_5 = arith.constant 0.000000e+00 : f32
    %6 = vector.broadcast %cst_5 : f32 to vector<1x128xf32>
    %7 = vector.extract_strided_slice %5 {offsets = [0, 0], sizes = [1, 512], strides = [1, 1]} : vector<8x512xf32> to vector<1x512xf32>
    %c0_6 = arith.constant 0 : index
    %c0_7 = arith.constant 0 : index
    %8 = vector.load %arg2[%c0_6, %c0_7] : memref<128x512xf32, #tpu.memory_space<vmem>>, vector<128x512xf32>
    %cst_8 = arith.constant dense<0.000000e+00> : vector<1x512xf32>
    %9 = tpu.matmul %6, %8, %cst_8 {dimension_numbers = #tpu.dot_dimension_numbers<[1], [0], [0], [1], [0, 0, 1, 1], [], []>} : vector<1x128xf32>, vector<128x512xf32>, vector<1x512xf32> -> vector<1x512xf32>
    %10 = arith.addf %7, %9 : vector<1x512xf32>
    %11 = vector.extract_strided_slice %10 {offsets = [0, 0], sizes = [1, 384], strides = [1, 1]} : vector<1x512xf32> to vector<1x384xf32>
    %12 = arith.negf %11 : vector<1x384xf32>
    %13 = math.exp %12 : vector<1x384xf32>
    %cst_9 = arith.constant 1.000000e+00 : f32
    %14 = vector.broadcast %cst_9 : f32 to vector<1x384xf32>
    %15 = arith.addf %14, %13 : vector<1x384xf32>
    %16 = arith.divf %14, %15 : vector<1x384xf32>
    %17 = vector.extract_strided_slice %16 {offsets = [0, 0], sizes = [1, 128], strides = [1, 1]} : vector<1x384xf32> to vector<1x128xf32>
    %18 = vector.extract_strided_slice %16 {offsets = [0, 128], sizes = [1, 128], strides = [1, 1]} : vector<1x384xf32> to vector<1x128xf32>
    %19 = vector.extract_strided_slice %16 {offsets = [0, 256], sizes = [1, 128], strides = [1, 1]} : vector<1x384xf32> to vector<1x128xf32>
    %20 = vector.extract_strided_slice %10 {offsets = [0, 384], sizes = [1, 128], strides = [1, 1]} : vector<1x512xf32> to vector<1x128xf32>
    %21 = math.tanh %20 : vector<1x128xf32>
    %22 = arith.mulf %18, %6 : vector<1x128xf32>
    %23 = arith.mulf %17, %21 : vector<1x128xf32>
    %24 = arith.addf %22, %23 : vector<1x128xf32>
    %25 = math.tanh %24 : vector<1x128xf32>
    %26 = arith.mulf %19, %25 : vector<1x128xf32>
    %27 = tpu.concatenate %26, %6 in 1 : vector<1x128xf32>, vector<1x128xf32> -> vector<1x256xf32>
    %c0_10 = arith.constant 0 : index
    %c0_11 = arith.constant 0 : index
    %28 = vector.load %arg4[%c0_10, %c0_11] : memref<256x512xf32, #tpu.memory_space<vmem>>, vector<256x512xf32>
    %cst_12 = arith.constant dense<0.000000e+00> : vector<1x512xf32>
    %29 = tpu.matmul %27, %28, %cst_12 {dimension_numbers = #tpu.dot_dimension_numbers<[1], [0], [0], [1], [0, 0, 1, 1], [], []>} : vector<1x256xf32>, vector<256x512xf32>, vector<1x512xf32> -> vector<1x512xf32>
    %c0_13 = arith.constant 0 : index
    %c0_14 = arith.constant 0 : index
    %30 = vector.load %arg5[%c0_13, %c0_14] : memref<1x512xf32, #tpu.memory_space<vmem>>, vector<1x512xf32>
    %31 = arith.addf %29, %30 : vector<1x512xf32>
    %32 = vector.extract_strided_slice %5 {offsets = [1, 0], sizes = [1, 512], strides = [1, 1]} : vector<8x512xf32> to vector<1x512xf32>
    %c0_15 = arith.constant 0 : index
    %c0_16 = arith.constant 0 : index
    %33 = vector.load %arg2[%c0_15, %c0_16] : memref<128x512xf32, #tpu.memory_space<vmem>>, vector<128x512xf32>
    %cst_17 = arith.constant dense<0.000000e+00> : vector<1x512xf32>
    %34 = tpu.matmul %26, %33, %cst_17 {dimension_numbers = #tpu.dot_dimension_numbers<[1], [0], [0], [1], [0, 0, 1, 1], [], []>} : vector<1x128xf32>, vector<128x512xf32>, vector<1x512xf32> -> vector<1x512xf32>
    %35 = arith.addf %32, %34 : vector<1x512xf32>
    %36 = vector.extract_strided_slice %35 {offsets = [0, 0], sizes = [1, 384], strides = [1, 1]} : vector<1x512xf32> to vector<1x384xf32>
    %37 = arith.negf %36 : vector<1x384xf32>
    %38 = math.exp %37 : vector<1x384xf32>
    %cst_18 = arith.constant 1.000000e+00 : f32
    %39 = vector.broadcast %cst_18 : f32 to vector<1x384xf32>
    %40 = arith.addf %39, %38 : vector<1x384xf32>
    %41 = arith.divf %39, %40 : vector<1x384xf32>
    %42 = vector.extract_strided_slice %41 {offsets = [0, 0], sizes = [1, 128], strides = [1, 1]} : vector<1x384xf32> to vector<1x128xf32>
    %43 = vector.extract_strided_slice %41 {offsets = [0, 128], sizes = [1, 128], strides = [1, 1]} : vector<1x384xf32> to vector<1x128xf32>
    %44 = vector.extract_strided_slice %41 {offsets = [0, 256], sizes = [1, 128], strides = [1, 1]} : vector<1x384xf32> to vector<1x128xf32>
    %45 = vector.extract_strided_slice %35 {offsets = [0, 384], sizes = [1, 128], strides = [1, 1]} : vector<1x512xf32> to vector<1x128xf32>
    %46 = math.tanh %45 : vector<1x128xf32>
    %47 = arith.mulf %43, %24 : vector<1x128xf32>
    %48 = arith.mulf %42, %46 : vector<1x128xf32>
    %49 = arith.addf %47, %48 : vector<1x128xf32>
    %50 = math.tanh %49 : vector<1x128xf32>
    %51 = arith.mulf %44, %50 : vector<1x128xf32>
    %52 = vector.extract_strided_slice %31 {offsets = [0, 0], sizes = [1, 384], strides = [1, 1]} : vector<1x512xf32> to vector<1x384xf32>
    %53 = arith.negf %52 : vector<1x384xf32>
    %54 = math.exp %53 : vector<1x384xf32>
    %cst_19 = arith.constant 1.000000e+00 : f32
    %55 = vector.broadcast %cst_19 : f32 to vector<1x384xf32>
    %56 = arith.addf %55, %54 : vector<1x384xf32>
    %57 = arith.divf %55, %56 : vector<1x384xf32>
    %58 = vector.extract_strided_slice %57 {offsets = [0, 0], sizes = [1, 128], strides = [1, 1]} : vector<1x384xf32> to vector<1x128xf32>
    %59 = vector.extract_strided_slice %57 {offsets = [0, 128], sizes = [1, 128], strides = [1, 1]} : vector<1x384xf32> to vector<1x128xf32>
    %60 = vector.extract_strided_slice %57 {offsets = [0, 256], sizes = [1, 128], strides = [1, 1]} : vector<1x384xf32> to vector<1x128xf32>
    %61 = vector.extract_strided_slice %31 {offsets = [0, 384], sizes = [1, 128], strides = [1, 1]} : vector<1x512xf32> to vector<1x128xf32>
    %62 = math.tanh %61 : vector<1x128xf32>
    %63 = arith.mulf %59, %6 : vector<1x128xf32>
    %64 = arith.mulf %58, %62 : vector<1x128xf32>
    %65 = arith.addf %63, %64 : vector<1x128xf32>
    %66 = math.tanh %65 : vector<1x128xf32>
    %67 = arith.mulf %60, %66 : vector<1x128xf32>
    %68 = tpu.concatenate %51, %67 in 1 : vector<1x128xf32>, vector<1x128xf32> -> vector<1x256xf32>
    %c0_20 = arith.constant 0 : index
    %c0_21 = arith.constant 0 : index
    %69 = vector.load %arg4[%c0_20, %c0_21] : memref<256x512xf32, #tpu.memory_space<vmem>>, vector<256x512xf32>
    %cst_22 = arith.constant dense<0.000000e+00> : vector<1x512xf32>
    %70 = tpu.matmul %68, %69, %cst_22 {dimension_numbers = #tpu.dot_dimension_numbers<[1], [0], [0], [1], [0, 0, 1, 1], [], []>} : vector<1x256xf32>, vector<256x512xf32>, vector<1x512xf32> -> vector<1x512xf32>
    %c0_23 = arith.constant 0 : index
    %c0_24 = arith.constant 0 : index
    %71 = vector.load %arg5[%c0_23, %c0_24] : memref<1x512xf32, #tpu.memory_space<vmem>>, vector<1x512xf32>
    %72 = arith.addf %70, %71 : vector<1x512xf32>
    %73 = vector.extract_strided_slice %5 {offsets = [2, 0], sizes = [1, 512], strides = [1, 1]} : vector<8x512xf32> to vector<1x512xf32>
    %c0_25 = arith.constant 0 : index
    %c0_26 = arith.constant 0 : index
    %74 = vector.load %arg2[%c0_25, %c0_26] : memref<128x512xf32, #tpu.memory_space<vmem>>, vector<128x512xf32>
    %cst_27 = arith.constant dense<0.000000e+00> : vector<1x512xf32>
    %75 = tpu.matmul %51, %74, %cst_27 {dimension_numbers = #tpu.dot_dimension_numbers<[1], [0], [0], [1], [0, 0, 1, 1], [], []>} : vector<1x128xf32>, vector<128x512xf32>, vector<1x512xf32> -> vector<1x512xf32>
    %76 = arith.addf %73, %75 : vector<1x512xf32>
    %77 = vector.extract_strided_slice %76 {offsets = [0, 0], sizes = [1, 384], strides = [1, 1]} : vector<1x512xf32> to vector<1x384xf32>
    %78 = arith.negf %77 : vector<1x384xf32>
    %79 = math.exp %78 : vector<1x384xf32>
    %cst_28 = arith.constant 1.000000e+00 : f32
    %80 = vector.broadcast %cst_28 : f32 to vector<1x384xf32>
    %81 = arith.addf %80, %79 : vector<1x384xf32>
    %82 = arith.divf %80, %81 : vector<1x384xf32>
    %83 = vector.extract_strided_slice %82 {offsets = [0, 0], sizes = [1, 128], strides = [1, 1]} : vector<1x384xf32> to vector<1x128xf32>
    %84 = vector.extract_strided_slice %82 {offsets = [0, 128], sizes = [1, 128], strides = [1, 1]} : vector<1x384xf32> to vector<1x128xf32>
    %85 = vector.extract_strided_slice %82 {offsets = [0, 256], sizes = [1, 128], strides = [1, 1]} : vector<1x384xf32> to vector<1x128xf32>
    %86 = vector.extract_strided_slice %76 {offsets = [0, 384], sizes = [1, 128], strides = [1, 1]} : vector<1x512xf32> to vector<1x128xf32>
    %87 = math.tanh %86 : vector<1x128xf32>
    %88 = arith.mulf %84, %49 : vector<1x128xf32>
    %89 = arith.mulf %83, %87 : vector<1x128xf32>
    %90 = arith.addf %88, %89 : vector<1x128xf32>
    %91 = math.tanh %90 : vector<1x128xf32>
    %92 = arith.mulf %85, %91 : vector<1x128xf32>
    %93 = vector.extract_strided_slice %72 {offsets = [0, 0], sizes = [1, 384], strides = [1, 1]} : vector<1x512xf32> to vector<1x384xf32>
    %94 = arith.negf %93 : vector<1x384xf32>
    %95 = math.exp %94 : vector<1x384xf32>
    %cst_29 = arith.constant 1.000000e+00 : f32
    %96 = vector.broadcast %cst_29 : f32 to vector<1x384xf32>
    %97 = arith.addf %96, %95 : vector<1x384xf32>
    %98 = arith.divf %96, %97 : vector<1x384xf32>
    %99 = vector.extract_strided_slice %98 {offsets = [0, 0], sizes = [1, 128], strides = [1, 1]} : vector<1x384xf32> to vector<1x128xf32>
    %100 = vector.extract_strided_slice %98 {offsets = [0, 128], sizes = [1, 128], strides = [1, 1]} : vector<1x384xf32> to vector<1x128xf32>
    %101 = vector.extract_strided_slice %98 {offsets = [0, 256], sizes = [1, 128], strides = [1, 1]} : vector<1x384xf32> to vector<1x128xf32>
    %102 = vector.extract_strided_slice %72 {offsets = [0, 384], sizes = [1, 128], strides = [1, 1]} : vector<1x512xf32> to vector<1x128xf32>
    %103 = math.tanh %102 : vector<1x128xf32>
    %104 = arith.mulf %100, %65 : vector<1x128xf32>
    %105 = arith.mulf %99, %103 : vector<1x128xf32>
    %106 = arith.addf %104, %105 : vector<1x128xf32>
    %107 = math.tanh %106 : vector<1x128xf32>
    %108 = arith.mulf %101, %107 : vector<1x128xf32>
    %109 = tpu.concatenate %92, %108 in 1 : vector<1x128xf32>, vector<1x128xf32> -> vector<1x256xf32>
    %c0_30 = arith.constant 0 : index
    %c0_31 = arith.constant 0 : index
    %110 = vector.load %arg4[%c0_30, %c0_31] : memref<256x512xf32, #tpu.memory_space<vmem>>, vector<256x512xf32>
    %cst_32 = arith.constant dense<0.000000e+00> : vector<1x512xf32>
    %111 = tpu.matmul %109, %110, %cst_32 {dimension_numbers = #tpu.dot_dimension_numbers<[1], [0], [0], [1], [0, 0, 1, 1], [], []>} : vector<1x256xf32>, vector<256x512xf32>, vector<1x512xf32> -> vector<1x512xf32>
    %c0_33 = arith.constant 0 : index
    %c0_34 = arith.constant 0 : index
    %112 = vector.load %arg5[%c0_33, %c0_34] : memref<1x512xf32, #tpu.memory_space<vmem>>, vector<1x512xf32>
    %113 = arith.addf %111, %112 : vector<1x512xf32>
    %114 = vector.extract_strided_slice %5 {offsets = [3, 0], sizes = [1, 512], strides = [1, 1]} : vector<8x512xf32> to vector<1x512xf32>
    %c0_35 = arith.constant 0 : index
    %c0_36 = arith.constant 0 : index
    %115 = vector.load %arg2[%c0_35, %c0_36] : memref<128x512xf32, #tpu.memory_space<vmem>>, vector<128x512xf32>
    %cst_37 = arith.constant dense<0.000000e+00> : vector<1x512xf32>
    %116 = tpu.matmul %92, %115, %cst_37 {dimension_numbers = #tpu.dot_dimension_numbers<[1], [0], [0], [1], [0, 0, 1, 1], [], []>} : vector<1x128xf32>, vector<128x512xf32>, vector<1x512xf32> -> vector<1x512xf32>
    %117 = arith.addf %114, %116 : vector<1x512xf32>
    %118 = vector.extract_strided_slice %117 {offsets = [0, 0], sizes = [1, 384], strides = [1, 1]} : vector<1x512xf32> to vector<1x384xf32>
    %119 = arith.negf %118 : vector<1x384xf32>
    %120 = math.exp %119 : vector<1x384xf32>
    %cst_38 = arith.constant 1.000000e+00 : f32
    %121 = vector.broadcast %cst_38 : f32 to vector<1x384xf32>
    %122 = arith.addf %121, %120 : vector<1x384xf32>
    %123 = arith.divf %121, %122 : vector<1x384xf32>
    %124 = vector.extract_strided_slice %123 {offsets = [0, 0], sizes = [1, 128], strides = [1, 1]} : vector<1x384xf32> to vector<1x128xf32>
    %125 = vector.extract_strided_slice %123 {offsets = [0, 128], sizes = [1, 128], strides = [1, 1]} : vector<1x384xf32> to vector<1x128xf32>
    %126 = vector.extract_strided_slice %123 {offsets = [0, 256], sizes = [1, 128], strides = [1, 1]} : vector<1x384xf32> to vector<1x128xf32>
    %127 = vector.extract_strided_slice %117 {offsets = [0, 384], sizes = [1, 128], strides = [1, 1]} : vector<1x512xf32> to vector<1x128xf32>
    %128 = math.tanh %127 : vector<1x128xf32>
    %129 = arith.mulf %125, %90 : vector<1x128xf32>
    %130 = arith.mulf %124, %128 : vector<1x128xf32>
    %131 = arith.addf %129, %130 : vector<1x128xf32>
    %132 = math.tanh %131 : vector<1x128xf32>
    %133 = arith.mulf %126, %132 : vector<1x128xf32>
    %134 = vector.extract_strided_slice %113 {offsets = [0, 0], sizes = [1, 384], strides = [1, 1]} : vector<1x512xf32> to vector<1x384xf32>
    %135 = arith.negf %134 : vector<1x384xf32>
    %136 = math.exp %135 : vector<1x384xf32>
    %cst_39 = arith.constant 1.000000e+00 : f32
    %137 = vector.broadcast %cst_39 : f32 to vector<1x384xf32>
    %138 = arith.addf %137, %136 : vector<1x384xf32>
    %139 = arith.divf %137, %138 : vector<1x384xf32>
    %140 = vector.extract_strided_slice %139 {offsets = [0, 0], sizes = [1, 128], strides = [1, 1]} : vector<1x384xf32> to vector<1x128xf32>
    %141 = vector.extract_strided_slice %139 {offsets = [0, 128], sizes = [1, 128], strides = [1, 1]} : vector<1x384xf32> to vector<1x128xf32>
    %142 = vector.extract_strided_slice %139 {offsets = [0, 256], sizes = [1, 128], strides = [1, 1]} : vector<1x384xf32> to vector<1x128xf32>
    %143 = vector.extract_strided_slice %113 {offsets = [0, 384], sizes = [1, 128], strides = [1, 1]} : vector<1x512xf32> to vector<1x128xf32>
    %144 = math.tanh %143 : vector<1x128xf32>
    %145 = arith.mulf %141, %106 : vector<1x128xf32>
    %146 = arith.mulf %140, %144 : vector<1x128xf32>
    %147 = arith.addf %145, %146 : vector<1x128xf32>
    %148 = math.tanh %147 : vector<1x128xf32>
    %149 = arith.mulf %142, %148 : vector<1x128xf32>
    %150 = tpu.concatenate %133, %149 in 1 : vector<1x128xf32>, vector<1x128xf32> -> vector<1x256xf32>
    %c0_40 = arith.constant 0 : index
    %c0_41 = arith.constant 0 : index
    %151 = vector.load %arg4[%c0_40, %c0_41] : memref<256x512xf32, #tpu.memory_space<vmem>>, vector<256x512xf32>
    %cst_42 = arith.constant dense<0.000000e+00> : vector<1x512xf32>
    %152 = tpu.matmul %150, %151, %cst_42 {dimension_numbers = #tpu.dot_dimension_numbers<[1], [0], [0], [1], [0, 0, 1, 1], [], []>} : vector<1x256xf32>, vector<256x512xf32>, vector<1x512xf32> -> vector<1x512xf32>
    %c0_43 = arith.constant 0 : index
    %c0_44 = arith.constant 0 : index
    %153 = vector.load %arg5[%c0_43, %c0_44] : memref<1x512xf32, #tpu.memory_space<vmem>>, vector<1x512xf32>
    %154 = arith.addf %152, %153 : vector<1x512xf32>
    %155 = vector.extract_strided_slice %5 {offsets = [4, 0], sizes = [1, 512], strides = [1, 1]} : vector<8x512xf32> to vector<1x512xf32>
    %c0_45 = arith.constant 0 : index
    %c0_46 = arith.constant 0 : index
    %156 = vector.load %arg2[%c0_45, %c0_46] : memref<128x512xf32, #tpu.memory_space<vmem>>, vector<128x512xf32>
    %cst_47 = arith.constant dense<0.000000e+00> : vector<1x512xf32>
    %157 = tpu.matmul %133, %156, %cst_47 {dimension_numbers = #tpu.dot_dimension_numbers<[1], [0], [0], [1], [0, 0, 1, 1], [], []>} : vector<1x128xf32>, vector<128x512xf32>, vector<1x512xf32> -> vector<1x512xf32>
    %158 = arith.addf %155, %157 : vector<1x512xf32>
    %159 = vector.extract_strided_slice %158 {offsets = [0, 0], sizes = [1, 384], strides = [1, 1]} : vector<1x512xf32> to vector<1x384xf32>
    %160 = arith.negf %159 : vector<1x384xf32>
    %161 = math.exp %160 : vector<1x384xf32>
    %cst_48 = arith.constant 1.000000e+00 : f32
    %162 = vector.broadcast %cst_48 : f32 to vector<1x384xf32>
    %163 = arith.addf %162, %161 : vector<1x384xf32>
    %164 = arith.divf %162, %163 : vector<1x384xf32>
    %165 = vector.extract_strided_slice %164 {offsets = [0, 0], sizes = [1, 128], strides = [1, 1]} : vector<1x384xf32> to vector<1x128xf32>
    %166 = vector.extract_strided_slice %164 {offsets = [0, 128], sizes = [1, 128], strides = [1, 1]} : vector<1x384xf32> to vector<1x128xf32>
    %167 = vector.extract_strided_slice %164 {offsets = [0, 256], sizes = [1, 128], strides = [1, 1]} : vector<1x384xf32> to vector<1x128xf32>
    %168 = vector.extract_strided_slice %158 {offsets = [0, 384], sizes = [1, 128], strides = [1, 1]} : vector<1x512xf32> to vector<1x128xf32>
    %169 = math.tanh %168 : vector<1x128xf32>
    %170 = arith.mulf %166, %131 : vector<1x128xf32>
    %171 = arith.mulf %165, %169 : vector<1x128xf32>
    %172 = arith.addf %170, %171 : vector<1x128xf32>
    %173 = math.tanh %172 : vector<1x128xf32>
    %174 = arith.mulf %167, %173 : vector<1x128xf32>
    %175 = vector.extract_strided_slice %154 {offsets = [0, 0], sizes = [1, 384], strides = [1, 1]} : vector<1x512xf32> to vector<1x384xf32>
    %176 = arith.negf %175 : vector<1x384xf32>
    %177 = math.exp %176 : vector<1x384xf32>
    %cst_49 = arith.constant 1.000000e+00 : f32
    %178 = vector.broadcast %cst_49 : f32 to vector<1x384xf32>
    %179 = arith.addf %178, %177 : vector<1x384xf32>
    %180 = arith.divf %178, %179 : vector<1x384xf32>
    %181 = vector.extract_strided_slice %180 {offsets = [0, 0], sizes = [1, 128], strides = [1, 1]} : vector<1x384xf32> to vector<1x128xf32>
    %182 = vector.extract_strided_slice %180 {offsets = [0, 128], sizes = [1, 128], strides = [1, 1]} : vector<1x384xf32> to vector<1x128xf32>
    %183 = vector.extract_strided_slice %180 {offsets = [0, 256], sizes = [1, 128], strides = [1, 1]} : vector<1x384xf32> to vector<1x128xf32>
    %184 = vector.extract_strided_slice %154 {offsets = [0, 384], sizes = [1, 128], strides = [1, 1]} : vector<1x512xf32> to vector<1x128xf32>
    %185 = math.tanh %184 : vector<1x128xf32>
    %186 = arith.mulf %182, %147 : vector<1x128xf32>
    %187 = arith.mulf %181, %185 : vector<1x128xf32>
    %188 = arith.addf %186, %187 : vector<1x128xf32>
    %189 = math.tanh %188 : vector<1x128xf32>
    %190 = arith.mulf %183, %189 : vector<1x128xf32>
    %191 = tpu.concatenate %174, %190 in 1 : vector<1x128xf32>, vector<1x128xf32> -> vector<1x256xf32>
    %c0_50 = arith.constant 0 : index
    %c0_51 = arith.constant 0 : index
    %192 = vector.load %arg4[%c0_50, %c0_51] : memref<256x512xf32, #tpu.memory_space<vmem>>, vector<256x512xf32>
    %cst_52 = arith.constant dense<0.000000e+00> : vector<1x512xf32>
    %193 = tpu.matmul %191, %192, %cst_52 {dimension_numbers = #tpu.dot_dimension_numbers<[1], [0], [0], [1], [0, 0, 1, 1], [], []>} : vector<1x256xf32>, vector<256x512xf32>, vector<1x512xf32> -> vector<1x512xf32>
    %c0_53 = arith.constant 0 : index
    %c0_54 = arith.constant 0 : index
    %194 = vector.load %arg5[%c0_53, %c0_54] : memref<1x512xf32, #tpu.memory_space<vmem>>, vector<1x512xf32>
    %195 = arith.addf %193, %194 : vector<1x512xf32>
    %196 = vector.extract_strided_slice %5 {offsets = [5, 0], sizes = [1, 512], strides = [1, 1]} : vector<8x512xf32> to vector<1x512xf32>
    %c0_55 = arith.constant 0 : index
    %c0_56 = arith.constant 0 : index
    %197 = vector.load %arg2[%c0_55, %c0_56] : memref<128x512xf32, #tpu.memory_space<vmem>>, vector<128x512xf32>
    %cst_57 = arith.constant dense<0.000000e+00> : vector<1x512xf32>
    %198 = tpu.matmul %174, %197, %cst_57 {dimension_numbers = #tpu.dot_dimension_numbers<[1], [0], [0], [1], [0, 0, 1, 1], [], []>} : vector<1x128xf32>, vector<128x512xf32>, vector<1x512xf32> -> vector<1x512xf32>
    %199 = arith.addf %196, %198 : vector<1x512xf32>
    %200 = vector.extract_strided_slice %199 {offsets = [0, 0], sizes = [1, 384], strides = [1, 1]} : vector<1x512xf32> to vector<1x384xf32>
    %201 = arith.negf %200 : vector<1x384xf32>
    %202 = math.exp %201 : vector<1x384xf32>
    %cst_58 = arith.constant 1.000000e+00 : f32
    %203 = vector.broadcast %cst_58 : f32 to vector<1x384xf32>
    %204 = arith.addf %203, %202 : vector<1x384xf32>
    %205 = arith.divf %203, %204 : vector<1x384xf32>
    %206 = vector.extract_strided_slice %205 {offsets = [0, 0], sizes = [1, 128], strides = [1, 1]} : vector<1x384xf32> to vector<1x128xf32>
    %207 = vector.extract_strided_slice %205 {offsets = [0, 128], sizes = [1, 128], strides = [1, 1]} : vector<1x384xf32> to vector<1x128xf32>
    %208 = vector.extract_strided_slice %205 {offsets = [0, 256], sizes = [1, 128], strides = [1, 1]} : vector<1x384xf32> to vector<1x128xf32>
    %209 = vector.extract_strided_slice %199 {offsets = [0, 384], sizes = [1, 128], strides = [1, 1]} : vector<1x512xf32> to vector<1x128xf32>
    %210 = math.tanh %209 : vector<1x128xf32>
    %211 = arith.mulf %207, %172 : vector<1x128xf32>
    %212 = arith.mulf %206, %210 : vector<1x128xf32>
    %213 = arith.addf %211, %212 : vector<1x128xf32>
    %214 = math.tanh %213 : vector<1x128xf32>
    %215 = arith.mulf %208, %214 : vector<1x128xf32>
    %216 = vector.extract_strided_slice %195 {offsets = [0, 0], sizes = [1, 384], strides = [1, 1]} : vector<1x512xf32> to vector<1x384xf32>
    %217 = arith.negf %216 : vector<1x384xf32>
    %218 = math.exp %217 : vector<1x384xf32>
    %cst_59 = arith.constant 1.000000e+00 : f32
    %219 = vector.broadcast %cst_59 : f32 to vector<1x384xf32>
    %220 = arith.addf %219, %218 : vector<1x384xf32>
    %221 = arith.divf %219, %220 : vector<1x384xf32>
    %222 = vector.extract_strided_slice %221 {offsets = [0, 0], sizes = [1, 128], strides = [1, 1]} : vector<1x384xf32> to vector<1x128xf32>
    %223 = vector.extract_strided_slice %221 {offsets = [0, 128], sizes = [1, 128], strides = [1, 1]} : vector<1x384xf32> to vector<1x128xf32>
    %224 = vector.extract_strided_slice %221 {offsets = [0, 256], sizes = [1, 128], strides = [1, 1]} : vector<1x384xf32> to vector<1x128xf32>
    %225 = vector.extract_strided_slice %195 {offsets = [0, 384], sizes = [1, 128], strides = [1, 1]} : vector<1x512xf32> to vector<1x128xf32>
    %226 = math.tanh %225 : vector<1x128xf32>
    %227 = arith.mulf %223, %188 : vector<1x128xf32>
    %228 = arith.mulf %222, %226 : vector<1x128xf32>
    %229 = arith.addf %227, %228 : vector<1x128xf32>
    %230 = math.tanh %229 : vector<1x128xf32>
    %231 = arith.mulf %224, %230 : vector<1x128xf32>
    %232 = tpu.concatenate %215, %231 in 1 : vector<1x128xf32>, vector<1x128xf32> -> vector<1x256xf32>
    %c0_60 = arith.constant 0 : index
    %c0_61 = arith.constant 0 : index
    %233 = vector.load %arg4[%c0_60, %c0_61] : memref<256x512xf32, #tpu.memory_space<vmem>>, vector<256x512xf32>
    %cst_62 = arith.constant dense<0.000000e+00> : vector<1x512xf32>
    %234 = tpu.matmul %232, %233, %cst_62 {dimension_numbers = #tpu.dot_dimension_numbers<[1], [0], [0], [1], [0, 0, 1, 1], [], []>} : vector<1x256xf32>, vector<256x512xf32>, vector<1x512xf32> -> vector<1x512xf32>
    %c0_63 = arith.constant 0 : index
    %c0_64 = arith.constant 0 : index
    %235 = vector.load %arg5[%c0_63, %c0_64] : memref<1x512xf32, #tpu.memory_space<vmem>>, vector<1x512xf32>
    %236 = arith.addf %234, %235 : vector<1x512xf32>
    %237 = vector.extract_strided_slice %5 {offsets = [6, 0], sizes = [1, 512], strides = [1, 1]} : vector<8x512xf32> to vector<1x512xf32>
    %c0_65 = arith.constant 0 : index
    %c0_66 = arith.constant 0 : index
    %238 = vector.load %arg2[%c0_65, %c0_66] : memref<128x512xf32, #tpu.memory_space<vmem>>, vector<128x512xf32>
    %cst_67 = arith.constant dense<0.000000e+00> : vector<1x512xf32>
    %239 = tpu.matmul %215, %238, %cst_67 {dimension_numbers = #tpu.dot_dimension_numbers<[1], [0], [0], [1], [0, 0, 1, 1], [], []>} : vector<1x128xf32>, vector<128x512xf32>, vector<1x512xf32> -> vector<1x512xf32>
    %240 = arith.addf %237, %239 : vector<1x512xf32>
    %241 = vector.extract_strided_slice %240 {offsets = [0, 0], sizes = [1, 384], strides = [1, 1]} : vector<1x512xf32> to vector<1x384xf32>
    %242 = arith.negf %241 : vector<1x384xf32>
    %243 = math.exp %242 : vector<1x384xf32>
    %cst_68 = arith.constant 1.000000e+00 : f32
    %244 = vector.broadcast %cst_68 : f32 to vector<1x384xf32>
    %245 = arith.addf %244, %243 : vector<1x384xf32>
    %246 = arith.divf %244, %245 : vector<1x384xf32>
    %247 = vector.extract_strided_slice %246 {offsets = [0, 0], sizes = [1, 128], strides = [1, 1]} : vector<1x384xf32> to vector<1x128xf32>
    %248 = vector.extract_strided_slice %246 {offsets = [0, 128], sizes = [1, 128], strides = [1, 1]} : vector<1x384xf32> to vector<1x128xf32>
    %249 = vector.extract_strided_slice %246 {offsets = [0, 256], sizes = [1, 128], strides = [1, 1]} : vector<1x384xf32> to vector<1x128xf32>
    %250 = vector.extract_strided_slice %240 {offsets = [0, 384], sizes = [1, 128], strides = [1, 1]} : vector<1x512xf32> to vector<1x128xf32>
    %251 = math.tanh %250 : vector<1x128xf32>
    %252 = arith.mulf %248, %213 : vector<1x128xf32>
    %253 = arith.mulf %247, %251 : vector<1x128xf32>
    %254 = arith.addf %252, %253 : vector<1x128xf32>
    %255 = math.tanh %254 : vector<1x128xf32>
    %256 = arith.mulf %249, %255 : vector<1x128xf32>
    %257 = vector.extract_strided_slice %236 {offsets = [0, 0], sizes = [1, 384], strides = [1, 1]} : vector<1x512xf32> to vector<1x384xf32>
    %258 = arith.negf %257 : vector<1x384xf32>
    %259 = math.exp %258 : vector<1x384xf32>
    %cst_69 = arith.constant 1.000000e+00 : f32
    %260 = vector.broadcast %cst_69 : f32 to vector<1x384xf32>
    %261 = arith.addf %260, %259 : vector<1x384xf32>
    %262 = arith.divf %260, %261 : vector<1x384xf32>
    %263 = vector.extract_strided_slice %262 {offsets = [0, 0], sizes = [1, 128], strides = [1, 1]} : vector<1x384xf32> to vector<1x128xf32>
    %264 = vector.extract_strided_slice %262 {offsets = [0, 128], sizes = [1, 128], strides = [1, 1]} : vector<1x384xf32> to vector<1x128xf32>
    %265 = vector.extract_strided_slice %262 {offsets = [0, 256], sizes = [1, 128], strides = [1, 1]} : vector<1x384xf32> to vector<1x128xf32>
    %266 = vector.extract_strided_slice %236 {offsets = [0, 384], sizes = [1, 128], strides = [1, 1]} : vector<1x512xf32> to vector<1x128xf32>
    %267 = math.tanh %266 : vector<1x128xf32>
    %268 = arith.mulf %264, %229 : vector<1x128xf32>
    %269 = arith.mulf %263, %267 : vector<1x128xf32>
    %270 = arith.addf %268, %269 : vector<1x128xf32>
    %271 = math.tanh %270 : vector<1x128xf32>
    %272 = arith.mulf %265, %271 : vector<1x128xf32>
    %273 = tpu.concatenate %256, %272 in 1 : vector<1x128xf32>, vector<1x128xf32> -> vector<1x256xf32>
    %c0_70 = arith.constant 0 : index
    %c0_71 = arith.constant 0 : index
    %274 = vector.load %arg4[%c0_70, %c0_71] : memref<256x512xf32, #tpu.memory_space<vmem>>, vector<256x512xf32>
    %cst_72 = arith.constant dense<0.000000e+00> : vector<1x512xf32>
    %275 = tpu.matmul %273, %274, %cst_72 {dimension_numbers = #tpu.dot_dimension_numbers<[1], [0], [0], [1], [0, 0, 1, 1], [], []>} : vector<1x256xf32>, vector<256x512xf32>, vector<1x512xf32> -> vector<1x512xf32>
    %c0_73 = arith.constant 0 : index
    %c0_74 = arith.constant 0 : index
    %276 = vector.load %arg5[%c0_73, %c0_74] : memref<1x512xf32, #tpu.memory_space<vmem>>, vector<1x512xf32>
    %277 = arith.addf %275, %276 : vector<1x512xf32>
    %278 = vector.extract_strided_slice %5 {offsets = [7, 0], sizes = [1, 512], strides = [1, 1]} : vector<8x512xf32> to vector<1x512xf32>
    %c0_75 = arith.constant 0 : index
    %c0_76 = arith.constant 0 : index
    %279 = vector.load %arg2[%c0_75, %c0_76] : memref<128x512xf32, #tpu.memory_space<vmem>>, vector<128x512xf32>
    %cst_77 = arith.constant dense<0.000000e+00> : vector<1x512xf32>
    %280 = tpu.matmul %256, %279, %cst_77 {dimension_numbers = #tpu.dot_dimension_numbers<[1], [0], [0], [1], [0, 0, 1, 1], [], []>} : vector<1x128xf32>, vector<128x512xf32>, vector<1x512xf32> -> vector<1x512xf32>
    %281 = arith.addf %278, %280 : vector<1x512xf32>
    %282 = vector.extract_strided_slice %281 {offsets = [0, 0], sizes = [1, 384], strides = [1, 1]} : vector<1x512xf32> to vector<1x384xf32>
    %283 = arith.negf %282 : vector<1x384xf32>
    %284 = math.exp %283 : vector<1x384xf32>
    %cst_78 = arith.constant 1.000000e+00 : f32
    %285 = vector.broadcast %cst_78 : f32 to vector<1x384xf32>
    %286 = arith.addf %285, %284 : vector<1x384xf32>
    %287 = arith.divf %285, %286 : vector<1x384xf32>
    %288 = vector.extract_strided_slice %287 {offsets = [0, 0], sizes = [1, 128], strides = [1, 1]} : vector<1x384xf32> to vector<1x128xf32>
    %289 = vector.extract_strided_slice %287 {offsets = [0, 128], sizes = [1, 128], strides = [1, 1]} : vector<1x384xf32> to vector<1x128xf32>
    %290 = vector.extract_strided_slice %287 {offsets = [0, 256], sizes = [1, 128], strides = [1, 1]} : vector<1x384xf32> to vector<1x128xf32>
    %291 = vector.extract_strided_slice %281 {offsets = [0, 384], sizes = [1, 128], strides = [1, 1]} : vector<1x512xf32> to vector<1x128xf32>
    %292 = math.tanh %291 : vector<1x128xf32>
    %293 = arith.mulf %289, %254 : vector<1x128xf32>
    %294 = arith.mulf %288, %292 : vector<1x128xf32>
    %295 = arith.addf %293, %294 : vector<1x128xf32>
    %296 = math.tanh %295 : vector<1x128xf32>
    %297 = arith.mulf %290, %296 : vector<1x128xf32>
    %298 = vector.extract_strided_slice %277 {offsets = [0, 0], sizes = [1, 384], strides = [1, 1]} : vector<1x512xf32> to vector<1x384xf32>
    %299 = arith.negf %298 : vector<1x384xf32>
    %300 = math.exp %299 : vector<1x384xf32>
    %cst_79 = arith.constant 1.000000e+00 : f32
    %301 = vector.broadcast %cst_79 : f32 to vector<1x384xf32>
    %302 = arith.addf %301, %300 : vector<1x384xf32>
    %303 = arith.divf %301, %302 : vector<1x384xf32>
    %304 = vector.extract_strided_slice %303 {offsets = [0, 0], sizes = [1, 128], strides = [1, 1]} : vector<1x384xf32> to vector<1x128xf32>
    %305 = vector.extract_strided_slice %303 {offsets = [0, 128], sizes = [1, 128], strides = [1, 1]} : vector<1x384xf32> to vector<1x128xf32>
    %306 = vector.extract_strided_slice %303 {offsets = [0, 256], sizes = [1, 128], strides = [1, 1]} : vector<1x384xf32> to vector<1x128xf32>
    %307 = vector.extract_strided_slice %277 {offsets = [0, 384], sizes = [1, 128], strides = [1, 1]} : vector<1x512xf32> to vector<1x128xf32>
    %308 = math.tanh %307 : vector<1x128xf32>
    %309 = arith.mulf %305, %270 : vector<1x128xf32>
    %310 = arith.mulf %304, %308 : vector<1x128xf32>
    %311 = arith.addf %309, %310 : vector<1x128xf32>
    %312 = math.tanh %311 : vector<1x128xf32>
    %313 = arith.mulf %306, %312 : vector<1x128xf32>
    %314 = tpu.concatenate %297, %313 in 1 : vector<1x128xf32>, vector<1x128xf32> -> vector<1x256xf32>
    %c0_80 = arith.constant 0 : index
    %c0_81 = arith.constant 0 : index
    %315 = vector.load %arg4[%c0_80, %c0_81] : memref<256x512xf32, #tpu.memory_space<vmem>>, vector<256x512xf32>
    %cst_82 = arith.constant dense<0.000000e+00> : vector<1x512xf32>
    %316 = tpu.matmul %314, %315, %cst_82 {dimension_numbers = #tpu.dot_dimension_numbers<[1], [0], [0], [1], [0, 0, 1, 1], [], []>} : vector<1x256xf32>, vector<256x512xf32>, vector<1x512xf32> -> vector<1x512xf32>
    %c0_83 = arith.constant 0 : index
    %c0_84 = arith.constant 0 : index
    %317 = vector.load %arg5[%c0_83, %c0_84] : memref<1x512xf32, #tpu.memory_space<vmem>>, vector<1x512xf32>
    %318 = arith.addf %316, %317 : vector<1x512xf32>
    %319 = vector.extract_strided_slice %318 {offsets = [0, 0], sizes = [1, 384], strides = [1, 1]} : vector<1x512xf32> to vector<1x384xf32>
    %320 = arith.negf %319 : vector<1x384xf32>
    %321 = math.exp %320 : vector<1x384xf32>
    %cst_85 = arith.constant 1.000000e+00 : f32
    %322 = vector.broadcast %cst_85 : f32 to vector<1x384xf32>
    %323 = arith.addf %322, %321 : vector<1x384xf32>
    %324 = arith.divf %322, %323 : vector<1x384xf32>
    %325 = vector.extract_strided_slice %324 {offsets = [0, 0], sizes = [1, 128], strides = [1, 1]} : vector<1x384xf32> to vector<1x128xf32>
    %326 = vector.extract_strided_slice %324 {offsets = [0, 128], sizes = [1, 128], strides = [1, 1]} : vector<1x384xf32> to vector<1x128xf32>
    %327 = vector.extract_strided_slice %324 {offsets = [0, 256], sizes = [1, 128], strides = [1, 1]} : vector<1x384xf32> to vector<1x128xf32>
    %328 = vector.extract_strided_slice %318 {offsets = [0, 384], sizes = [1, 128], strides = [1, 1]} : vector<1x512xf32> to vector<1x128xf32>
    %329 = math.tanh %328 : vector<1x128xf32>
    %330 = arith.mulf %326, %311 : vector<1x128xf32>
    %331 = arith.mulf %325, %329 : vector<1x128xf32>
    %332 = arith.addf %330, %331 : vector<1x128xf32>
    %333 = math.tanh %332 : vector<1x128xf32>
    %334 = arith.mulf %327, %333 : vector<1x128xf32>
    %c0_86 = arith.constant 0 : index
    %c0_87 = arith.constant 0 : index
    %335 = vector.load %arg6[%c0_86, %c0_87] : memref<128x128xf32, #tpu.memory_space<vmem>>, vector<128x128xf32>
    %cst_88 = arith.constant dense<0.000000e+00> : vector<1x128xf32>
    %336 = tpu.matmul %334, %335, %cst_88 {dimension_numbers = #tpu.dot_dimension_numbers<[1], [0], [0], [1], [0, 0, 1, 1], [], []>} : vector<1x128xf32>, vector<128x128xf32>, vector<1x128xf32> -> vector<1x128xf32>
    %c0_89 = arith.constant 0 : index
    %c0_90 = arith.constant 0 : index
    %337 = vector.load %arg7[%c0_89, %c0_90] : memref<1x128xf32, #tpu.memory_space<vmem>>, vector<1x128xf32>
    %338 = arith.addf %336, %337 : vector<1x128xf32>
    %c0_91 = arith.constant 0 : index
    %c0_92 = arith.constant 0 : index
    %339 = vector.load %arg8[%c0_91, %c0_92] : memref<1x128xf32, #tpu.memory_space<vmem>>, vector<1x128xf32>
    tpu.vector_store %arg8[%c0_91, %c0_92], %338 {strides = array<i32>} : memref<1x128xf32, #tpu.memory_space<vmem>>, vector<1x128xf32>,
    return
  }
}

</mosaic_0001>

<llo_original>
// kernel: tpu_custom_call.1
$region0: #{tpu_custom_call.1}
  #allocation0 [shape = 'u32[]', space=smem, size = 0x4, offset = 0x4, fixed_abs, tag = 'smem constant byte address 0x4 - core index']
  #allocation1 [shape = 'u32[144,128]{1,0:T(1,128)}', space=vmem, size = 0x12000, scoped, tag = 'internal scratch']
  %s0 = inlined_call_operand.hbm [shape: f32[8,128], index: 0, kind: input, shape index: {}]
  %s1 = inlined_call_operand.hbm [shape: f32[128,512], index: 1, kind: input, shape index: {}]
  %s2 = inlined_call_operand.hbm [shape: f32[128,512], index: 2, kind: input, shape index: {}]
  %s3 = inlined_call_operand.vmem [shape: f32[1,512], index: 3, kind: input, shape index: {}]
  %s4 = inlined_call_operand.hbm [shape: f32[256,512], index: 4, kind: input, shape index: {}]
  %s5 = inlined_call_operand.vmem [shape: f32[1,512], index: 5, kind: input, shape index: {}]
  %s6 = inlined_call_operand.hbm [shape: f32[128,128], index: 6, kind: input, shape index: {}]
  %s7 = inlined_call_operand.vmem [shape: f32[1,128], index: 7, kind: input, shape index: {}]
  %s8 = inlined_call_operand.hbm [shape: f32[1,128], index: 8, kind: output, shape index: {}]
  %s9 = sld [smem:[#allocation0]]
  $region62: #{tpu_custom_call.1} parent=0
    _
  %s11 = ssub.s32 1, %s9
  %s12 = scalar_select 0, %s11, %s9
  $region1: #{tpu_custom_call.1} parent=0
    #allocation2 [shape = 'u8[4096]{0}', space=vmem, size = 0x1000, scoped, tag = 'input window, operand 0, single buffered']
    #allocation3 [shape = 's32[1]{0}', space=sflag, size = 0x4, scoped, tag = 'scoped memory for tpu_custom_call.1']
    #allocation4 [shape = 's32[1]{0}', space=sflag, size = 0x4, scoped, tag = 'scoped memory for tpu_custom_call.1']
    #allocation5 [shape = 'u8[262144]{0}', space=vmem, size = 0x40000, scoped, tag = 'input window, operand 1, single buffered']
    #allocation6 [shape = 's32[1]{0}', space=sflag, size = 0x4, scoped, tag = 'scoped memory for tpu_custom_call.1']
    #allocation7 [shape = 'u8[262144]{0}', space=vmem, size = 0x40000, scoped, tag = 'input window, operand 2, single buffered']
    #allocation8 [shape = 'u8[524288]{0}', space=vmem, size = 0x80000, scoped, tag = 'input window, operand 4, single buffered']
    #allocation9 [shape = 's32[1]{0}', space=sflag, size = 0x4, scoped, tag = 'scoped memory for tpu_custom_call.1']
    #allocation10 [shape = 'u8[65536]{0}', space=vmem, size = 0x10000, scoped, tag = 'input window, operand 6, single buffered']
    #allocation11 [shape = 'u8[512]{0}', space=vmem, size = 0x400, scoped, tag = 'output window, operand 0, single buffered']
    %13 = vsyncpa [#allocation3], 0
    %14 = vsyncpa [#allocation6], 0
    %15 = vsyncpa [#allocation9], 0
    %16 = vsyncpa [#allocation4], 0
    // Predicated region
    $region2: #{tpu_custom_call.1} parent=1 // pred_check
      _
    $region3: #{tpu_custom_call.1} parent=1 // pred_check_branch
      %18 = sbr.rel (0) target = $region5
    $region4: #{tpu_custom_call.1} parent=1 // pred_region
      %s20 = ssub.s32 128, 128
      %21 = vsyncadd [#allocation3], %s20
      %s23 = sshll.u32 [#allocation2], 4
      %s24 = int_to_ptr.vmem [resolvable:$true] %s23
      %26 = dma.hbm_to_vmem [thread:$0]  %s0, 128, %s24, [#allocation3]
    $region5: #{tpu_custom_call.1} parent=1 // pred_fallthru
      _
    // Predicated region
    $region6: #{tpu_custom_call.1} parent=1 // pred_check
      _
    $region7: #{tpu_custom_call.1} parent=1 // pred_check_branch
      %28 = sbr.rel (0) target = $region9
    $region8: #{tpu_custom_call.1} parent=1 // pred_region
      %s30 = ssub.s32 8192, 8192
      %31 = vsyncadd [#allocation6], %s30
      %s32 = sshll.u32 [#allocation5], 4
      %s33 = int_to_ptr.vmem [resolvable:$true] %s32
      %38 = dma.hbm_to_vmem [thread:$0]  %s1, 8192, %s33, [#allocation6], 512, 512, 32
    $region9: #{tpu_custom_call.1} parent=1 // pred_fallthru
      _
    // Predicated region
    $region10: #{tpu_custom_call.1} parent=1 // pred_check
      _
    $region11: #{tpu_custom_call.1} parent=1 // pred_check_branch
      %40 = sbr.rel (0) target = $region13
    $region12: #{tpu_custom_call.1} parent=1 // pred_region
      %s42 = ssub.s32 8192, 8192
      %43 = vsyncadd [#allocation6], %s42
      %s44 = sshll.u32 [#allocation7], 4
      %s45 = int_to_ptr.vmem [resolvable:$true] %s44
      %50 = dma.hbm_to_vmem [thread:$0]  %s2, 8192, %s45, [#allocation6], 512, 512, 32
    $region13: #{tpu_custom_call.1} parent=1 // pred_fallthru
      _
    // Predicated region
    $region14: #{tpu_custom_call.1} parent=1 // pred_check
      _
    $region15: #{tpu_custom_call.1} parent=1 // pred_check_branch
      %52 = sbr.rel (0) target = $region17
    $region16: #{tpu_custom_call.1} parent=1 // pred_region
      _
    $region17: #{tpu_custom_call.1} parent=1 // pred_fallthru
      _
    // Predicated region
    $region18: #{tpu_custom_call.1} parent=1 // pred_check
      _
    $region19: #{tpu_custom_call.1} parent=1 // pred_check_branch
      %54 = sbr.rel (0) target = $region21
    $region20: #{tpu_custom_call.1} parent=1 // pred_region
      %s56 = ssub.s32 16384, 16384
      %57 = vsyncadd [#allocation9], %s56
      %s58 = sshll.u32 [#allocation8], 4
      %s59 = int_to_ptr.vmem [resolvable:$true] %s58
      %64 = dma.hbm_to_vmem [thread:$0]  %s4, 16384, %s59, [#allocation9], 512, 512, 32
    $region21: #{tpu_custom_call.1} parent=1 // pred_fallthru
      _
    // Predicated region
    $region22: #{tpu_custom_call.1} parent=1 // pred_check
      _
    $region23: #{tpu_custom_call.1} parent=1 // pred_check_branch
      %66 = sbr.rel (0) target = $region25
    $region24: #{tpu_custom_call.1} parent=1 // pred_region
      _
    $region25: #{tpu_custom_call.1} parent=1 // pred_fallthru
      _
    // Predicated region
    $region26: #{tpu_custom_call.1} parent=1 // pred_check
      _
    $region27: #{tpu_custom_call.1} parent=1 // pred_check_branch
      %68 = sbr.rel (0) target = $region29
    $region28: #{tpu_custom_call.1} parent=1 // pred_region
      %s70 = ssub.s32 2048, 2048
      %71 = vsyncadd [#allocation9], %s70
      %s72 = sshll.u32 [#allocation10], 4
      %s73 = int_to_ptr.vmem [resolvable:$true] %s72
      %78 = dma.hbm_to_vmem [thread:$0]  %s6, 2048, %s73, [#allocation9], 128, 128, 8
    $region29: #{tpu_custom_call.1} parent=1 // pred_fallthru
      _
    // Predicated region
    $region30: #{tpu_custom_call.1} parent=1 // pred_check
      _
    $region31: #{tpu_custom_call.1} parent=1 // pred_check_branch
      %80 = sbr.rel (0) target = $region33
    $region32: #{tpu_custom_call.1} parent=1 // pred_region
      _
    $region33: #{tpu_custom_call.1} parent=1 // pred_fallthru
      _
    // Predicated region
    $region34: #{tpu_custom_call.1} parent=1 // pred_check
      _
    $region35: #{tpu_custom_call.1} parent=1 // pred_check_branch
      %82 = sbr.rel (0) target = $region37
    $region36: #{tpu_custom_call.1} parent=1 // pred_region
      %83 = dma.done [#allocation3], 128
    $region37: #{tpu_custom_call.1} parent=1 // pred_fallthru
      _
    // Predicated region
    $region38: #{tpu_custom_call.1} parent=1 // pred_check
      _
    $region39: #{tpu_custom_call.1} parent=1 // pred_check_branch
      %85 = sbr.rel (0) target = $region41
    $region40: #{tpu_custom_call.1} parent=1 // pred_region
      %86 = dma.done [#allocation6], 8192
    $region41: #{tpu_custom_call.1} parent=1 // pred_fallthru
      _
    // Predicated region
    $region42: #{tpu_custom_call.1} parent=1 // pred_check
      _
    $region43: #{tpu_custom_call.1} parent=1 // pred_check_branch
      %88 = sbr.rel (0) target = $region45
    $region44: #{tpu_custom_call.1} parent=1 // pred_region
      %89 = dma.done [#allocation6], 8192
    $region45: #{tpu_custom_call.1} parent=1 // pred_fallthru
      _
    // Predicated region
    $region46: #{tpu_custom_call.1} parent=1 // pred_check
      _
    $region47: #{tpu_custom_call.1} parent=1 // pred_check_branch
      %91 = sbr.rel (0) target = $region49
    $region48: #{tpu_custom_call.1} parent=1 // pred_region
      %92 = dma.done [#allocation9], 16384
    $region49: #{tpu_custom_call.1} parent=1 // pred_fallthru
      _
    // Predicated region
    $region50: #{tpu_custom_call.1} parent=1 // pred_check
      _
    $region51: #{tpu_custom_call.1} parent=1 // pred_check_branch
      %94 = sbr.rel (0) target = $region53
    $region52: #{tpu_custom_call.1} parent=1 // pred_region
      %95 = dma.done [#allocation9], 2048
    $region53: #{tpu_custom_call.1} parent=1 // pred_fallthru
      _
    %v96 = vld [vmem:[#allocation2] sm:$0xff]
    %v97 = vld [vmem:[#allocation5] sm:$0xff]
    %v98 = vld [vmem:[#allocation5 + $0x8] sm:$0xff]
    %v99 = vld [vmem:[#allocation5 + $0x10] sm:$0xff]
    %v100 = vld [vmem:[#allocation5 + $0x18] sm:$0xff]
    %v101 = vld [vmem:[#allocation5 + $0x20] sm:$0xff]
    %v102 = vld [vmem:[#allocation5 + $0x28] sm:$0xff]
    %v103 = vld [vmem:[#allocation5 + $0x30] sm:$0xff]
    %v104 = vld [vmem:[#allocation5 + $0x38] sm:$0xff]
    %v105 = vld [vmem:[#allocation5 + $0x40] sm:$0xff]
    %v106 = vld [vmem:[#allocation5 + $0x48] sm:$0xff]
    %v107 = vld [vmem:[#allocation5 + $0x50] sm:$0xff]
    %v108 = vld [vmem:[#allocation5 + $0x58] sm:$0xff]
    %v109 = vld [vmem:[#allocation5 + $0x60] sm:$0xff]
    %v110 = vld [vmem:[#allocation5 + $0x68] sm:$0xff]
    %v111 = vld [vmem:[#allocation5 + $0x70] sm:$0xff]
    %v112 = vld [vmem:[#allocation5 + $0x78] sm:$0xff]
    %v113 = vld [vmem:[#allocation5 + $0x80] sm:$0xff]
    %v114 = vld [vmem:[#allocation5 + $0x88] sm:$0xff]
    %v115 = vld [vmem:[#allocation5 + $0x90] sm:$0xff]
    %v116 = vld [vmem:[#allocation5 + $0x98] sm:$0xff]
    %v117 = vld [vmem:[#allocation5 + $0xa0] sm:$0xff]
    %v118 = vld [vmem:[#allocation5 + $0xa8] sm:$0xff]
    %v119 = vld [vmem:[#allocation5 + $0xb0] sm:$0xff]
    %v120 = vld [vmem:[#allocation5 + $0xb8] sm:$0xff]
    %v121 = vld [vmem:[#allocation5 + $0xc0] sm:$0xff]
    %v122 = vld [vmem:[#allocation5 + $0xc8] sm:$0xff]
    %v123 = vld [vmem:[#allocation5 + $0xd0] sm:$0xff]
    %v124 = vld [vmem:[#allocation5 + $0xd8] sm:$0xff]
    %v125 = vld [vmem:[#allocation5 + $0xe0] sm:$0xff]
    %v126 = vld [vmem:[#allocation5 + $0xe8] sm:$0xff]
    %v127 = vld [vmem:[#allocation5 + $0xf0] sm:$0xff]
    %v128 = vld [vmem:[#allocation5 + $0xf8] sm:$0xff]
    %v129 = vld [vmem:[#allocation5 + $0x100] sm:$0xff]
    %v130 = vld [vmem:[#allocation5 + $0x108] sm:$0xff]
    %v131 = vld [vmem:[#allocation5 + $0x110] sm:$0xff]
    %v132 = vld [vmem:[#allocation5 + $0x118] sm:$0xff]
    %v133 = vld [vmem:[#allocation5 + $0x120] sm:$0xff]
    %v134 = vld [vmem:[#allocation5 + $0x128] sm:$0xff]
    %v135 = vld [vmem:[#allocation5 + $0x130] sm:$0xff]
    %v136 = vld [vmem:[#allocation5 + $0x138] sm:$0xff]
    %v137 = vld [vmem:[#allocation5 + $0x140] sm:$0xff]
    %v138 = vld [vmem:[#allocation5 + $0x148] sm:$0xff]
    %v139 = vld [vmem:[#allocation5 + $0x150] sm:$0xff]
    %v140 = vld [vmem:[#allocation5 + $0x158] sm:$0xff]
    %v141 = vld [vmem:[#allocation5 + $0x160] sm:$0xff]
    %v142 = vld [vmem:[#allocation5 + $0x168] sm:$0xff]
    %v143 = vld [vmem:[#allocation5 + $0x170] sm:$0xff]
    %v144 = vld [vmem:[#allocation5 + $0x178] sm:$0xff]
    %v145 = vld [vmem:[#allocation5 + $0x180] sm:$0xff]
    %v146 = vld [vmem:[#allocation5 + $0x188] sm:$0xff]
    %v147 = vld [vmem:[#allocation5 + $0x190] sm:$0xff]
    %v148 = vld [vmem:[#allocation5 + $0x198] sm:$0xff]
    %v149 = vld [vmem:[#allocation5 + $0x1a0] sm:$0xff]
    %v150 = vld [vmem:[#allocation5 + $0x1a8] sm:$0xff]
    %v151 = vld [vmem:[#allocation5 + $0x1b0] sm:$0xff]
    %v152 = vld [vmem:[#allocation5 + $0x1b8] sm:$0xff]
    %v153 = vld [vmem:[#allocation5 + $0x1c0] sm:$0xff]
    %v154 = vld [vmem:[#allocation5 + $0x1c8] sm:$0xff]
    %v155 = vld [vmem:[#allocation5 + $0x1d0] sm:$0xff]
    %v156 = vld [vmem:[#allocation5 + $0x1d8] sm:$0xff]
    %v157 = vld [vmem:[#allocation5 + $0x1e0] sm:$0xff]
    %v158 = vld [vmem:[#allocation5 + $0x1e8] sm:$0xff]
    %v159 = vld [vmem:[#allocation5 + $0x1f0] sm:$0xff]
    %v160 = vld [vmem:[#allocation5 + $0x1f8] sm:$0xff]
    %v161 = vld [vmem:[%s3] sm:$0xf]
    %v163 = vlaneseq
    %v164 = vshrl.u32 %v163, 7
    %v165 = vsub.s32 0, %v164
    %v166 = vrot.slane %v161, %v165
    %v167 = vlaneseq
    %v168 = vshrl.u32 %v167, 7
    %v169 = vsub.s32 1, %v168
    %v170 = vrot.slane %v161, %v169
    %v171 = vlaneseq
    %v172 = vshrl.u32 %v171, 7
    %v173 = vsub.s32 2, %v172
    %v174 = vrot.slane %v161, %v173
    %v175 = vlaneseq
    %v176 = vshrl.u32 %v175, 7
    %v177 = vsub.s32 3, %v176
    %v178 = vrot.slane %v161, %v177
    %183 = vmatprep.subr.mxu0 %v158
    %184 = vmatpush1.msra.mxu0 %v157
    %185 = vmatprep.subr.mxu0 %v154
    %186 = vmatpush1.msra.mxu0 %v153
    %187 = vmatprep.subr.mxu0 %v150
    %188 = vmatpush1.msra.mxu0 %v149
    %189 = vmatprep.subr.mxu0 %v146
    %190 = vmatpush1.msra.mxu0 %v145
    %191 = vmatprep.subr.mxu0 %v142
    %192 = vmatpush1.msra.mxu0 %v141
    %193 = vmatprep.subr.mxu0 %v138
    %194 = vmatpush1.msra.mxu0 %v137
    %195 = vmatprep.subr.mxu0 %v134
    %196 = vmatpush1.msra.mxu0 %v133
    %197 = vmatprep.subr.mxu0 %v130
    %198 = vmatpush1.msra.mxu0 %v129
    %199 = vmatprep.subr.mxu0 %v126
    %200 = vmatpush1.msra.mxu0 %v125
    %201 = vmatprep.subr.mxu0 %v122
    %202 = vmatpush1.msra.mxu0 %v121
    %203 = vmatprep.subr.mxu0 %v118
    %204 = vmatpush1.msra.mxu0 %v117
    %205 = vmatprep.subr.mxu0 %v114
    %206 = vmatpush1.msra.mxu0 %v113
    %207 = vmatprep.subr.mxu0 %v110
    %208 = vmatpush1.msra.mxu0 %v109
    %209 = vmatprep.subr.mxu0 %v106
    %210 = vmatpush1.msra.mxu0 %v105
    %211 = vmatprep.subr.mxu0 %v102
    %212 = vmatpush1.msra.mxu0 %v101
    %213 = vmatprep.subr.mxu0 %v98
    %214 = vmatpush1.msra.mxu0 %v97
    %215 = vmatprep.subr.mxu0 0.0
    %216 = vmatpush2.msra.mxu0 0.0
    %217 = vmatprep.subr.mxu0 0.0
    %218 = vmatpush2.msra.mxu0 0.0
    %219 = vmatprep.subr.mxu0 0.0
    %220 = vmatpush2.msra.mxu0 0.0
    %221 = vmatprep.subr.mxu0 0.0
    %222 = vmatpush2.msra.mxu0 0.0
    %223 = vmatprep.subr.mxu0 0.0
    %224 = vmatpush2.msra.mxu0 0.0
    %225 = vmatprep.subr.mxu0 0.0
    %226 = vmatpush2.msra.mxu0 0.0
    %227 = vmatprep.subr.mxu0 0.0
    %228 = vmatpush2.msra.mxu0 0.0
    %229 = vmatprep.subr.mxu0 0.0
    %230 = vmatpush2.msra.mxu0 0.0
    %231 = vmatprep.subr.mxu0 0.0
    %232 = vmatpush2.msra.mxu0 0.0
    %233 = vmatprep.subr.mxu0 0.0
    %234 = vmatpush2.msra.mxu0 0.0
    %235 = vmatprep.subr.mxu0 0.0
    %236 = vmatpush2.msra.mxu0 0.0
    %237 = vmatprep.subr.mxu0 0.0
    %238 = vmatpush2.msra.mxu0 0.0
    %239 = vmatprep.subr.mxu0 0.0
    %240 = vmatpush2.msra.mxu0 0.0
    %241 = vmatprep.subr.mxu0 0.0
    %242 = vmatpush2.msra.mxu0 0.0
    %243 = vmatprep.subr.mxu0 0.0
    %244 = vmatpush2.msra.mxu0 0.0
    %245 = vmatprep.subr.mxu0 0.0
    %246 = vmatpush2.msra.mxu0 0.0
    %247 = vmatprep.mubr.f32.mxu0 0.0
    %248 = vmatmul.mubr.f32.gmra.mxu0 %v96
    %v249 = vpop.f32.mrf.mxu0
    %v250 = vadd.f32 %v166, %v249
    %v251 = vpop.f32.mrf.mxu0
    %v252 = vadd.f32 %v170, %v251
    %253 = vdwg.mxu0
    %254 = vmatprep.subr.mxu0 %v160
    %255 = vmatpush1.msra.mxu0 %v159
    %256 = vmatprep.subr.mxu0 %v156
    %257 = vmatpush1.msra.mxu0 %v155
    %258 = vmatprep.subr.mxu0 %v152
    %259 = vmatpush1.msra.mxu0 %v151
    %260 = vmatprep.subr.mxu0 %v148
    %261 = vmatpush1.msra.mxu0 %v147
    %262 = vmatprep.subr.mxu0 %v144
    %263 = vmatpush1.msra.mxu0 %v143
    %264 = vmatprep.subr.mxu0 %v140
    %265 = vmatpush1.msra.mxu0 %v139
    %266 = vmatprep.subr.mxu0 %v136
    %267 = vmatpush1.msra.mxu0 %v135
    %268 = vmatprep.subr.mxu0 %v132
    %269 = vmatpush1.msra.mxu0 %v131
    %270 = vmatprep.subr.mxu0 %v128
    %271 = vmatpush1.msra.mxu0 %v127
    %272 = vmatprep.subr.mxu0 %v124
    %273 = vmatpush1.msra.mxu0 %v123
    %274 = vmatprep.subr.mxu0 %v120
    %275 = vmatpush1.msra.mxu0 %v119
    %276 = vmatprep.subr.mxu0 %v116
    %277 = vmatpush1.msra.mxu0 %v115
    %278 = vmatprep.subr.mxu0 %v112
    %279 = vmatpush1.msra.mxu0 %v111
    %280 = vmatprep.subr.mxu0 %v108
    %281 = vmatpush1.msra.mxu0 %v107
    %282 = vmatprep.subr.mxu0 %v104
    %283 = vmatpush1.msra.mxu0 %v103
    %284 = vmatprep.subr.mxu0 %v100
    %285 = vmatpush1.msra.mxu0 %v99
    %286 = vmatprep.subr.mxu0 0.0
    %287 = vmatpush2.msra.mxu0 0.0
    %288 = vmatprep.subr.mxu0 0.0
    %289 = vmatpush2.msra.mxu0 0.0
    %290 = vmatprep.subr.mxu0 0.0
    %291 = vmatpush2.msra.mxu0 0.0
    %292 = vmatprep.subr.mxu0 0.0
    %293 = vmatpush2.msra.mxu0 0.0
    %294 = vmatprep.subr.mxu0 0.0
    %295 = vmatpush2.msra.mxu0 0.0
    %296 = vmatprep.subr.mxu0 0.0
    %297 = vmatpush2.msra.mxu0 0.0
    %298 = vmatprep.subr.mxu0 0.0
    %299 = vmatpush2.msra.mxu0 0.0
    %300 = vmatprep.subr.mxu0 0.0
    %301 = vmatpush2.msra.mxu0 0.0
    %302 = vmatprep.subr.mxu0 0.0
    %303 = vmatpush2.msra.mxu0 0.0
    %304 = vmatprep.subr.mxu0 0.0
    %305 = vmatpush2.msra.mxu0 0.0
    %306 = vmatprep.subr.mxu0 0.0
    %307 = vmatpush2.msra.mxu0 0.0
    %308 = vmatprep.subr.mxu0 0.0
    %309 = vmatpush2.msra.mxu0 0.0
    %310 = vmatprep.subr.mxu0 0.0
    %311 = vmatpush2.msra.mxu0 0.0
    %312 = vmatprep.subr.mxu0 0.0
    %313 = vmatpush2.msra.mxu0 0.0
    %314 = vmatprep.subr.mxu0 0.0
    %315 = vmatpush2.msra.mxu0 0.0
    %316 = vmatprep.subr.mxu0 0.0
    %317 = vmatpush2.msra.mxu0 0.0
    %318 = vmatprep.mubr.f32.mxu0 0.0
    %319 = vmatmul.mubr.f32.gmra.mxu0 %v96
    %v320 = vpop.f32.mrf.mxu0
    %v321 = vadd.f32 %v174, %v320
    %v322 = vpop.f32.mrf.mxu0
    %v323 = vadd.f32 %v178, %v322
    %324 = vdwg.mxu0
    %v325 = vld [vmem:[#allocation7] sm:$0xff]
    %v326 = vld [vmem:[#allocation7 + $0x8] sm:$0xff]
    %v327 = vld [vmem:[#allocation7 + $0x10] sm:$0xff]
    %v328 = vld [vmem:[#allocation7 + $0x18] sm:$0xff]
    %v329 = vld [vmem:[#allocation7 + $0x20] sm:$0xff]
    %v330 = vld [vmem:[#allocation7 + $0x28] sm:$0xff]
    %v331 = vld [vmem:[#allocation7 + $0x30] sm:$0xff]
    %v332 = vld [vmem:[#allocation7 + $0x38] sm:$0xff]
    %v333 = vld [vmem:[#allocation7 + $0x40] sm:$0xff]
    %v334 = vld [vmem:[#allocation7 + $0x48] sm:$0xff]
    %v335 = vld [vmem:[#allocation7 + $0x50] sm:$0xff]
    %v336 = vld [vmem:[#allocation7 + $0x58] sm:$0xff]
    %v337 = vld [vmem:[#allocation7 + $0x60] sm:$0xff]
    %v338 = vld [vmem:[#allocation7 + $0x68] sm:$0xff]
    %v339 = vld [vmem:[#allocation7 + $0x70] sm:$0xff]
    %v340 = vld [vmem:[#allocation7 + $0x78] sm:$0xff]
    %v341 = vld [vmem:[#allocation7 + $0x80] sm:$0xff]
    %v342 = vld [vmem:[#allocation7 + $0x88] sm:$0xff]
    %v343 = vld [vmem:[#allocation7 + $0x90] sm:$0xff]
    %v344 = vld [vmem:[#allocation7 + $0x98] sm:$0xff]
    %v345 = vld [vmem:[#allocation7 + $0xa0] sm:$0xff]
    %v346 = vld [vmem:[#allocation7 + $0xa8] sm:$0xff]
    %v347 = vld [vmem:[#allocation7 + $0xb0] sm:$0xff]
    %v348 = vld [vmem:[#allocation7 + $0xb8] sm:$0xff]
    %v349 = vld [vmem:[#allocation7 + $0xc0] sm:$0xff]
    %v350 = vld [vmem:[#allocation7 + $0xc8] sm:$0xff]
    %v351 = vld [vmem:[#allocation7 + $0xd0] sm:$0xff]
    %v352 = vld [vmem:[#allocation7 + $0xd8] sm:$0xff]
    %v353 = vld [vmem:[#allocation7 + $0xe0] sm:$0xff]
    %v354 = vld [vmem:[#allocation7 + $0xe8] sm:$0xff]
    %v355 = vld [vmem:[#allocation7 + $0xf0] sm:$0xff]
    %v356 = vld [vmem:[#allocation7 + $0xf8] sm:$0xff]
    %v357 = vld [vmem:[#allocation7 + $0x100] sm:$0xff]
    %v358 = vld [vmem:[#allocation7 + $0x108] sm:$0xff]
    %v359 = vld [vmem:[#allocation7 + $0x110] sm:$0xff]
    %v360 = vld [vmem:[#allocation7 + $0x118] sm:$0xff]
    %v361 = vld [vmem:[#allocation7 + $0x120] sm:$0xff]
    %v362 = vld [vmem:[#allocation7 + $0x128] sm:$0xff]
    %v363 = vld [vmem:[#allocation7 + $0x130] sm:$0xff]
    %v364 = vld [vmem:[#allocation7 + $0x138] sm:$0xff]
    %v365 = vld [vmem:[#allocation7 + $0x140] sm:$0xff]
    %v366 = vld [vmem:[#allocation7 + $0x148] sm:$0xff]
    %v367 = vld [vmem:[#allocation7 + $0x150] sm:$0xff]
    %v368 = vld [vmem:[#allocation7 + $0x158] sm:$0xff]
    %v369 = vld [vmem:[#allocation7 + $0x160] sm:$0xff]
    %v370 = vld [vmem:[#allocation7 + $0x168] sm:$0xff]
    %v371 = vld [vmem:[#allocation7 + $0x170] sm:$0xff]
    %v372 = vld [vmem:[#allocation7 + $0x178] sm:$0xff]
    %v373 = vld [vmem:[#allocation7 + $0x180] sm:$0xff]
    %v374 = vld [vmem:[#allocation7 + $0x188] sm:$0xff]
    %v375 = vld [vmem:[#allocation7 + $0x190] sm:$0xff]
    %v376 = vld [vmem:[#allocation7 + $0x198] sm:$0xff]
    %v377 = vld [vmem:[#allocation7 + $0x1a0] sm:$0xff]
    %v378 = vld [vmem:[#allocation7 + $0x1a8] sm:$0xff]
    %v379 = vld [vmem:[#allocation7 + $0x1b0] sm:$0xff]
    %v380 = vld [vmem:[#allocation7 + $0x1b8] sm:$0xff]
    %v381 = vld [vmem:[#allocation7 + $0x1c0] sm:$0xff]
    %v382 = vld [vmem:[#allocation7 + $0x1c8] sm:$0xff]
    %v383 = vld [vmem:[#allocation7 + $0x1d0] sm:$0xff]
    %v384 = vld [vmem:[#allocation7 + $0x1d8] sm:$0xff]
    %v385 = vld [vmem:[#allocation7 + $0x1e0] sm:$0xff]
    %v386 = vld [vmem:[#allocation7 + $0x1e8] sm:$0xff]
    %v387 = vld [vmem:[#allocation7 + $0x1f0] sm:$0xff]
    %v388 = vld [vmem:[#allocation7 + $0x1f8] sm:$0xff]
    %389 = vmatprep.subr.mxu0 %v386
    %390 = vmatpush1.msra.mxu0 %v385
    %391 = vmatprep.subr.mxu0 %v382
    %392 = vmatpush1.msra.mxu0 %v381
    %393 = vmatprep.subr.mxu0 %v378
    %394 = vmatpush1.msra.mxu0 %v377
    %395 = vmatprep.subr.mxu0 %v374
    %396 = vmatpush1.msra.mxu0 %v373
    %397 = vmatprep.subr.mxu0 %v370
    %398 = vmatpush1.msra.mxu0 %v369
    %399 = vmatprep.subr.mxu0 %v366
    %400 = vmatpush1.msra.mxu0 %v365
    %401 = vmatprep.subr.mxu0 %v362
    %402 = vmatpush1.msra.mxu0 %v361
    %403 = vmatprep.subr.mxu0 %v358
    %404 = vmatpush1.msra.mxu0 %v357
    %405 = vmatprep.subr.mxu0 %v354
    %406 = vmatpush1.msra.mxu0 %v353
    %407 = vmatprep.subr.mxu0 %v350
    %408 = vmatpush1.msra.mxu0 %v349
    %409 = vmatprep.subr.mxu0 %v346
    %410 = vmatpush1.msra.mxu0 %v345
    %411 = vmatprep.subr.mxu0 %v342
    %412 = vmatpush1.msra.mxu0 %v341
    %413 = vmatprep.subr.mxu0 %v338
    %414 = vmatpush1.msra.mxu0 %v337
    %415 = vmatprep.subr.mxu0 %v334
    %416 = vmatpush1.msra.mxu0 %v333
    %417 = vmatprep.subr.mxu0 %v330
    %418 = vmatpush1.msra.mxu0 %v329
    %419 = vmatprep.subr.mxu0 %v326
    %420 = vmatpush1.msra.mxu0 %v325
    %421 = vmatprep.subr.mxu0 0.0
    %422 = vmatpush2.msra.mxu0 0.0
    %423 = vmatprep.subr.mxu0 0.0
    %424 = vmatpush2.msra.mxu0 0.0
    %425 = vmatprep.subr.mxu0 0.0
    %426 = vmatpush2.msra.mxu0 0.0
    %427 = vmatprep.subr.mxu0 0.0
    %428 = vmatpush2.msra.mxu0 0.0
    %429 = vmatprep.subr.mxu0 0.0
    %430 = vmatpush2.msra.mxu0 0.0
    %431 = vmatprep.subr.mxu0 0.0
    %432 = vmatpush2.msra.mxu0 0.0
    %433 = vmatprep.subr.mxu0 0.0
    %434 = vmatpush2.msra.mxu0 0.0
    %435 = vmatprep.subr.mxu0 0.0
    %436 = vmatpush2.msra.mxu0 0.0
    %437 = vmatprep.subr.mxu0 0.0
    %438 = vmatpush2.msra.mxu0 0.0
    %439 = vmatprep.subr.mxu0 0.0
    %440 = vmatpush2.msra.mxu0 0.0
    %441 = vmatprep.subr.mxu0 0.0
    %442 = vmatpush2.msra.mxu0 0.0
    %443 = vmatprep.subr.mxu0 0.0
    %444 = vmatpush2.msra.mxu0 0.0
    %445 = vmatprep.subr.mxu0 0.0
    %446 = vmatpush2.msra.mxu0 0.0
    %447 = vmatprep.subr.mxu0 0.0
    %448 = vmatpush2.msra.mxu0 0.0
    %449 = vmatprep.subr.mxu0 0.0
    %450 = vmatpush2.msra.mxu0 0.0
    %451 = vmatprep.subr.mxu0 0.0
    %452 = vmatpush2.msra.mxu0 0.0
    %453 = vmatprep.mubr.f32.mxu0 0.0
    %454 = vmatmul.mubr.f32.gmra.mxu0 0.0
    %v455 = vpop.f32.mrf.mxu0
    %v456 = vadd.f32 0.0, %v455
    %v457 = vpop.f32.mrf.mxu0
    %v458 = vadd.f32 0.0, %v457
    %459 = vdwg.mxu0
    %460 = vmatprep.subr.mxu0 %v388
    %461 = vmatpush1.msra.mxu0 %v387
    %462 = vmatprep.subr.mxu0 %v384
    %463 = vmatpush1.msra.mxu0 %v383
    %464 = vmatprep.subr.mxu0 %v380
    %465 = vmatpush1.msra.mxu0 %v379
    %466 = vmatprep.subr.mxu0 %v376
    %467 = vmatpush1.msra.mxu0 %v375
    %468 = vmatprep.subr.mxu0 %v372
    %469 = vmatpush1.msra.mxu0 %v371
    %470 = vmatprep.subr.mxu0 %v368
    %471 = vmatpush1.msra.mxu0 %v367
    %472 = vmatprep.subr.mxu0 %v364
    %473 = vmatpush1.msra.mxu0 %v363
    %474 = vmatprep.subr.mxu0 %v360
    %475 = vmatpush1.msra.mxu0 %v359
    %476 = vmatprep.subr.mxu0 %v356
    %477 = vmatpush1.msra.mxu0 %v355
    %478 = vmatprep.subr.mxu0 %v352
    %479 = vmatpush1.msra.mxu0 %v351
    %480 = vmatprep.subr.mxu0 %v348
    %481 = vmatpush1.msra.mxu0 %v347
    %482 = vmatprep.subr.mxu0 %v344
    %483 = vmatpush1.msra.mxu0 %v343
    %484 = vmatprep.subr.mxu0 %v340
    %485 = vmatpush1.msra.mxu0 %v339
    %486 = vmatprep.subr.mxu0 %v336
    %487 = vmatpush1.msra.mxu0 %v335
    %488 = vmatprep.subr.mxu0 %v332
    %489 = vmatpush1.msra.mxu0 %v331
    %490 = vmatprep.subr.mxu0 %v328
    %491 = vmatpush1.msra.mxu0 %v327
    %492 = vmatprep.subr.mxu0 0.0
    %493 = vmatpush2.msra.mxu0 0.0
    %494 = vmatprep.subr.mxu0 0.0
    %495 = vmatpush2.msra.mxu0 0.0
    %496 = vmatprep.subr.mxu0 0.0
    %497 = vmatpush2.msra.mxu0 0.0
    %498 = vmatprep.subr.mxu0 0.0
    %499 = vmatpush2.msra.mxu0 0.0
    %500 = vmatprep.subr.mxu0 0.0
    %501 = vmatpush2.msra.mxu0 0.0
    %502 = vmatprep.subr.mxu0 0.0
    %503 = vmatpush2.msra.mxu0 0.0
    %504 = vmatprep.subr.mxu0 0.0
    %505 = vmatpush2.msra.mxu0 0.0
    %506 = vmatprep.subr.mxu0 0.0
    %507 = vmatpush2.msra.mxu0 0.0
    %508 = vmatprep.subr.mxu0 0.0
    %509 = vmatpush2.msra.mxu0 0.0
    %510 = vmatprep.subr.mxu0 0.0
    %511 = vmatpush2.msra.mxu0 0.0
    %512 = vmatprep.subr.mxu0 0.0
    %513 = vmatpush2.msra.mxu0 0.0
    %514 = vmatprep.subr.mxu0 0.0
    %515 = vmatpush2.msra.mxu0 0.0
    %516 = vmatprep.subr.mxu0 0.0
    %517 = vmatpush2.msra.mxu0 0.0
    %518 = vmatprep.subr.mxu0 0.0
    %519 = vmatpush2.msra.mxu0 0.0
    %520 = vmatprep.subr.mxu0 0.0
    %521 = vmatpush2.msra.mxu0 0.0
    %522 = vmatprep.subr.mxu0 0.0
    %523 = vmatpush2.msra.mxu0 0.0
    %524 = vmatprep.mubr.f32.mxu0 0.0
    %525 = vmatmul.mubr.f32.gmra.mxu0 0.0
    %v526 = vpop.f32.mrf.mxu0
    %v527 = vadd.f32 0.0, %v526
    %v528 = vpop.f32.mrf.mxu0
    %v529 = vadd.f32 0.0, %v528
    %530 = vdwg.mxu0
    %v531 = vadd.f32 %v250, %v456
    %v532 = vadd.f32 %v252, %v458
    %v533 = vadd.f32 %v321, %v527
    %v534 = vadd.f32 %v323, %v529
    %v535 = vxor.u32 %v531, 2147483648
    %v536 = vxor.u32 %v532, 2147483648
    %v537 = vxor.u32 %v533, 2147483648
    %v538 = vmul.f32 %v535, 1.442695
    %v539 = vpow.pop %v538
    %v540 = vmul.f32 %v536, 1.442695
    %v541 = vpow.pop %v540
    %v542 = vmul.f32 %v537, 1.442695
    %v543 = vpow.pop %v542
    %v544 = vadd.f32 %v539, 1.0
    %v545 = vadd.f32 %v541, 1.0
    %v546 = vadd.f32 %v543, 1.0
    %v547 = vrcp.pop %v544
    %v548 = vmul.f32 1.0, %v547
    %v549 = vrcp.pop %v545
    %v550 = vmul.f32 1.0, %v549
    %v551 = vrcp.pop %v546
    %v552 = vmul.f32 1.0, %v551
    %v553 = vtanh.pop %v534
    %v554 = vmul.f32 %v550, 0.0
    %v555 = vmul.f32 %v548, %v553
    %v556 = vadd.f32 %v554, %v555
    %v557 = vtanh.pop %v556
    %v558 = vmul.f32 %v552, %v557
    %v559 = vld [vmem:[#allocation8] sm:$0xff]
    %v560 = vld [vmem:[#allocation8 + $0x8] sm:$0xff]
    %v561 = vld [vmem:[#allocation8 + $0x10] sm:$0xff]
    %v562 = vld [vmem:[#allocation8 + $0x18] sm:$0xff]
    %v563 = vld [vmem:[#allocation8 + $0x20] sm:$0xff]
    %v564 = vld [vmem:[#allocation8 + $0x28] sm:$0xff]
    %v565 = vld [vmem:[#allocation8 + $0x30] sm:$0xff]
    %v566 = vld [vmem:[#allocation8 + $0x38] sm:$0xff]
    %v567 = vld [vmem:[#allocation8 + $0x40] sm:$0xff]
    %v568 = vld [vmem:[#allocation8 + $0x48] sm:$0xff]
    %v569 = vld [vmem:[#allocation8 + $0x50] sm:$0xff]
    %v570 = vld [vmem:[#allocation8 + $0x58] sm:$0xff]
    %v571 = vld [vmem:[#allocation8 + $0x60] sm:$0xff]
    %v572 = vld [vmem:[#allocation8 + $0x68] sm:$0xff]
    %v573 = vld [vmem:[#allocation8 + $0x70] sm:$0xff]
    %v574 = vld [vmem:[#allocation8 + $0x78] sm:$0xff]
    %v575 = vld [vmem:[#allocation8 + $0x80] sm:$0xff]
    %v576 = vld [vmem:[#allocation8 + $0x88] sm:$0xff]
    %v577 = vld [vmem:[#allocation8 + $0x90] sm:$0xff]
    %v578 = vld [vmem:[#allocation8 + $0x98] sm:$0xff]
    %v579 = vld [vmem:[#allocation8 + $0xa0] sm:$0xff]
    %v580 = vld [vmem:[#allocation8 + $0xa8] sm:$0xff]
    %v581 = vld [vmem:[#allocation8 + $0xb0] sm:$0xff]
    %v582 = vld [vmem:[#allocation8 + $0xb8] sm:$0xff]
    %v583 = vld [vmem:[#allocation8 + $0xc0] sm:$0xff]
    %v584 = vld [vmem:[#allocation8 + $0xc8] sm:$0xff]
    %v585 = vld [vmem:[#allocation8 + $0xd0] sm:$0xff]
    %v586 = vld [vmem:[#allocation8 + $0xd8] sm:$0xff]
    %v587 = vld [vmem:[#allocation8 + $0xe0] sm:$0xff]
    %v588 = vld [vmem:[#allocation8 + $0xe8] sm:$0xff]
    %v589 = vld [vmem:[#allocation8 + $0xf0] sm:$0xff]
    %v590 = vld [vmem:[#allocation8 + $0xf8] sm:$0xff]
    %v591 = vld [vmem:[#allocation8 + $0x100] sm:$0xff]
    %v592 = vld [vmem:[#allocation8 + $0x108] sm:$0xff]
    %v593 = vld [vmem:[#allocation8 + $0x110] sm:$0xff]
    %v594 = vld [vmem:[#allocation8 + $0x118] sm:$0xff]
    %v595 = vld [vmem:[#allocation8 + $0x120] sm:$0xff]
    %v596 = vld [vmem:[#allocation8 + $0x128] sm:$0xff]
    %v597 = vld [vmem:[#allocation8 + $0x130] sm:$0xff]
    %v598 = vld [vmem:[#allocation8 + $0x138] sm:$0xff]
    %v599 = vld [vmem:[#allocation8 + $0x140] sm:$0xff]
    %v600 = vld [vmem:[#allocation8 + $0x148] sm:$0xff]
    %v601 = vld [vmem:[#allocation8 + $0x150] sm:$0xff]
    %v602 = vld [vmem:[#allocation8 + $0x158] sm:$0xff]
    %v603 = vld [vmem:[#allocation8 + $0x160] sm:$0xff]
    %v604 = vld [vmem:[#allocation8 + $0x168] sm:$0xff]
    %v605 = vld [vmem:[#allocation8 + $0x170] sm:$0xff]
    %v606 = vld [vmem:[#allocation8 + $0x178] sm:$0xff]
    %v607 = vld [vmem:[#allocation8 + $0x180] sm:$0xff]
    %v608 = vld [vmem:[#allocation8 + $0x188] sm:$0xff]
    %v609 = vld [vmem:[#allocation8 + $0x190] sm:$0xff]
    %v610 = vld [vmem:[#allocation8 + $0x198] sm:$0xff]
    %v611 = vld [vmem:[#allocation8 + $0x1a0] sm:$0xff]
    %v612 = vld [vmem:[#allocation8 + $0x1a8] sm:$0xff]
    %v613 = vld [vmem:[#allocation8 + $0x1b0] sm:$0xff]
    %v614 = vld [vmem:[#allocation8 + $0x1b8] sm:$0xff]
    %v615 = vld [vmem:[#allocation8 + $0x1c0] sm:$0xff]
    %v616 = vld [vmem:[#allocation8 + $0x1c8] sm:$0xff]
    %v617 = vld [vmem:[#allocation8 + $0x1d0] sm:$0xff]
    %v618 = vld [vmem:[#allocation8 + $0x1d8] sm:$0xff]
    %v619 = vld [vmem:[#allocation8 + $0x1e0] sm:$0xff]
    %v620 = vld [vmem:[#allocation8 + $0x1e8] sm:$0xff]
    %v621 = vld [vmem:[#allocation8 + $0x1f0] sm:$0xff]
    %v622 = vld [vmem:[#allocation8 + $0x1f8] sm:$0xff]
    %v623 = vld [vmem:[#allocation8 + $0x200] sm:$0xff]
    %v624 = vld [vmem:[#allocation8 + $0x208] sm:$0xff]
    %v625 = vld [vmem:[#allocation8 + $0x210] sm:$0xff]
    %v626 = vld [vmem:[#allocation8 + $0x218] sm:$0xff]
    %v627 = vld [vmem:[#allocation8 + $0x220] sm:$0xff]
    %v628 = vld [vmem:[#allocation8 + $0x228] sm:$0xff]
    %v629 = vld [vmem:[#allocation8 + $0x230] sm:$0xff]
    %v630 = vld [vmem:[#allocation8 + $0x238] sm:$0xff]
    %v631 = vld [vmem:[#allocation8 + $0x240] sm:$0xff]
    %v632 = vld [vmem:[#allocation8 + $0x248] sm:$0xff]
    %v633 = vld [vmem:[#allocation8 + $0x250] sm:$0xff]
    %v634 = vld [vmem:[#allocation8 + $0x258] sm:$0xff]
    %v635 = vld [vmem:[#allocation8 + $0x260] sm:$0xff]
    %v636 = vld [vmem:[#allocation8 + $0x268] sm:$0xff]
    %v637 = vld [vmem:[#allocation8 + $0x270] sm:$0xff]
    %v638 = vld [vmem:[#allocation8 + $0x278] sm:$0xff]
    %v639 = vld [vmem:[#allocation8 + $0x280] sm:$0xff]
    %v640 = vld [vmem:[#allocation8 + $0x288] sm:$0xff]
    %v641 = vld [vmem:[#allocation8 + $0x290] sm:$0xff]
    %v642 = vld [vmem:[#allocation8 + $0x298] sm:$0xff]
    %v643 = vld [vmem:[#allocation8 + $0x2a0] sm:$0xff]
    %v644 = vld [vmem:[#allocation8 + $0x2a8] sm:$0xff]
    %v645 = vld [vmem:[#allocation8 + $0x2b0] sm:$0xff]
    %v646 = vld [vmem:[#allocation8 + $0x2b8] sm:$0xff]
    %v647 = vld [vmem:[#allocation8 + $0x2c0] sm:$0xff]
    %v648 = vld [vmem:[#allocation8 + $0x2c8] sm:$0xff]
    %v649 = vld [vmem:[#allocation8 + $0x2d0] sm:$0xff]
    %v650 = vld [vmem:[#allocation8 + $0x2d8] sm:$0xff]
    %v651 = vld [vmem:[#allocation8 + $0x2e0] sm:$0xff]
    %v652 = vld [vmem:[#allocation8 + $0x2e8] sm:$0xff]
    %v653 = vld [vmem:[#allocation8 + $0x2f0] sm:$0xff]
    %v654 = vld [vmem:[#allocation8 + $0x2f8] sm:$0xff]
    %v655 = vld [vmem:[#allocation8 + $0x300] sm:$0xff]
    %v656 = vld [vmem:[#allocation8 + $0x308] sm:$0xff]
    %v657 = vld [vmem:[#allocation8 + $0x310] sm:$0xff]
    %v658 = vld [vmem:[#allocation8 + $0x318] sm:$0xff]
    %v659 = vld [vmem:[#allocation8 + $0x320] sm:$0xff]
    %v660 = vld [vmem:[#allocation8 + $0x328] sm:$0xff]
    %v661 = vld [vmem:[#allocation8 + $0x330] sm:$0xff]
    %v662 = vld [vmem:[#allocation8 + $0x338] sm:$0xff]
    %v663 = vld [vmem:[#allocation8 + $0x340] sm:$0xff]
    %v664 = vld [vmem:[#allocation8 + $0x348] sm:$0xff]
    %v665 = vld [vmem:[#allocation8 + $0x350] sm:$0xff]
    %v666 = vld [vmem:[#allocation8 + $0x358] sm:$0xff]
    %v667 = vld [vmem:[#allocation8 + $0x360] sm:$0xff]
    %v668 = vld [vmem:[#allocation8 + $0x368] sm:$0xff]
    %v669 = vld [vmem:[#allocation8 + $0x370] sm:$0xff]
    %v670 = vld [vmem:[#allocation8 + $0x378] sm:$0xff]
    %v671 = vld [vmem:[#allocation8 + $0x380] sm:$0xff]
    %v672 = vld [vmem:[#allocation8 + $0x388] sm:$0xff]
    %v673 = vld [vmem:[#allocation8 + $0x390] sm:$0xff]
    %v674 = vld [vmem:[#allocation8 + $0x398] sm:$0xff]
    %v675 = vld [vmem:[#allocation8 + $0x3a0] sm:$0xff]
    %v676 = vld [vmem:[#allocation8 + $0x3a8] sm:$0xff]
    %v677 = vld [vmem:[#allocation8 + $0x3b0] sm:$0xff]
    %v678 = vld [vmem:[#allocation8 + $0x3b8] sm:$0xff]
    %v679 = vld [vmem:[#allocation8 + $0x3c0] sm:$0xff]
    %v680 = vld [vmem:[#allocation8 + $0x3c8] sm:$0xff]
    %v681 = vld [vmem:[#allocation8 + $0x3d0] sm:$0xff]
    %v682 = vld [vmem:[#allocation8 + $0x3d8] sm:$0xff]
    %v683 = vld [vmem:[#allocation8 + $0x3e0] sm:$0xff]
    %v684 = vld [vmem:[#allocation8 + $0x3e8] sm:$0xff]
    %v685 = vld [vmem:[#allocation8 + $0x3f0] sm:$0xff]
    %v686 = vld [vmem:[#allocation8 + $0x3f8] sm:$0xff]
    %v687 = vld [vmem:[%s5] sm:$0xf]
    %v689 = vlaneseq
    %v690 = vshrl.u32 %v689, 7
    %v691 = vsub.s32 0, %v690
    %v692 = vrot.slane %v687, %v691
    %v693 = vlaneseq
    %v694 = vshrl.u32 %v693, 7
    %v695 = vsub.s32 1, %v694
    %v696 = vrot.slane %v687, %v695
    %v697 = vlaneseq
    %v698 = vshrl.u32 %v697, 7
    %v699 = vsub.s32 2, %v698
    %v700 = vrot.slane %v687, %v699
    %v701 = vlaneseq
    %v702 = vshrl.u32 %v701, 7
    %v703 = vsub.s32 3, %v702
    %v704 = vrot.slane %v687, %v703
    %709 = vmatprep.subr.mxu0 %v620
    %710 = vmatpush1.msra.mxu0 %v619
    %711 = vmatprep.subr.mxu0 %v616
    %712 = vmatpush1.msra.mxu0 %v615
    %713 = vmatprep.subr.mxu0 %v612
    %714 = vmatpush1.msra.mxu0 %v611
    %715 = vmatprep.subr.mxu0 %v608
    %716 = vmatpush1.msra.mxu0 %v607
    %717 = vmatprep.subr.mxu0 %v604
    %718 = vmatpush1.msra.mxu0 %v603
    %719 = vmatprep.subr.mxu0 %v600
    %720 = vmatpush1.msra.mxu0 %v599
    %721 = vmatprep.subr.mxu0 %v596
    %722 = vmatpush1.msra.mxu0 %v595
    %723 = vmatprep.subr.mxu0 %v592
    %724 = vmatpush1.msra.mxu0 %v591
    %725 = vmatprep.subr.mxu0 %v588
    %726 = vmatpush1.msra.mxu0 %v587
    %727 = vmatprep.subr.mxu0 %v584
    %728 = vmatpush1.msra.mxu0 %v583
    %729 = vmatprep.subr.mxu0 %v580
    %730 = vmatpush1.msra.mxu0 %v579
    %731 = vmatprep.subr.mxu0 %v576
    %732 = vmatpush1.msra.mxu0 %v575
    %733 = vmatprep.subr.mxu0 %v572
    %734 = vmatpush1.msra.mxu0 %v571
    %735 = vmatprep.subr.mxu0 %v568
    %736 = vmatpush1.msra.mxu0 %v567
    %737 = vmatprep.subr.mxu0 %v564
    %738 = vmatpush1.msra.mxu0 %v563
    %739 = vmatprep.subr.mxu0 %v560
    %740 = vmatpush1.msra.mxu0 %v559
    %741 = vmatprep.subr.mxu0 %v684
    %742 = vmatpush2.msra.mxu0 %v683
    %743 = vmatprep.subr.mxu0 %v680
    %744 = vmatpush2.msra.mxu0 %v679
    %745 = vmatprep.subr.mxu0 %v676
    %746 = vmatpush2.msra.mxu0 %v675
    %747 = vmatprep.subr.mxu0 %v672
    %748 = vmatpush2.msra.mxu0 %v671
    %749 = vmatprep.subr.mxu0 %v668
    %750 = vmatpush2.msra.mxu0 %v667
    %751 = vmatprep.subr.mxu0 %v664
    %752 = vmatpush2.msra.mxu0 %v663
    %753 = vmatprep.subr.mxu0 %v660
    %754 = vmatpush2.msra.mxu0 %v659
    %755 = vmatprep.subr.mxu0 %v656
    %756 = vmatpush2.msra.mxu0 %v655
    %757 = vmatprep.subr.mxu0 %v652
    %758 = vmatpush2.msra.mxu0 %v651
    %759 = vmatprep.subr.mxu0 %v648
    %760 = vmatpush2.msra.mxu0 %v647
    %761 = vmatprep.subr.mxu0 %v644
    %762 = vmatpush2.msra.mxu0 %v643
    %763 = vmatprep.subr.mxu0 %v640
    %764 = vmatpush2.msra.mxu0 %v639
    %765 = vmatprep.subr.mxu0 %v636
    %766 = vmatpush2.msra.mxu0 %v635
    %767 = vmatprep.subr.mxu0 %v632
    %768 = vmatpush2.msra.mxu0 %v631
    %769 = vmatprep.subr.mxu0 %v628
    %770 = vmatpush2.msra.mxu0 %v627
    %771 = vmatprep.subr.mxu0 %v624
    %772 = vmatpush2.msra.mxu0 %v623
    %773 = vmatprep.mubr.f32.mxu0 0.0
    %774 = vmatmul.mubr.f32.gmra.mxu0 %v558
    %v775 = vpop.f32.mrf.mxu0
    %v776 = vadd.f32 %v692, %v775
    %v777 = vpop.f32.mrf.mxu0
    %v778 = vadd.f32 %v696, %v777
    %779 = vdwg.mxu0
    %780 = vmatprep.subr.mxu0 %v622
    %781 = vmatpush1.msra.mxu0 %v621
    %782 = vmatprep.subr.mxu0 %v618
    %783 = vmatpush1.msra.mxu0 %v617
    %784 = vmatprep.subr.mxu0 %v614
    %785 = vmatpush1.msra.mxu0 %v613
    %786 = vmatprep.subr.mxu0 %v610
    %787 = vmatpush1.msra.mxu0 %v609
    %788 = vmatprep.subr.mxu0 %v606
    %789 = vmatpush1.msra.mxu0 %v605
    %790 = vmatprep.subr.mxu0 %v602
    %791 = vmatpush1.msra.mxu0 %v601
    %792 = vmatprep.subr.mxu0 %v598
    %793 = vmatpush1.msra.mxu0 %v597
    %794 = vmatprep.subr.mxu0 %v594
    %795 = vmatpush1.msra.mxu0 %v593
    %796 = vmatprep.subr.mxu0 %v590
    %797 = vmatpush1.msra.mxu0 %v589
    %798 = vmatprep.subr.mxu0 %v586
    %799 = vmatpush1.msra.mxu0 %v585
    %800 = vmatprep.subr.mxu0 %v582
    %801 = vmatpush1.msra.mxu0 %v581
    %802 = vmatprep.subr.mxu0 %v578
    %803 = vmatpush1.msra.mxu0 %v577
    %804 = vmatprep.subr.mxu0 %v574
    %805 = vmatpush1.msra.mxu0 %v573
    %806 = vmatprep.subr.mxu0 %v570
    %807 = vmatpush1.msra.mxu0 %v569
    %808 = vmatprep.subr.mxu0 %v566
    %809 = vmatpush1.msra.mxu0 %v565
    %810 = vmatprep.subr.mxu0 %v562
    %811 = vmatpush1.msra.mxu0 %v561
    %812 = vmatprep.subr.mxu0 %v686
    %813 = vmatpush2.msra.mxu0 %v685
    %814 = vmatprep.subr.mxu0 %v682
    %815 = vmatpush2.msra.mxu0 %v681
    %816 = vmatprep.subr.mxu0 %v678
    %817 = vmatpush2.msra.mxu0 %v677
    %818 = vmatprep.subr.mxu0 %v674
    %819 = vmatpush2.msra.mxu0 %v673
    %820 = vmatprep.subr.mxu0 %v670
    %821 = vmatpush2.msra.mxu0 %v669
    %822 = vmatprep.subr.mxu0 %v666
    %823 = vmatpush2.msra.mxu0 %v665
    %824 = vmatprep.subr.mxu0 %v662
    %825 = vmatpush2.msra.mxu0 %v661
    %826 = vmatprep.subr.mxu0 %v658
    %827 = vmatpush2.msra.mxu0 %v657
    %828 = vmatprep.subr.mxu0 %v654
    %829 = vmatpush2.msra.mxu0 %v653
    %830 = vmatprep.subr.mxu0 %v650
    %831 = vmatpush2.msra.mxu0 %v649
    %832 = vmatprep.subr.mxu0 %v646
    %833 = vmatpush2.msra.mxu0 %v645
    %834 = vmatprep.subr.mxu0 %v642
    %835 = vmatpush2.msra.mxu0 %v641
    %836 = vmatprep.subr.mxu0 %v638
    %837 = vmatpush2.msra.mxu0 %v637
    %838 = vmatprep.subr.mxu0 %v634
    %839 = vmatpush2.msra.mxu0 %v633
    %840 = vmatprep.subr.mxu0 %v630
    %841 = vmatpush2.msra.mxu0 %v629
    %842 = vmatprep.subr.mxu0 %v626
    %843 = vmatpush2.msra.mxu0 %v625
    %844 = vmatprep.mubr.f32.mxu0 0.0
    %845 = vmatmul.mubr.f32.gmra.mxu0 %v558
    %v846 = vpop.f32.mrf.mxu0
    %v847 = vadd.f32 %v700, %v846
    %v848 = vpop.f32.mrf.mxu0
    %v849 = vadd.f32 %v704, %v848
    %850 = vdwg.mxu0
    %851 = vmatprep.subr.mxu0 %v386
    %852 = vmatpush1.msra.mxu0 %v385
    %853 = vmatprep.subr.mxu0 %v382
    %854 = vmatpush1.msra.mxu0 %v381
    %855 = vmatprep.subr.mxu0 %v378
    %856 = vmatpush1.msra.mxu0 %v377
    %857 = vmatprep.subr.mxu0 %v374
    %858 = vmatpush1.msra.mxu0 %v373
    %859 = vmatprep.subr.mxu0 %v370
    %860 = vmatpush1.msra.mxu0 %v369
    %861 = vmatprep.subr.mxu0 %v366
    %862 = vmatpush1.msra.mxu0 %v365
    %863 = vmatprep.subr.mxu0 %v362
    %864 = vmatpush1.msra.mxu0 %v361
    %865 = vmatprep.subr.mxu0 %v358
    %866 = vmatpush1.msra.mxu0 %v357
    %867 = vmatprep.subr.mxu0 %v354
    %868 = vmatpush1.msra.mxu0 %v353
    %869 = vmatprep.subr.mxu0 %v350
    %870 = vmatpush1.msra.mxu0 %v349
    %871 = vmatprep.subr.mxu0 %v346
    %872 = vmatpush1.msra.mxu0 %v345
    %873 = vmatprep.subr.mxu0 %v342
    %874 = vmatpush1.msra.mxu0 %v341
    %875 = vmatprep.subr.mxu0 %v338
    %876 = vmatpush1.msra.mxu0 %v337
    %877 = vmatprep.subr.mxu0 %v334
    %878 = vmatpush1.msra.mxu0 %v333
    %879 = vmatprep.subr.mxu0 %v330
    %880 = vmatpush1.msra.mxu0 %v329
    %881 = vmatprep.subr.mxu0 %v326
    %882 = vmatpush1.msra.mxu0 %v325
    %883 = vmatprep.subr.mxu0 0.0
    %884 = vmatpush2.msra.mxu0 0.0
    %885 = vmatprep.subr.mxu0 0.0
    %886 = vmatpush2.msra.mxu0 0.0
    %887 = vmatprep.subr.mxu0 0.0
    %888 = vmatpush2.msra.mxu0 0.0
    %889 = vmatprep.subr.mxu0 0.0
    %890 = vmatpush2.msra.mxu0 0.0
    %891 = vmatprep.subr.mxu0 0.0
    %892 = vmatpush2.msra.mxu0 0.0
    %893 = vmatprep.subr.mxu0 0.0
    %894 = vmatpush2.msra.mxu0 0.0
    %895 = vmatprep.subr.mxu0 0.0
    %896 = vmatpush2.msra.mxu0 0.0
    %897 = vmatprep.subr.mxu0 0.0
    %898 = vmatpush2.msra.mxu0 0.0
    %899 = vmatprep.subr.mxu0 0.0
    %900 = vmatpush2.msra.mxu0 0.0
    %901 = vmatprep.subr.mxu0 0.0
    %902 = vmatpush2.msra.mxu0 0.0
    %903 = vmatprep.subr.mxu0 0.0
    %904 = vmatpush2.msra.mxu0 0.0
    %905 = vmatprep.subr.mxu0 0.0
    %906 = vmatpush2.msra.mxu0 0.0
    %907 = vmatprep.subr.mxu0 0.0
    %908 = vmatpush2.msra.mxu0 0.0
    %909 = vmatprep.subr.mxu0 0.0
    %910 = vmatpush2.msra.mxu0 0.0
    %911 = vmatprep.subr.mxu0 0.0
    %912 = vmatpush2.msra.mxu0 0.0
    %913 = vmatprep.subr.mxu0 0.0
    %914 = vmatpush2.msra.mxu0 0.0
    %915 = vmatprep.mubr.f32.mxu0 0.0
    %916 = vmatmul.mubr.f32.gmra.mxu0 %v558
    %v917 = vpop.f32.mrf.mxu0
    %v918 = vadd.f32 0.0, %v917
    %v919 = vpop.f32.mrf.mxu0
    %v920 = vadd.f32 0.0, %v919
    %921 = vdwg.mxu0
    %922 = vmatprep.subr.mxu0 %v388
    %923 = vmatpush1.msra.mxu0 %v387
    %924 = vmatprep.subr.mxu0 %v384
    %925 = vmatpush1.msra.mxu0 %v383
    %926 = vmatprep.subr.mxu0 %v380
    %927 = vmatpush1.msra.mxu0 %v379
    %928 = vmatprep.subr.mxu0 %v376
    %929 = vmatpush1.msra.mxu0 %v375
    %930 = vmatprep.subr.mxu0 %v372
    %931 = vmatpush1.msra.mxu0 %v371
    %932 = vmatprep.subr.mxu0 %v368
    %933 = vmatpush1.msra.mxu0 %v367
    %934 = vmatprep.subr.mxu0 %v364
    %935 = vmatpush1.msra.mxu0 %v363
    %936 = vmatprep.subr.mxu0 %v360
    %937 = vmatpush1.msra.mxu0 %v359
    %938 = vmatprep.subr.mxu0 %v356
    %939 = vmatpush1.msra.mxu0 %v355
    %940 = vmatprep.subr.mxu0 %v352
    %941 = vmatpush1.msra.mxu0 %v351
    %942 = vmatprep.subr.mxu0 %v348
    %943 = vmatpush1.msra.mxu0 %v347
    %944 = vmatprep.subr.mxu0 %v344
    %945 = vmatpush1.msra.mxu0 %v343
    %946 = vmatprep.subr.mxu0 %v340
    %947 = vmatpush1.msra.mxu0 %v339
    %948 = vmatprep.subr.mxu0 %v336
    %949 = vmatpush1.msra.mxu0 %v335
    %950 = vmatprep.subr.mxu0 %v332
    %951 = vmatpush1.msra.mxu0 %v331
    %952 = vmatprep.subr.mxu0 %v328
    %953 = vmatpush1.msra.mxu0 %v327
    %954 = vmatprep.subr.mxu0 0.0
    %955 = vmatpush2.msra.mxu0 0.0
    %956 = vmatprep.subr.mxu0 0.0
    %957 = vmatpush2.msra.mxu0 0.0
    %958 = vmatprep.subr.mxu0 0.0
    %959 = vmatpush2.msra.mxu0 0.0
    %960 = vmatprep.subr.mxu0 0.0
    %961 = vmatpush2.msra.mxu0 0.0
    %962 = vmatprep.subr.mxu0 0.0
    %963 = vmatpush2.msra.mxu0 0.0
    %964 = vmatprep.subr.mxu0 0.0
    %965 = vmatpush2.msra.mxu0 0.0
    %966 = vmatprep.subr.mxu0 0.0
    %967 = vmatpush2.msra.mxu0 0.0
    %968 = vmatprep.subr.mxu0 0.0
    %969 = vmatpush2.msra.mxu0 0.0
    %970 = vmatprep.subr.mxu0 0.0
    %971 = vmatpush2.msra.mxu0 0.0
    %972 = vmatprep.subr.mxu0 0.0
    %973 = vmatpush2.msra.mxu0 0.0
    %974 = vmatprep.subr.mxu0 0.0
    %975 = vmatpush2.msra.mxu0 0.0
    %976 = vmatprep.subr.mxu0 0.0
    %977 = vmatpush2.msra.mxu0 0.0
    %978 = vmatprep.subr.mxu0 0.0
    %979 = vmatpush2.msra.mxu0 0.0
    %980 = vmatprep.subr.mxu0 0.0
    %981 = vmatpush2.msra.mxu0 0.0
    %982 = vmatprep.subr.mxu0 0.0
    %983 = vmatpush2.msra.mxu0 0.0
    %984 = vmatprep.subr.mxu0 0.0
    %985 = vmatpush2.msra.mxu0 0.0
    %986 = vmatprep.mubr.f32.mxu0 0.0
    %987 = vmatmul.mubr.f32.gmra.mxu0 %v558
    %v988 = vpop.f32.mrf.mxu0
    %v989 = vadd.f32 0.0, %v988
    %v990 = vpop.f32.mrf.mxu0
    %v991 = vadd.f32 0.0, %v990
    %992 = vdwg.mxu0
    %v997 = vrot.slane %v918, 7
    %v998 = vrot.slane %v920, 7
    %v999 = vrot.slane %v989, 7
    %v1000 = vrot.slane %v991, 7
    %v1005 = vadd.f32 %v250, %v997
    %v1006 = vadd.f32 %v252, %v998
    %v1007 = vadd.f32 %v321, %v999
    %v1008 = vadd.f32 %v323, %v1000
    %v1009 = vxor.u32 %v1005, 2147483648
    %v1010 = vxor.u32 %v1006, 2147483648
    %v1011 = vxor.u32 %v1007, 2147483648
    %v1012 = vmul.f32 %v1009, 1.442695
    %v1013 = vpow.pop %v1012
    %v1014 = vmul.f32 %v1010, 1.442695
    %v1015 = vpow.pop %v1014
    %v1016 = vmul.f32 %v1011, 1.442695
    %v1017 = vpow.pop %v1016
    %v1018 = vadd.f32 %v1013, 1.0
    %v1019 = vadd.f32 %v1015, 1.0
    %v1020 = vadd.f32 %v1017, 1.0
    %v1021 = vrcp.pop %v1018
    %v1022 = vmul.f32 1.0, %v1021
    %v1023 = vrcp.pop %v1019
    %v1024 = vmul.f32 1.0, %v1023
    %v1025 = vrcp.pop %v1020
    %v1026 = vmul.f32 1.0, %v1025
    %v1027 = vtanh.pop %v1008
    %v1029 = vrot.slane %v556, 7
    %v1031 = vmul.f32 %v1024, %v1029
    %v1032 = vmul.f32 %v1022, %v1027
    %v1033 = vadd.f32 %v1031, %v1032
    %v1034 = vtanh.pop %v1033
    %v1035 = vmul.f32 %v1026, %v1034
    %v1036 = vxor.u32 %v776, 2147483648
    %v1037 = vxor.u32 %v778, 2147483648
    %v1038 = vxor.u32 %v847, 2147483648
    %v1039 = vmul.f32 %v1036, 1.442695
    %v1040 = vpow.pop %v1039
    %v1041 = vmul.f32 %v1037, 1.442695
    %v1042 = vpow.pop %v1041
    %v1043 = vmul.f32 %v1038, 1.442695
    %v1044 = vpow.pop %v1043
    %v1045 = vadd.f32 %v1040, 1.0
    %v1046 = vadd.f32 %v1042, 1.0
    %v1047 = vadd.f32 %v1044, 1.0
    %v1048 = vrcp.pop %v1045
    %v1049 = vmul.f32 1.0, %v1048
    %v1050 = vrcp.pop %v1046
    %v1051 = vmul.f32 1.0, %v1050
    %v1052 = vrcp.pop %v1047
    %v1053 = vmul.f32 1.0, %v1052
    %v1054 = vtanh.pop %v849
    %v1055 = vmul.f32 %v1051, 0.0
    %v1056 = vmul.f32 %v1049, %v1054
    %v1057 = vadd.f32 %v1055, %v1056
    %v1058 = vtanh.pop %v1057
    %v1059 = vmul.f32 %v1053, %v1058
    %v1061 = vrot.slane %v1059, 7
    %v1063 = vrot.slane %v1035, 1
    %v1064 = vrot.slane %v1061, 1
    %1067 = vmatprep.subr.mxu0 %v620
    %1068 = vmatpush1.msra.mxu0 %v619
    %1069 = vmatprep.subr.mxu0 %v616
    %1070 = vmatpush1.msra.mxu0 %v615
    %1071 = vmatprep.subr.mxu0 %v612
    %1072 = vmatpush1.msra.mxu0 %v611
    %1073 = vmatprep.subr.mxu0 %v608
    %1074 = vmatpush1.msra.mxu0 %v607
    %1075 = vmatprep.subr.mxu0 %v604
    %1076 = vmatpush1.msra.mxu0 %v603
    %1077 = vmatprep.subr.mxu0 %v600
    %1078 = vmatpush1.msra.mxu0 %v599
    %1079 = vmatprep.subr.mxu0 %v596
    %1080 = vmatpush1.msra.mxu0 %v595
    %1081 = vmatprep.subr.mxu0 %v592
    %1082 = vmatpush1.msra.mxu0 %v591
    %1083 = vmatprep.subr.mxu0 %v588
    %1084 = vmatpush1.msra.mxu0 %v587
    %1085 = vmatprep.subr.mxu0 %v584
    %1086 = vmatpush1.msra.mxu0 %v583
    %1087 = vmatprep.subr.mxu0 %v580
    %1088 = vmatpush1.msra.mxu0 %v579
    %1089 = vmatprep.subr.mxu0 %v576
    %1090 = vmatpush1.msra.mxu0 %v575
    %1091 = vmatprep.subr.mxu0 %v572
    %1092 = vmatpush1.msra.mxu0 %v571
    %1093 = vmatprep.subr.mxu0 %v568
    %1094 = vmatpush1.msra.mxu0 %v567
    %1095 = vmatprep.subr.mxu0 %v564
    %1096 = vmatpush1.msra.mxu0 %v563
    %1097 = vmatprep.subr.mxu0 %v560
    %1098 = vmatpush1.msra.mxu0 %v559
    %1099 = vmatprep.subr.mxu0 %v684
    %1100 = vmatpush2.msra.mxu0 %v683
    %1101 = vmatprep.subr.mxu0 %v680
    %1102 = vmatpush2.msra.mxu0 %v679
    %1103 = vmatprep.subr.mxu0 %v676
    %1104 = vmatpush2.msra.mxu0 %v675
    %1105 = vmatprep.subr.mxu0 %v672
    %1106 = vmatpush2.msra.mxu0 %v671
    %1107 = vmatprep.subr.mxu0 %v668
    %1108 = vmatpush2.msra.mxu0 %v667
    %1109 = vmatprep.subr.mxu0 %v664
    %1110 = vmatpush2.msra.mxu0 %v663
    %1111 = vmatprep.subr.mxu0 %v660
    %1112 = vmatpush2.msra.mxu0 %v659
    %1113 = vmatprep.subr.mxu0 %v656
    %1114 = vmatpush2.msra.mxu0 %v655
    %1115 = vmatprep.subr.mxu0 %v652
    %1116 = vmatpush2.msra.mxu0 %v651
    %1117 = vmatprep.subr.mxu0 %v648
    %1118 = vmatpush2.msra.mxu0 %v647
    %1119 = vmatprep.subr.mxu0 %v644
    %1120 = vmatpush2.msra.mxu0 %v643
    %1121 = vmatprep.subr.mxu0 %v640
    %1122 = vmatpush2.msra.mxu0 %v639
    %1123 = vmatprep.subr.mxu0 %v636
    %1124 = vmatpush2.msra.mxu0 %v635
    %1125 = vmatprep.subr.mxu0 %v632
    %1126 = vmatpush2.msra.mxu0 %v631
    %1127 = vmatprep.subr.mxu0 %v628
    %1128 = vmatpush2.msra.mxu0 %v627
    %1129 = vmatprep.subr.mxu0 %v624
    %1130 = vmatpush2.msra.mxu0 %v623
    %1131 = vmatprep.mubr.f32.mxu0 %v1064
    %1132 = vmatmul.mubr.f32.gmra.mxu0 %v1063
    %v1133 = vpop.f32.mrf.mxu0
    %v1134 = vadd.f32 %v692, %v1133
    %v1135 = vpop.f32.mrf.mxu0
    %v1136 = vadd.f32 %v696, %v1135
    %1137 = vdwg.mxu0
    %1138 = vmatprep.subr.mxu0 %v622
    %1139 = vmatpush1.msra.mxu0 %v621
    %1140 = vmatprep.subr.mxu0 %v618
    %1141 = vmatpush1.msra.mxu0 %v617
    %1142 = vmatprep.subr.mxu0 %v614
    %1143 = vmatpush1.msra.mxu0 %v613
    %1144 = vmatprep.subr.mxu0 %v610
    %1145 = vmatpush1.msra.mxu0 %v609
    %1146 = vmatprep.subr.mxu0 %v606
    %1147 = vmatpush1.msra.mxu0 %v605
    %1148 = vmatprep.subr.mxu0 %v602
    %1149 = vmatpush1.msra.mxu0 %v601
    %1150 = vmatprep.subr.mxu0 %v598
    %1151 = vmatpush1.msra.mxu0 %v597
    %1152 = vmatprep.subr.mxu0 %v594
    %1153 = vmatpush1.msra.mxu0 %v593
    %1154 = vmatprep.subr.mxu0 %v590
    %1155 = vmatpush1.msra.mxu0 %v589
    %1156 = vmatprep.subr.mxu0 %v586
    %1157 = vmatpush1.msra.mxu0 %v585
    %1158 = vmatprep.subr.mxu0 %v582
    %1159 = vmatpush1.msra.mxu0 %v581
    %1160 = vmatprep.subr.mxu0 %v578
    %1161 = vmatpush1.msra.mxu0 %v577
    %1162 = vmatprep.subr.mxu0 %v574
    %1163 = vmatpush1.msra.mxu0 %v573
    %1164 = vmatprep.subr.mxu0 %v570
    %1165 = vmatpush1.msra.mxu0 %v569
    %1166 = vmatprep.subr.mxu0 %v566
    %1167 = vmatpush1.msra.mxu0 %v565
    %1168 = vmatprep.subr.mxu0 %v562
    %1169 = vmatpush1.msra.mxu0 %v561
    %1170 = vmatprep.subr.mxu0 %v686
    %1171 = vmatpush2.msra.mxu0 %v685
    %1172 = vmatprep.subr.mxu0 %v682
    %1173 = vmatpush2.msra.mxu0 %v681
    %1174 = vmatprep.subr.mxu0 %v678
    %1175 = vmatpush2.msra.mxu0 %v677
    %1176 = vmatprep.subr.mxu0 %v674
    %1177 = vmatpush2.msra.mxu0 %v673
    %1178 = vmatprep.subr.mxu0 %v670
    %1179 = vmatpush2.msra.mxu0 %v669
    %1180 = vmatprep.subr.mxu0 %v666
    %1181 = vmatpush2.msra.mxu0 %v665
    %1182 = vmatprep.subr.mxu0 %v662
    %1183 = vmatpush2.msra.mxu0 %v661
    %1184 = vmatprep.subr.mxu0 %v658
    %1185 = vmatpush2.msra.mxu0 %v657
    %1186 = vmatprep.subr.mxu0 %v654
    %1187 = vmatpush2.msra.mxu0 %v653
    %1188 = vmatprep.subr.mxu0 %v650
    %1189 = vmatpush2.msra.mxu0 %v649
    %1190 = vmatprep.subr.mxu0 %v646
    %1191 = vmatpush2.msra.mxu0 %v645
    %1192 = vmatprep.subr.mxu0 %v642
    %1193 = vmatpush2.msra.mxu0 %v641
    %1194 = vmatprep.subr.mxu0 %v638
    %1195 = vmatpush2.msra.mxu0 %v637
    %1196 = vmatprep.subr.mxu0 %v634
    %1197 = vmatpush2.msra.mxu0 %v633
    %1198 = vmatprep.subr.mxu0 %v630
    %1199 = vmatpush2.msra.mxu0 %v629
    %1200 = vmatprep.subr.mxu0 %v626
    %1201 = vmatpush2.msra.mxu0 %v625
    %1202 = vmatprep.mubr.f32.mxu0 %v1064
    %1203 = vmatmul.mubr.f32.gmra.mxu0 %v1063
    %v1204 = vpop.f32.mrf.mxu0
    %v1205 = vadd.f32 %v700, %v1204
    %v1206 = vpop.f32.mrf.mxu0
    %v1207 = vadd.f32 %v704, %v1206
    %1208 = vdwg.mxu0
    %1209 = vmatprep.subr.mxu0 %v386
    %1210 = vmatpush1.msra.mxu0 %v385
    %1211 = vmatprep.subr.mxu0 %v382
    %1212 = vmatpush1.msra.mxu0 %v381
    %1213 = vmatprep.subr.mxu0 %v378
    %1214 = vmatpush1.msra.mxu0 %v377
    %1215 = vmatprep.subr.mxu0 %v374
    %1216 = vmatpush1.msra.mxu0 %v373
    %1217 = vmatprep.subr.mxu0 %v370
    %1218 = vmatpush1.msra.mxu0 %v369
    %1219 = vmatprep.subr.mxu0 %v366
    %1220 = vmatpush1.msra.mxu0 %v365
    %1221 = vmatprep.subr.mxu0 %v362
    %1222 = vmatpush1.msra.mxu0 %v361
    %1223 = vmatprep.subr.mxu0 %v358
    %1224 = vmatpush1.msra.mxu0 %v357
    %1225 = vmatprep.subr.mxu0 %v354
    %1226 = vmatpush1.msra.mxu0 %v353
    %1227 = vmatprep.subr.mxu0 %v350
    %1228 = vmatpush1.msra.mxu0 %v349
    %1229 = vmatprep.subr.mxu0 %v346
    %1230 = vmatpush1.msra.mxu0 %v345
    %1231 = vmatprep.subr.mxu0 %v342
    %1232 = vmatpush1.msra.mxu0 %v341
    %1233 = vmatprep.subr.mxu0 %v338
    %1234 = vmatpush1.msra.mxu0 %v337
    %1235 = vmatprep.subr.mxu0 %v334
    %1236 = vmatpush1.msra.mxu0 %v333
    %1237 = vmatprep.subr.mxu0 %v330
    %1238 = vmatpush1.msra.mxu0 %v329
    %1239 = vmatprep.subr.mxu0 %v326
    %1240 = vmatpush1.msra.mxu0 %v325
    %1241 = vmatprep.subr.mxu0 0.0
    %1242 = vmatpush2.msra.mxu0 0.0
    %1243 = vmatprep.subr.mxu0 0.0
    %1244 = vmatpush2.msra.mxu0 0.0
    %1245 = vmatprep.subr.mxu0 0.0
    %1246 = vmatpush2.msra.mxu0 0.0
    %1247 = vmatprep.subr.mxu0 0.0
    %1248 = vmatpush2.msra.mxu0 0.0
    %1249 = vmatprep.subr.mxu0 0.0
    %1250 = vmatpush2.msra.mxu0 0.0
    %1251 = vmatprep.subr.mxu0 0.0
    %1252 = vmatpush2.msra.mxu0 0.0
    %1253 = vmatprep.subr.mxu0 0.0
    %1254 = vmatpush2.msra.mxu0 0.0
    %1255 = vmatprep.subr.mxu0 0.0
    %1256 = vmatpush2.msra.mxu0 0.0
    %1257 = vmatprep.subr.mxu0 0.0
    %1258 = vmatpush2.msra.mxu0 0.0
    %1259 = vmatprep.subr.mxu0 0.0
    %1260 = vmatpush2.msra.mxu0 0.0
    %1261 = vmatprep.subr.mxu0 0.0
    %1262 = vmatpush2.msra.mxu0 0.0
    %1263 = vmatprep.subr.mxu0 0.0
    %1264 = vmatpush2.msra.mxu0 0.0
    %1265 = vmatprep.subr.mxu0 0.0
    %1266 = vmatpush2.msra.mxu0 0.0
    %1267 = vmatprep.subr.mxu0 0.0
    %1268 = vmatpush2.msra.mxu0 0.0
    %1269 = vmatprep.subr.mxu0 0.0
    %1270 = vmatpush2.msra.mxu0 0.0
    %1271 = vmatprep.subr.mxu0 0.0
    %1272 = vmatpush2.msra.mxu0 0.0
    %1273 = vmatprep.mubr.f32.mxu0 0.0
    %1274 = vmatmul.mubr.f32.gmra.mxu0 %v1063
    %v1275 = vpop.f32.mrf.mxu0
    %v1276 = vadd.f32 0.0, %v1275
    %v1277 = vpop.f32.mrf.mxu0
    %v1278 = vadd.f32 0.0, %v1277
    %1279 = vdwg.mxu0
    %1280 = vmatprep.subr.mxu0 %v388
    %1281 = vmatpush1.msra.mxu0 %v387
    %1282 = vmatprep.subr.mxu0 %v384
    %1283 = vmatpush1.msra.mxu0 %v383
    %1284 = vmatprep.subr.mxu0 %v380
    %1285 = vmatpush1.msra.mxu0 %v379
    %1286 = vmatprep.subr.mxu0 %v376
    %1287 = vmatpush1.msra.mxu0 %v375
    %1288 = vmatprep.subr.mxu0 %v372
    %1289 = vmatpush1.msra.mxu0 %v371
    %1290 = vmatprep.subr.mxu0 %v368
    %1291 = vmatpush1.msra.mxu0 %v367
    %1292 = vmatprep.subr.mxu0 %v364
    %1293 = vmatpush1.msra.mxu0 %v363
    %1294 = vmatprep.subr.mxu0 %v360
    %1295 = vmatpush1.msra.mxu0 %v359
    %1296 = vmatprep.subr.mxu0 %v356
    %1297 = vmatpush1.msra.mxu0 %v355
    %1298 = vmatprep.subr.mxu0 %v352
    %1299 = vmatpush1.msra.mxu0 %v351
    %1300 = vmatprep.subr.mxu0 %v348
    %1301 = vmatpush1.msra.mxu0 %v347
    %1302 = vmatprep.subr.mxu0 %v344
    %1303 = vmatpush1.msra.mxu0 %v343
    %1304 = vmatprep.subr.mxu0 %v340
    %1305 = vmatpush1.msra.mxu0 %v339
    %1306 = vmatprep.subr.mxu0 %v336
    %1307 = vmatpush1.msra.mxu0 %v335
    %1308 = vmatprep.subr.mxu0 %v332
    %1309 = vmatpush1.msra.mxu0 %v331
    %1310 = vmatprep.subr.mxu0 %v328
    %1311 = vmatpush1.msra.mxu0 %v327
    %1312 = vmatprep.subr.mxu0 0.0
    %1313 = vmatpush2.msra.mxu0 0.0
    %1314 = vmatprep.subr.mxu0 0.0
    %1315 = vmatpush2.msra.mxu0 0.0
    %1316 = vmatprep.subr.mxu0 0.0
    %1317 = vmatpush2.msra.mxu0 0.0
    %1318 = vmatprep.subr.mxu0 0.0
    %1319 = vmatpush2.msra.mxu0 0.0
    %1320 = vmatprep.subr.mxu0 0.0
    %1321 = vmatpush2.msra.mxu0 0.0
    %1322 = vmatprep.subr.mxu0 0.0
    %1323 = vmatpush2.msra.mxu0 0.0
    %1324 = vmatprep.subr.mxu0 0.0
    %1325 = vmatpush2.msra.mxu0 0.0
    %1326 = vmatprep.subr.mxu0 0.0
    %1327 = vmatpush2.msra.mxu0 0.0
    %1328 = vmatprep.subr.mxu0 0.0
    %1329 = vmatpush2.msra.mxu0 0.0
    %1330 = vmatprep.subr.mxu0 0.0
    %1331 = vmatpush2.msra.mxu0 0.0
    %1332 = vmatprep.subr.mxu0 0.0
    %1333 = vmatpush2.msra.mxu0 0.0
    %1334 = vmatprep.subr.mxu0 0.0
    %1335 = vmatpush2.msra.mxu0 0.0
    %1336 = vmatprep.subr.mxu0 0.0
    %1337 = vmatpush2.msra.mxu0 0.0
    %1338 = vmatprep.subr.mxu0 0.0
    %1339 = vmatpush2.msra.mxu0 0.0
    %1340 = vmatprep.subr.mxu0 0.0
    %1341 = vmatpush2.msra.mxu0 0.0
    %1342 = vmatprep.subr.mxu0 0.0
    %1343 = vmatpush2.msra.mxu0 0.0
    %1344 = vmatprep.mubr.f32.mxu0 0.0
    %1345 = vmatmul.mubr.f32.gmra.mxu0 %v1063
    %v1346 = vpop.f32.mrf.mxu0
    %v1347 = vadd.f32 0.0, %v1346
    %v1348 = vpop.f32.mrf.mxu0
    %v1349 = vadd.f32 0.0, %v1348
    %1350 = vdwg.mxu0
    %v1355 = vrot.slane %v1276, 6
    %v1356 = vrot.slane %v1278, 6
    %v1357 = vrot.slane %v1347, 6
    %v1358 = vrot.slane %v1349, 6
    %v1363 = vadd.f32 %v250, %v1355
    %v1364 = vadd.f32 %v252, %v1356
    %v1365 = vadd.f32 %v321, %v1357
    %v1366 = vadd.f32 %v323, %v1358
    %v1367 = vxor.u32 %v1363, 2147483648
    %v1368 = vxor.u32 %v1364, 2147483648
    %v1369 = vxor.u32 %v1365, 2147483648
    %v1370 = vmul.f32 %v1367, 1.442695
    %v1371 = vpow.pop %v1370
    %v1372 = vmul.f32 %v1368, 1.442695
    %v1373 = vpow.pop %v1372
    %v1374 = vmul.f32 %v1369, 1.442695
    %v1375 = vpow.pop %v1374
    %v1376 = vadd.f32 %v1371, 1.0
    %v1377 = vadd.f32 %v1373, 1.0
    %v1378 = vadd.f32 %v1375, 1.0
    %v1379 = vrcp.pop %v1376
    %v1380 = vmul.f32 1.0, %v1379
    %v1381 = vrcp.pop %v1377
    %v1382 = vmul.f32 1.0, %v1381
    %v1383 = vrcp.pop %v1378
    %v1384 = vmul.f32 1.0, %v1383
    %v1385 = vtanh.pop %v1366
    %v1387 = vrot.slane %v1033, 7
    %v1389 = vmul.f32 %v1382, %v1387
    %v1390 = vmul.f32 %v1380, %v1385
    %v1391 = vadd.f32 %v1389, %v1390
    %v1392 = vtanh.pop %v1391
    %v1393 = vmul.f32 %v1384, %v1392
    %v1394 = vxor.u32 %v1134, 2147483648
    %v1395 = vxor.u32 %v1136, 2147483648
    %v1396 = vxor.u32 %v1205, 2147483648
    %v1397 = vmul.f32 %v1394, 1.442695
    %v1398 = vpow.pop %v1397
    %v1399 = vmul.f32 %v1395, 1.442695
    %v1400 = vpow.pop %v1399
    %v1401 = vmul.f32 %v1396, 1.442695
    %v1402 = vpow.pop %v1401
    %v1403 = vadd.f32 %v1398, 1.0
    %v1404 = vadd.f32 %v1400, 1.0
    %v1405 = vadd.f32 %v1402, 1.0
    %v1406 = vrcp.pop %v1403
    %v1407 = vmul.f32 1.0, %v1406
    %v1408 = vrcp.pop %v1404
    %v1409 = vmul.f32 1.0, %v1408
    %v1410 = vrcp.pop %v1405
    %v1411 = vmul.f32 1.0, %v1410
    %v1412 = vtanh.pop %v1207
    %v1413 = vmul.f32 %v1409, %v1057
    %v1414 = vmul.f32 %v1407, %v1412
    %v1415 = vadd.f32 %v1413, %v1414
    %v1416 = vtanh.pop %v1415
    %v1417 = vmul.f32 %v1411, %v1416
    %v1419 = vrot.slane %v1417, 6
    %v1421 = vrot.slane %v1393, 2
    %v1422 = vrot.slane %v1419, 2
    %1425 = vmatprep.subr.mxu0 %v620
    %1426 = vmatpush1.msra.mxu0 %v619
    %1427 = vmatprep.subr.mxu0 %v616
    %1428 = vmatpush1.msra.mxu0 %v615
    %1429 = vmatprep.subr.mxu0 %v612
    %1430 = vmatpush1.msra.mxu0 %v611
    %1431 = vmatprep.subr.mxu0 %v608
    %1432 = vmatpush1.msra.mxu0 %v607
    %1433 = vmatprep.subr.mxu0 %v604
    %1434 = vmatpush1.msra.mxu0 %v603
    %1435 = vmatprep.subr.mxu0 %v600
    %1436 = vmatpush1.msra.mxu0 %v599
    %1437 = vmatprep.subr.mxu0 %v596
    %1438 = vmatpush1.msra.mxu0 %v595
    %1439 = vmatprep.subr.mxu0 %v592
    %1440 = vmatpush1.msra.mxu0 %v591
    %1441 = vmatprep.subr.mxu0 %v588
    %1442 = vmatpush1.msra.mxu0 %v587
    %1443 = vmatprep.subr.mxu0 %v584
    %1444 = vmatpush1.msra.mxu0 %v583
    %1445 = vmatprep.subr.mxu0 %v580
    %1446 = vmatpush1.msra.mxu0 %v579
    %1447 = vmatprep.subr.mxu0 %v576
    %1448 = vmatpush1.msra.mxu0 %v575
    %1449 = vmatprep.subr.mxu0 %v572
    %1450 = vmatpush1.msra.mxu0 %v571
    %1451 = vmatprep.subr.mxu0 %v568
    %1452 = vmatpush1.msra.mxu0 %v567
    %1453 = vmatprep.subr.mxu0 %v564
    %1454 = vmatpush1.msra.mxu0 %v563
    %1455 = vmatprep.subr.mxu0 %v560
    %1456 = vmatpush1.msra.mxu0 %v559
    %1457 = vmatprep.subr.mxu0 %v684
    %1458 = vmatpush2.msra.mxu0 %v683
    %1459 = vmatprep.subr.mxu0 %v680
    %1460 = vmatpush2.msra.mxu0 %v679
    %1461 = vmatprep.subr.mxu0 %v676
    %1462 = vmatpush2.msra.mxu0 %v675
    %1463 = vmatprep.subr.mxu0 %v672
    %1464 = vmatpush2.msra.mxu0 %v671
    %1465 = vmatprep.subr.mxu0 %v668
    %1466 = vmatpush2.msra.mxu0 %v667
    %1467 = vmatprep.subr.mxu0 %v664
    %1468 = vmatpush2.msra.mxu0 %v663
    %1469 = vmatprep.subr.mxu0 %v660
    %1470 = vmatpush2.msra.mxu0 %v659
    %1471 = vmatprep.subr.mxu0 %v656
    %1472 = vmatpush2.msra.mxu0 %v655
    %1473 = vmatprep.subr.mxu0 %v652
    %1474 = vmatpush2.msra.mxu0 %v651
    %1475 = vmatprep.subr.mxu0 %v648
    %1476 = vmatpush2.msra.mxu0 %v647
    %1477 = vmatprep.subr.mxu0 %v644
    %1478 = vmatpush2.msra.mxu0 %v643
    %1479 = vmatprep.subr.mxu0 %v640
    %1480 = vmatpush2.msra.mxu0 %v639
    %1481 = vmatprep.subr.mxu0 %v636
    %1482 = vmatpush2.msra.mxu0 %v635
    %1483 = vmatprep.subr.mxu0 %v632
    %1484 = vmatpush2.msra.mxu0 %v631
    %1485 = vmatprep.subr.mxu0 %v628
    %1486 = vmatpush2.msra.mxu0 %v627
    %1487 = vmatprep.subr.mxu0 %v624
    %1488 = vmatpush2.msra.mxu0 %v623
    %1489 = vmatprep.mubr.f32.mxu0 %v1422
    %1490 = vmatmul.mubr.f32.gmra.mxu0 %v1421
    %v1491 = vpop.f32.mrf.mxu0
    %v1492 = vadd.f32 %v692, %v1491
    %v1493 = vpop.f32.mrf.mxu0
    %v1494 = vadd.f32 %v696, %v1493
    %1495 = vdwg.mxu0
    %1496 = vmatprep.subr.mxu0 %v622
    %1497 = vmatpush1.msra.mxu0 %v621
    %1498 = vmatprep.subr.mxu0 %v618
    %1499 = vmatpush1.msra.mxu0 %v617
    %1500 = vmatprep.subr.mxu0 %v614
    %1501 = vmatpush1.msra.mxu0 %v613
    %1502 = vmatprep.subr.mxu0 %v610
    %1503 = vmatpush1.msra.mxu0 %v609
    %1504 = vmatprep.subr.mxu0 %v606
    %1505 = vmatpush1.msra.mxu0 %v605
    %1506 = vmatprep.subr.mxu0 %v602
    %1507 = vmatpush1.msra.mxu0 %v601
    %1508 = vmatprep.subr.mxu0 %v598
    %1509 = vmatpush1.msra.mxu0 %v597
    %1510 = vmatprep.subr.mxu0 %v594
    %1511 = vmatpush1.msra.mxu0 %v593
    %1512 = vmatprep.subr.mxu0 %v590
    %1513 = vmatpush1.msra.mxu0 %v589
    %1514 = vmatprep.subr.mxu0 %v586
    %1515 = vmatpush1.msra.mxu0 %v585
    %1516 = vmatprep.subr.mxu0 %v582
    %1517 = vmatpush1.msra.mxu0 %v581
    %1518 = vmatprep.subr.mxu0 %v578
    %1519 = vmatpush1.msra.mxu0 %v577
    %1520 = vmatprep.subr.mxu0 %v574
    %1521 = vmatpush1.msra.mxu0 %v573
    %1522 = vmatprep.subr.mxu0 %v570
    %1523 = vmatpush1.msra.mxu0 %v569
    %1524 = vmatprep.subr.mxu0 %v566
    %1525 = vmatpush1.msra.mxu0 %v565
    %1526 = vmatprep.subr.mxu0 %v562
    %1527 = vmatpush1.msra.mxu0 %v561
    %1528 = vmatprep.subr.mxu0 %v686
    %1529 = vmatpush2.msra.mxu0 %v685
    %1530 = vmatprep.subr.mxu0 %v682
    %1531 = vmatpush2.msra.mxu0 %v681
    %1532 = vmatprep.subr.mxu0 %v678
    %1533 = vmatpush2.msra.mxu0 %v677
    %1534 = vmatprep.subr.mxu0 %v674
    %1535 = vmatpush2.msra.mxu0 %v673
    %1536 = vmatprep.subr.mxu0 %v670
    %1537 = vmatpush2.msra.mxu0 %v669
    %1538 = vmatprep.subr.mxu0 %v666
    %1539 = vmatpush2.msra.mxu0 %v665
    %1540 = vmatprep.subr.mxu0 %v662
    %1541 = vmatpush2.msra.mxu0 %v661
    %1542 = vmatprep.subr.mxu0 %v658
    %1543 = vmatpush2.msra.mxu0 %v657
    %1544 = vmatprep.subr.mxu0 %v654
    %1545 = vmatpush2.msra.mxu0 %v653
    %1546 = vmatprep.subr.mxu0 %v650
    %1547 = vmatpush2.msra.mxu0 %v649
    %1548 = vmatprep.subr.mxu0 %v646
    %1549 = vmatpush2.msra.mxu0 %v645
    %1550 = vmatprep.subr.mxu0 %v642
    %1551 = vmatpush2.msra.mxu0 %v641
    %1552 = vmatprep.subr.mxu0 %v638
    %1553 = vmatpush2.msra.mxu0 %v637
    %1554 = vmatprep.subr.mxu0 %v634
    %1555 = vmatpush2.msra.mxu0 %v633
    %1556 = vmatprep.subr.mxu0 %v630
    %1557 = vmatpush2.msra.mxu0 %v629
    %1558 = vmatprep.subr.mxu0 %v626
    %1559 = vmatpush2.msra.mxu0 %v625
    %1560 = vmatprep.mubr.f32.mxu0 %v1422
    %1561 = vmatmul.mubr.f32.gmra.mxu0 %v1421
    %v1562 = vpop.f32.mrf.mxu0
    %v1563 = vadd.f32 %v700, %v1562
    %v1564 = vpop.f32.mrf.mxu0
    %v1565 = vadd.f32 %v704, %v1564
    %1566 = vdwg.mxu0
    %1567 = vmatprep.subr.mxu0 %v386
    %1568 = vmatpush1.msra.mxu0 %v385
    %1569 = vmatprep.subr.mxu0 %v382
    %1570 = vmatpush1.msra.mxu0 %v381
    %1571 = vmatprep.subr.mxu0 %v378
    %1572 = vmatpush1.msra.mxu0 %v377
    %1573 = vmatprep.subr.mxu0 %v374
    %1574 = vmatpush1.msra.mxu0 %v373
    %1575 = vmatprep.subr.mxu0 %v370
    %1576 = vmatpush1.msra.mxu0 %v369
    %1577 = vmatprep.subr.mxu0 %v366
    %1578 = vmatpush1.msra.mxu0 %v365
    %1579 = vmatprep.subr.mxu0 %v362
    %1580 = vmatpush1.msra.mxu0 %v361
    %1581 = vmatprep.subr.mxu0 %v358
    %1582 = vmatpush1.msra.mxu0 %v357
    %1583 = vmatprep.subr.mxu0 %v354
    %1584 = vmatpush1.msra.mxu0 %v353
    %1585 = vmatprep.subr.mxu0 %v350
    %1586 = vmatpush1.msra.mxu0 %v349
    %1587 = vmatprep.subr.mxu0 %v346
    %1588 = vmatpush1.msra.mxu0 %v345
    %1589 = vmatprep.subr.mxu0 %v342
    %1590 = vmatpush1.msra.mxu0 %v341
    %1591 = vmatprep.subr.mxu0 %v338
    %1592 = vmatpush1.msra.mxu0 %v337
    %1593 = vmatprep.subr.mxu0 %v334
    %1594 = vmatpush1.msra.mxu0 %v333
    %1595 = vmatprep.subr.mxu0 %v330
    %1596 = vmatpush1.msra.mxu0 %v329
    %1597 = vmatprep.subr.mxu0 %v326
    %1598 = vmatpush1.msra.mxu0 %v325
    %1599 = vmatprep.subr.mxu0 0.0
    %1600 = vmatpush2.msra.mxu0 0.0
    %1601 = vmatprep.subr.mxu0 0.0
    %1602 = vmatpush2.msra.mxu0 0.0
    %1603 = vmatprep.subr.mxu0 0.0
    %1604 = vmatpush2.msra.mxu0 0.0
    %1605 = vmatprep.subr.mxu0 0.0
    %1606 = vmatpush2.msra.mxu0 0.0
    %1607 = vmatprep.subr.mxu0 0.0
    %1608 = vmatpush2.msra.mxu0 0.0
    %1609 = vmatprep.subr.mxu0 0.0
    %1610 = vmatpush2.msra.mxu0 0.0
    %1611 = vmatprep.subr.mxu0 0.0
    %1612 = vmatpush2.msra.mxu0 0.0
    %1613 = vmatprep.subr.mxu0 0.0
    %1614 = vmatpush2.msra.mxu0 0.0
    %1615 = vmatprep.subr.mxu0 0.0
    %1616 = vmatpush2.msra.mxu0 0.0
    %1617 = vmatprep.subr.mxu0 0.0
    %1618 = vmatpush2.msra.mxu0 0.0
    %1619 = vmatprep.subr.mxu0 0.0
    %1620 = vmatpush2.msra.mxu0 0.0
    %1621 = vmatprep.subr.mxu0 0.0
    %1622 = vmatpush2.msra.mxu0 0.0
    %1623 = vmatprep.subr.mxu0 0.0
    %1624 = vmatpush2.msra.mxu0 0.0
    %1625 = vmatprep.subr.mxu0 0.0
    %1626 = vmatpush2.msra.mxu0 0.0
    %1627 = vmatprep.subr.mxu0 0.0
    %1628 = vmatpush2.msra.mxu0 0.0
    %1629 = vmatprep.subr.mxu0 0.0
    %1630 = vmatpush2.msra.mxu0 0.0
    %1631 = vmatprep.mubr.f32.mxu0 0.0
    %1632 = vmatmul.mubr.f32.gmra.mxu0 %v1421
    %v1633 = vpop.f32.mrf.mxu0
    %v1634 = vadd.f32 0.0, %v1633
    %v1635 = vpop.f32.mrf.mxu0
    %v1636 = vadd.f32 0.0, %v1635
    %1637 = vdwg.mxu0
    %1638 = vmatprep.subr.mxu0 %v388
    %1639 = vmatpush1.msra.mxu0 %v387
    %1640 = vmatprep.subr.mxu0 %v384
    %1641 = vmatpush1.msra.mxu0 %v383
    %1642 = vmatprep.subr.mxu0 %v380
    %1643 = vmatpush1.msra.mxu0 %v379
    %1644 = vmatprep.subr.mxu0 %v376
    %1645 = vmatpush1.msra.mxu0 %v375
    %1646 = vmatprep.subr.mxu0 %v372
    %1647 = vmatpush1.msra.mxu0 %v371
    %1648 = vmatprep.subr.mxu0 %v368
    %1649 = vmatpush1.msra.mxu0 %v367
    %1650 = vmatprep.subr.mxu0 %v364
    %1651 = vmatpush1.msra.mxu0 %v363
    %1652 = vmatprep.subr.mxu0 %v360
    %1653 = vmatpush1.msra.mxu0 %v359
    %1654 = vmatprep.subr.mxu0 %v356
    %1655 = vmatpush1.msra.mxu0 %v355
    %1656 = vmatprep.subr.mxu0 %v352
    %1657 = vmatpush1.msra.mxu0 %v351
    %1658 = vmatprep.subr.mxu0 %v348
    %1659 = vmatpush1.msra.mxu0 %v347
    %1660 = vmatprep.subr.mxu0 %v344
    %1661 = vmatpush1.msra.mxu0 %v343
    %1662 = vmatprep.subr.mxu0 %v340
    %1663 = vmatpush1.msra.mxu0 %v339
    %1664 = vmatprep.subr.mxu0 %v336
    %1665 = vmatpush1.msra.mxu0 %v335
    %1666 = vmatprep.subr.mxu0 %v332
    %1667 = vmatpush1.msra.mxu0 %v331
    %1668 = vmatprep.subr.mxu0 %v328
    %1669 = vmatpush1.msra.mxu0 %v327
    %1670 = vmatprep.subr.mxu0 0.0
    %1671 = vmatpush2.msra.mxu0 0.0
    %1672 = vmatprep.subr.mxu0 0.0
    %1673 = vmatpush2.msra.mxu0 0.0
    %1674 = vmatprep.subr.mxu0 0.0
    %1675 = vmatpush2.msra.mxu0 0.0
    %1676 = vmatprep.subr.mxu0 0.0
    %1677 = vmatpush2.msra.mxu0 0.0
    %1678 = vmatprep.subr.mxu0 0.0
    %1679 = vmatpush2.msra.mxu0 0.0
    %1680 = vmatprep.subr.mxu0 0.0
    %1681 = vmatpush2.msra.mxu0 0.0
    %1682 = vmatprep.subr.mxu0 0.0
    %1683 = vmatpush2.msra.mxu0 0.0
    %1684 = vmatprep.subr.mxu0 0.0
    %1685 = vmatpush2.msra.mxu0 0.0
    %1686 = vmatprep.subr.mxu0 0.0
    %1687 = vmatpush2.msra.mxu0 0.0
    %1688 = vmatprep.subr.mxu0 0.0
    %1689 = vmatpush2.msra.mxu0 0.0
    %1690 = vmatprep.subr.mxu0 0.0
    %1691 = vmatpush2.msra.mxu0 0.0
    %1692 = vmatprep.subr.mxu0 0.0
    %1693 = vmatpush2.msra.mxu0 0.0
    %1694 = vmatprep.subr.mxu0 0.0
    %1695 = vmatpush2.msra.mxu0 0.0
    %1696 = vmatprep.subr.mxu0 0.0
    %1697 = vmatpush2.msra.mxu0 0.0
    %1698 = vmatprep.subr.mxu0 0.0
    %1699 = vmatpush2.msra.mxu0 0.0
    %1700 = vmatprep.subr.mxu0 0.0
    %1701 = vmatpush2.msra.mxu0 0.0
    %1702 = vmatprep.mubr.f32.mxu0 0.0
    %1703 = vmatmul.mubr.f32.gmra.mxu0 %v1421
    %v1704 = vpop.f32.mrf.mxu0
    %v1705 = vadd.f32 0.0, %v1704
    %v1706 = vpop.f32.mrf.mxu0
    %v1707 = vadd.f32 0.0, %v1706
    %1708 = vdwg.mxu0
    %v1713 = vrot.slane %v1634, 5
    %v1714 = vrot.slane %v1636, 5
    %v1715 = vrot.slane %v1705, 5
    %v1716 = vrot.slane %v1707, 5
    %v1721 = vadd.f32 %v250, %v1713
    %v1722 = vadd.f32 %v252, %v1714
    %v1723 = vadd.f32 %v321, %v1715
    %v1724 = vadd.f32 %v323, %v1716
    %v1725 = vxor.u32 %v1721, 2147483648
    %v1726 = vxor.u32 %v1722, 2147483648
    %v1727 = vxor.u32 %v1723, 2147483648
    %v1728 = vmul.f32 %v1725, 1.442695
    %v1729 = vpow.pop %v1728
    %v1730 = vmul.f32 %v1726, 1.442695
    %v1731 = vpow.pop %v1730
    %v1732 = vmul.f32 %v1727, 1.442695
    %v1733 = vpow.pop %v1732
    %v1734 = vadd.f32 %v1729, 1.0
    %v1735 = vadd.f32 %v1731, 1.0
    %v1736 = vadd.f32 %v1733, 1.0
    %v1737 = vrcp.pop %v1734
    %v1738 = vmul.f32 1.0, %v1737
    %v1739 = vrcp.pop %v1735
    %v1740 = vmul.f32 1.0, %v1739
    %v1741 = vrcp.pop %v1736
    %v1742 = vmul.f32 1.0, %v1741
    %v1743 = vtanh.pop %v1724
    %v1745 = vrot.slane %v1391, 7
    %v1747 = vmul.f32 %v1740, %v1745
    %v1748 = vmul.f32 %v1738, %v1743
    %v1749 = vadd.f32 %v1747, %v1748
    %v1750 = vtanh.pop %v1749
    %v1751 = vmul.f32 %v1742, %v1750
    %v1752 = vxor.u32 %v1492, 2147483648
    %v1753 = vxor.u32 %v1494, 2147483648
    %v1754 = vxor.u32 %v1563, 2147483648
    %v1755 = vmul.f32 %v1752, 1.442695
    %v1756 = vpow.pop %v1755
    %v1757 = vmul.f32 %v1753, 1.442695
    %v1758 = vpow.pop %v1757
    %v1759 = vmul.f32 %v1754, 1.442695
    %v1760 = vpow.pop %v1759
    %v1761 = vadd.f32 %v1756, 1.0
    %v1762 = vadd.f32 %v1758, 1.0
    %v1763 = vadd.f32 %v1760, 1.0
    %v1764 = vrcp.pop %v1761
    %v1765 = vmul.f32 1.0, %v1764
    %v1766 = vrcp.pop %v1762
    %v1767 = vmul.f32 1.0, %v1766
    %v1768 = vrcp.pop %v1763
    %v1769 = vmul.f32 1.0, %v1768
    %v1770 = vtanh.pop %v1565
    %v1771 = vmul.f32 %v1767, %v1415
    %v1772 = vmul.f32 %v1765, %v1770
    %v1773 = vadd.f32 %v1771, %v1772
    %v1774 = vtanh.pop %v1773
    %v1775 = vmul.f32 %v1769, %v1774
    %v1777 = vrot.slane %v1775, 5
    %v1779 = vrot.slane %v1751, 3
    %v1780 = vrot.slane %v1777, 3
    %1783 = vmatprep.subr.mxu0 %v620
    %1784 = vmatpush1.msra.mxu0 %v619
    %1785 = vmatprep.subr.mxu0 %v616
    %1786 = vmatpush1.msra.mxu0 %v615
    %1787 = vmatprep.subr.mxu0 %v612
    %1788 = vmatpush1.msra.mxu0 %v611
    %1789 = vmatprep.subr.mxu0 %v608
    %1790 = vmatpush1.msra.mxu0 %v607
    %1791 = vmatprep.subr.mxu0 %v604
    %1792 = vmatpush1.msra.mxu0 %v603
    %1793 = vmatprep.subr.mxu0 %v600
    %1794 = vmatpush1.msra.mxu0 %v599
    %1795 = vmatprep.subr.mxu0 %v596
    %1796 = vmatpush1.msra.mxu0 %v595
    %1797 = vmatprep.subr.mxu0 %v592
    %1798 = vmatpush1.msra.mxu0 %v591
    %1799 = vmatprep.subr.mxu0 %v588
    %1800 = vmatpush1.msra.mxu0 %v587
    %1801 = vmatprep.subr.mxu0 %v584
    %1802 = vmatpush1.msra.mxu0 %v583
    %1803 = vmatprep.subr.mxu0 %v580
    %1804 = vmatpush1.msra.mxu0 %v579
    %1805 = vmatprep.subr.mxu0 %v576
    %1806 = vmatpush1.msra.mxu0 %v575
    %1807 = vmatprep.subr.mxu0 %v572
    %1808 = vmatpush1.msra.mxu0 %v571
    %1809 = vmatprep.subr.mxu0 %v568
    %1810 = vmatpush1.msra.mxu0 %v567
    %1811 = vmatprep.subr.mxu0 %v564
    %1812 = vmatpush1.msra.mxu0 %v563
    %1813 = vmatprep.subr.mxu0 %v560
    %1814 = vmatpush1.msra.mxu0 %v559
    %1815 = vmatprep.subr.mxu0 %v684
    %1816 = vmatpush2.msra.mxu0 %v683
    %1817 = vmatprep.subr.mxu0 %v680
    %1818 = vmatpush2.msra.mxu0 %v679
    %1819 = vmatprep.subr.mxu0 %v676
    %1820 = vmatpush2.msra.mxu0 %v675
    %1821 = vmatprep.subr.mxu0 %v672
    %1822 = vmatpush2.msra.mxu0 %v671
    %1823 = vmatprep.subr.mxu0 %v668
    %1824 = vmatpush2.msra.mxu0 %v667
    %1825 = vmatprep.subr.mxu0 %v664
    %1826 = vmatpush2.msra.mxu0 %v663
    %1827 = vmatprep.subr.mxu0 %v660
    %1828 = vmatpush2.msra.mxu0 %v659
    %1829 = vmatprep.subr.mxu0 %v656
    %1830 = vmatpush2.msra.mxu0 %v655
    %1831 = vmatprep.subr.mxu0 %v652
    %1832 = vmatpush2.msra.mxu0 %v651
    %1833 = vmatprep.subr.mxu0 %v648
    %1834 = vmatpush2.msra.mxu0 %v647
    %1835 = vmatprep.subr.mxu0 %v644
    %1836 = vmatpush2.msra.mxu0 %v643
    %1837 = vmatprep.subr.mxu0 %v640
    %1838 = vmatpush2.msra.mxu0 %v639
    %1839 = vmatprep.subr.mxu0 %v636
    %1840 = vmatpush2.msra.mxu0 %v635
    %1841 = vmatprep.subr.mxu0 %v632
    %1842 = vmatpush2.msra.mxu0 %v631
    %1843 = vmatprep.subr.mxu0 %v628
    %1844 = vmatpush2.msra.mxu0 %v627
    %1845 = vmatprep.subr.mxu0 %v624
    %1846 = vmatpush2.msra.mxu0 %v623
    %1847 = vmatprep.mubr.f32.mxu0 %v1780
    %1848 = vmatmul.mubr.f32.gmra.mxu0 %v1779
    %v1849 = vpop.f32.mrf.mxu0
    %v1850 = vadd.f32 %v692, %v1849
    %v1851 = vpop.f32.mrf.mxu0
    %v1852 = vadd.f32 %v696, %v1851
    %1853 = vdwg.mxu0
    %1854 = vmatprep.subr.mxu0 %v622
    %1855 = vmatpush1.msra.mxu0 %v621
    %1856 = vmatprep.subr.mxu0 %v618
    %1857 = vmatpush1.msra.mxu0 %v617
    %1858 = vmatprep.subr.mxu0 %v614
    %1859 = vmatpush1.msra.mxu0 %v613
    %1860 = vmatprep.subr.mxu0 %v610
    %1861 = vmatpush1.msra.mxu0 %v609
    %1862 = vmatprep.subr.mxu0 %v606
    %1863 = vmatpush1.msra.mxu0 %v605
    %1864 = vmatprep.subr.mxu0 %v602
    %1865 = vmatpush1.msra.mxu0 %v601
    %1866 = vmatprep.subr.mxu0 %v598
    %1867 = vmatpush1.msra.mxu0 %v597
    %1868 = vmatprep.subr.mxu0 %v594
    %1869 = vmatpush1.msra.mxu0 %v593
    %1870 = vmatprep.subr.mxu0 %v590
    %1871 = vmatpush1.msra.mxu0 %v589
    %1872 = vmatprep.subr.mxu0 %v586
    %1873 = vmatpush1.msra.mxu0 %v585
    %1874 = vmatprep.subr.mxu0 %v582
    %1875 = vmatpush1.msra.mxu0 %v581
    %1876 = vmatprep.subr.mxu0 %v578
    %1877 = vmatpush1.msra.mxu0 %v577
    %1878 = vmatprep.subr.mxu0 %v574
    %1879 = vmatpush1.msra.mxu0 %v573
    %1880 = vmatprep.subr.mxu0 %v570
    %1881 = vmatpush1.msra.mxu0 %v569
    %1882 = vmatprep.subr.mxu0 %v566
    %1883 = vmatpush1.msra.mxu0 %v565
    %1884 = vmatprep.subr.mxu0 %v562
    %1885 = vmatpush1.msra.mxu0 %v561
    %1886 = vmatprep.subr.mxu0 %v686
    %1887 = vmatpush2.msra.mxu0 %v685
    %1888 = vmatprep.subr.mxu0 %v682
    %1889 = vmatpush2.msra.mxu0 %v681
    %1890 = vmatprep.subr.mxu0 %v678
    %1891 = vmatpush2.msra.mxu0 %v677
    %1892 = vmatprep.subr.mxu0 %v674
    %1893 = vmatpush2.msra.mxu0 %v673
    %1894 = vmatprep.subr.mxu0 %v670
    %1895 = vmatpush2.msra.mxu0 %v669
    %1896 = vmatprep.subr.mxu0 %v666
    %1897 = vmatpush2.msra.mxu0 %v665
    %1898 = vmatprep.subr.mxu0 %v662
    %1899 = vmatpush2.msra.mxu0 %v661
    %1900 = vmatprep.subr.mxu0 %v658
    %1901 = vmatpush2.msra.mxu0 %v657
    %1902 = vmatprep.subr.mxu0 %v654
    %1903 = vmatpush2.msra.mxu0 %v653
    %1904 = vmatprep.subr.mxu0 %v650
    %1905 = vmatpush2.msra.mxu0 %v649
    %1906 = vmatprep.subr.mxu0 %v646
    %1907 = vmatpush2.msra.mxu0 %v645
    %1908 = vmatprep.subr.mxu0 %v642
    %1909 = vmatpush2.msra.mxu0 %v641
    %1910 = vmatprep.subr.mxu0 %v638
    %1911 = vmatpush2.msra.mxu0 %v637
    %1912 = vmatprep.subr.mxu0 %v634
    %1913 = vmatpush2.msra.mxu0 %v633
    %1914 = vmatprep.subr.mxu0 %v630
    %1915 = vmatpush2.msra.mxu0 %v629
    %1916 = vmatprep.subr.mxu0 %v626
    %1917 = vmatpush2.msra.mxu0 %v625
    %1918 = vmatprep.mubr.f32.mxu0 %v1780
    %1919 = vmatmul.mubr.f32.gmra.mxu0 %v1779
    %v1920 = vpop.f32.mrf.mxu0
    %v1921 = vadd.f32 %v700, %v1920
    %v1922 = vpop.f32.mrf.mxu0
    %v1923 = vadd.f32 %v704, %v1922
    %1924 = vdwg.mxu0
    %1925 = vmatprep.subr.mxu0 %v386
    %1926 = vmatpush1.msra.mxu0 %v385
    %1927 = vmatprep.subr.mxu0 %v382
    %1928 = vmatpush1.msra.mxu0 %v381
    %1929 = vmatprep.subr.mxu0 %v378
    %1930 = vmatpush1.msra.mxu0 %v377
    %1931 = vmatprep.subr.mxu0 %v374
    %1932 = vmatpush1.msra.mxu0 %v373
    %1933 = vmatprep.subr.mxu0 %v370
    %1934 = vmatpush1.msra.mxu0 %v369
    %1935 = vmatprep.subr.mxu0 %v366
    %1936 = vmatpush1.msra.mxu0 %v365
    %1937 = vmatprep.subr.mxu0 %v362
    %1938 = vmatpush1.msra.mxu0 %v361
    %1939 = vmatprep.subr.mxu0 %v358
    %1940 = vmatpush1.msra.mxu0 %v357
    %1941 = vmatprep.subr.mxu0 %v354
    %1942 = vmatpush1.msra.mxu0 %v353
    %1943 = vmatprep.subr.mxu0 %v350
    %1944 = vmatpush1.msra.mxu0 %v349
    %1945 = vmatprep.subr.mxu0 %v346
    %1946 = vmatpush1.msra.mxu0 %v345
    %1947 = vmatprep.subr.mxu0 %v342
    %1948 = vmatpush1.msra.mxu0 %v341
    %1949 = vmatprep.subr.mxu0 %v338
    %1950 = vmatpush1.msra.mxu0 %v337
    %1951 = vmatprep.subr.mxu0 %v334
    %1952 = vmatpush1.msra.mxu0 %v333
    %1953 = vmatprep.subr.mxu0 %v330
    %1954 = vmatpush1.msra.mxu0 %v329
    %1955 = vmatprep.subr.mxu0 %v326
    %1956 = vmatpush1.msra.mxu0 %v325
    %1957 = vmatprep.subr.mxu0 0.0
    %1958 = vmatpush2.msra.mxu0 0.0
    %1959 = vmatprep.subr.mxu0 0.0
    %1960 = vmatpush2.msra.mxu0 0.0
    %1961 = vmatprep.subr.mxu0 0.0
    %1962 = vmatpush2.msra.mxu0 0.0
    %1963 = vmatprep.subr.mxu0 0.0
    %1964 = vmatpush2.msra.mxu0 0.0
    %1965 = vmatprep.subr.mxu0 0.0
    %1966 = vmatpush2.msra.mxu0 0.0
    %1967 = vmatprep.subr.mxu0 0.0
    %1968 = vmatpush2.msra.mxu0 0.0
    %1969 = vmatprep.subr.mxu0 0.0
    %1970 = vmatpush2.msra.mxu0 0.0
    %1971 = vmatprep.subr.mxu0 0.0
    %1972 = vmatpush2.msra.mxu0 0.0
    %1973 = vmatprep.subr.mxu0 0.0
    %1974 = vmatpush2.msra.mxu0 0.0
    %1975 = vmatprep.subr.mxu0 0.0
    %1976 = vmatpush2.msra.mxu0 0.0
    %1977 = vmatprep.subr.mxu0 0.0
    %1978 = vmatpush2.msra.mxu0 0.0
    %1979 = vmatprep.subr.mxu0 0.0
    %1980 = vmatpush2.msra.mxu0 0.0
    %1981 = vmatprep.subr.mxu0 0.0
    %1982 = vmatpush2.msra.mxu0 0.0
    %1983 = vmatprep.subr.mxu0 0.0
    %1984 = vmatpush2.msra.mxu0 0.0
    %1985 = vmatprep.subr.mxu0 0.0
    %1986 = vmatpush2.msra.mxu0 0.0
    %1987 = vmatprep.subr.mxu0 0.0
    %1988 = vmatpush2.msra.mxu0 0.0
    %1989 = vmatprep.mubr.f32.mxu0 0.0
    %1990 = vmatmul.mubr.f32.gmra.mxu0 %v1779
    %v1991 = vpop.f32.mrf.mxu0
    %v1992 = vadd.f32 0.0, %v1991
    %v1993 = vpop.f32.mrf.mxu0
    %v1994 = vadd.f32 0.0, %v1993
    %1995 = vdwg.mxu0
    %1996 = vmatprep.subr.mxu0 %v388
    %1997 = vmatpush1.msra.mxu0 %v387
    %1998 = vmatprep.subr.mxu0 %v384
    %1999 = vmatpush1.msra.mxu0 %v383
    %2000 = vmatprep.subr.mxu0 %v380
    %2001 = vmatpush1.msra.mxu0 %v379
    %2002 = vmatprep.subr.mxu0 %v376
    %2003 = vmatpush1.msra.mxu0 %v375
    %2004 = vmatprep.subr.mxu0 %v372
    %2005 = vmatpush1.msra.mxu0 %v371
    %2006 = vmatprep.subr.mxu0 %v368
    %2007 = vmatpush1.msra.mxu0 %v367
    %2008 = vmatprep.subr.mxu0 %v364
    %2009 = vmatpush1.msra.mxu0 %v363
    %2010 = vmatprep.subr.mxu0 %v360
    %2011 = vmatpush1.msra.mxu0 %v359
    %2012 = vmatprep.subr.mxu0 %v356
    %2013 = vmatpush1.msra.mxu0 %v355
    %2014 = vmatprep.subr.mxu0 %v352
    %2015 = vmatpush1.msra.mxu0 %v351
    %2016 = vmatprep.subr.mxu0 %v348
    %2017 = vmatpush1.msra.mxu0 %v347
    %2018 = vmatprep.subr.mxu0 %v344
    %2019 = vmatpush1.msra.mxu0 %v343
    %2020 = vmatprep.subr.mxu0 %v340
    %2021 = vmatpush1.msra.mxu0 %v339
    %2022 = vmatprep.subr.mxu0 %v336
    %2023 = vmatpush1.msra.mxu0 %v335
    %2024 = vmatprep.subr.mxu0 %v332
    %2025 = vmatpush1.msra.mxu0 %v331
    %2026 = vmatprep.subr.mxu0 %v328
    %2027 = vmatpush1.msra.mxu0 %v327
    %2028 = vmatprep.subr.mxu0 0.0
    %2029 = vmatpush2.msra.mxu0 0.0
    %2030 = vmatprep.subr.mxu0 0.0
    %2031 = vmatpush2.msra.mxu0 0.0
    %2032 = vmatprep.subr.mxu0 0.0
    %2033 = vmatpush2.msra.mxu0 0.0
    %2034 = vmatprep.subr.mxu0 0.0
    %2035 = vmatpush2.msra.mxu0 0.0
    %2036 = vmatprep.subr.mxu0 0.0
    %2037 = vmatpush2.msra.mxu0 0.0
    %2038 = vmatprep.subr.mxu0 0.0
    %2039 = vmatpush2.msra.mxu0 0.0
    %2040 = vmatprep.subr.mxu0 0.0
    %2041 = vmatpush2.msra.mxu0 0.0
    %2042 = vmatprep.subr.mxu0 0.0
    %2043 = vmatpush2.msra.mxu0 0.0
    %2044 = vmatprep.subr.mxu0 0.0
    %2045 = vmatpush2.msra.mxu0 0.0
    %2046 = vmatprep.subr.mxu0 0.0
    %2047 = vmatpush2.msra.mxu0 0.0
    %2048 = vmatprep.subr.mxu0 0.0
    %2049 = vmatpush2.msra.mxu0 0.0
    %2050 = vmatprep.subr.mxu0 0.0
    %2051 = vmatpush2.msra.mxu0 0.0
    %2052 = vmatprep.subr.mxu0 0.0
    %2053 = vmatpush2.msra.mxu0 0.0
    %2054 = vmatprep.subr.mxu0 0.0
    %2055 = vmatpush2.msra.mxu0 0.0
    %2056 = vmatprep.subr.mxu0 0.0
    %2057 = vmatpush2.msra.mxu0 0.0
    %2058 = vmatprep.subr.mxu0 0.0
    %2059 = vmatpush2.msra.mxu0 0.0
    %2060 = vmatprep.mubr.f32.mxu0 0.0
    %2061 = vmatmul.mubr.f32.gmra.mxu0 %v1779
    %v2062 = vpop.f32.mrf.mxu0
    %v2063 = vadd.f32 0.0, %v2062
    %v2064 = vpop.f32.mrf.mxu0
    %v2065 = vadd.f32 0.0, %v2064
    %2066 = vdwg.mxu0
    %v2071 = vrot.slane %v1992, 4
    %v2072 = vrot.slane %v1994, 4
    %v2073 = vrot.slane %v2063, 4
    %v2074 = vrot.slane %v2065, 4
    %v2079 = vadd.f32 %v250, %v2071
    %v2080 = vadd.f32 %v252, %v2072
    %v2081 = vadd.f32 %v321, %v2073
    %v2082 = vadd.f32 %v323, %v2074
    %v2083 = vxor.u32 %v2079, 2147483648
    %v2084 = vxor.u32 %v2080, 2147483648
    %v2085 = vxor.u32 %v2081, 2147483648
    %v2086 = vmul.f32 %v2083, 1.442695
    %v2087 = vpow.pop %v2086
    %v2088 = vmul.f32 %v2084, 1.442695
    %v2089 = vpow.pop %v2088
    %v2090 = vmul.f32 %v2085, 1.442695
    %v2091 = vpow.pop %v2090
    %v2092 = vadd.f32 %v2087, 1.0
    %v2093 = vadd.f32 %v2089, 1.0
    %v2094 = vadd.f32 %v2091, 1.0
    %v2095 = vrcp.pop %v2092
    %v2096 = vmul.f32 1.0, %v2095
    %v2097 = vrcp.pop %v2093
    %v2098 = vmul.f32 1.0, %v2097
    %v2099 = vrcp.pop %v2094
    %v2100 = vmul.f32 1.0, %v2099
    %v2101 = vtanh.pop %v2082
    %v2103 = vrot.slane %v1749, 7
    %v2105 = vmul.f32 %v2098, %v2103
    %v2106 = vmul.f32 %v2096, %v2101
    %v2107 = vadd.f32 %v2105, %v2106
    %v2108 = vtanh.pop %v2107
    %v2109 = vmul.f32 %v2100, %v2108
    %v2110 = vxor.u32 %v1850, 2147483648
    %v2111 = vxor.u32 %v1852, 2147483648
    %v2112 = vxor.u32 %v1921, 2147483648
    %v2113 = vmul.f32 %v2110, 1.442695
    %v2114 = vpow.pop %v2113
    %v2115 = vmul.f32 %v2111, 1.442695
    %v2116 = vpow.pop %v2115
    %v2117 = vmul.f32 %v2112, 1.442695
    %v2118 = vpow.pop %v2117
    %v2119 = vadd.f32 %v2114, 1.0
    %v2120 = vadd.f32 %v2116, 1.0
    %v2121 = vadd.f32 %v2118, 1.0
    %v2122 = vrcp.pop %v2119
    %v2123 = vmul.f32 1.0, %v2122
    %v2124 = vrcp.pop %v2120
    %v2125 = vmul.f32 1.0, %v2124
    %v2126 = vrcp.pop %v2121
    %v2127 = vmul.f32 1.0, %v2126
    %v2128 = vtanh.pop %v1923
    %v2129 = vmul.f32 %v2125, %v1773
    %v2130 = vmul.f32 %v2123, %v2128
    %v2131 = vadd.f32 %v2129, %v2130
    %v2132 = vtanh.pop %v2131
    %v2133 = vmul.f32 %v2127, %v2132
    %v2135 = vrot.slane %v2133, 4
    %v2137 = vrot.slane %v2109, 4
    %v2138 = vrot.slane %v2135, 4
    %2141 = vmatprep.subr.mxu0 %v620
    %2142 = vmatpush1.msra.mxu0 %v619
    %2143 = vmatprep.subr.mxu0 %v616
    %2144 = vmatpush1.msra.mxu0 %v615
    %2145 = vmatprep.subr.mxu0 %v612
    %2146 = vmatpush1.msra.mxu0 %v611
    %2147 = vmatprep.subr.mxu0 %v608
    %2148 = vmatpush1.msra.mxu0 %v607
    %2149 = vmatprep.subr.mxu0 %v604
    %2150 = vmatpush1.msra.mxu0 %v603
    %2151 = vmatprep.subr.mxu0 %v600
    %2152 = vmatpush1.msra.mxu0 %v599
    %2153 = vmatprep.subr.mxu0 %v596
    %2154 = vmatpush1.msra.mxu0 %v595
    %2155 = vmatprep.subr.mxu0 %v592
    %2156 = vmatpush1.msra.mxu0 %v591
    %2157 = vmatprep.subr.mxu0 %v588
    %2158 = vmatpush1.msra.mxu0 %v587
    %2159 = vmatprep.subr.mxu0 %v584
    %2160 = vmatpush1.msra.mxu0 %v583
    %2161 = vmatprep.subr.mxu0 %v580
    %2162 = vmatpush1.msra.mxu0 %v579
    %2163 = vmatprep.subr.mxu0 %v576
    %2164 = vmatpush1.msra.mxu0 %v575
    %2165 = vmatprep.subr.mxu0 %v572
    %2166 = vmatpush1.msra.mxu0 %v571
    %2167 = vmatprep.subr.mxu0 %v568
    %2168 = vmatpush1.msra.mxu0 %v567
    %2169 = vmatprep.subr.mxu0 %v564
    %2170 = vmatpush1.msra.mxu0 %v563
    %2171 = vmatprep.subr.mxu0 %v560
    %2172 = vmatpush1.msra.mxu0 %v559
    %2173 = vmatprep.subr.mxu0 %v684
    %2174 = vmatpush2.msra.mxu0 %v683
    %2175 = vmatprep.subr.mxu0 %v680
    %2176 = vmatpush2.msra.mxu0 %v679
    %2177 = vmatprep.subr.mxu0 %v676
    %2178 = vmatpush2.msra.mxu0 %v675
    %2179 = vmatprep.subr.mxu0 %v672
    %2180 = vmatpush2.msra.mxu0 %v671
    %2181 = vmatprep.subr.mxu0 %v668
    %2182 = vmatpush2.msra.mxu0 %v667
    %2183 = vmatprep.subr.mxu0 %v664
    %2184 = vmatpush2.msra.mxu0 %v663
    %2185 = vmatprep.subr.mxu0 %v660
    %2186 = vmatpush2.msra.mxu0 %v659
    %2187 = vmatprep.subr.mxu0 %v656
    %2188 = vmatpush2.msra.mxu0 %v655
    %2189 = vmatprep.subr.mxu0 %v652
    %2190 = vmatpush2.msra.mxu0 %v651
    %2191 = vmatprep.subr.mxu0 %v648
    %2192 = vmatpush2.msra.mxu0 %v647
    %2193 = vmatprep.subr.mxu0 %v644
    %2194 = vmatpush2.msra.mxu0 %v643
    %2195 = vmatprep.subr.mxu0 %v640
    %2196 = vmatpush2.msra.mxu0 %v639
    %2197 = vmatprep.subr.mxu0 %v636
    %2198 = vmatpush2.msra.mxu0 %v635
    %2199 = vmatprep.subr.mxu0 %v632
    %2200 = vmatpush2.msra.mxu0 %v631
    %2201 = vmatprep.subr.mxu0 %v628
    %2202 = vmatpush2.msra.mxu0 %v627
    %2203 = vmatprep.subr.mxu0 %v624
    %2204 = vmatpush2.msra.mxu0 %v623
    %2205 = vmatprep.mubr.f32.mxu0 %v2138
    %2206 = vmatmul.mubr.f32.gmra.mxu0 %v2137
    %v2207 = vpop.f32.mrf.mxu0
    %v2208 = vadd.f32 %v692, %v2207
    %v2209 = vpop.f32.mrf.mxu0
    %v2210 = vadd.f32 %v696, %v2209
    %2211 = vdwg.mxu0
    %2212 = vmatprep.subr.mxu0 %v622
    %2213 = vmatpush1.msra.mxu0 %v621
    %2214 = vmatprep.subr.mxu0 %v618
    %2215 = vmatpush1.msra.mxu0 %v617
    %2216 = vmatprep.subr.mxu0 %v614
    %2217 = vmatpush1.msra.mxu0 %v613
    %2218 = vmatprep.subr.mxu0 %v610
    %2219 = vmatpush1.msra.mxu0 %v609
    %2220 = vmatprep.subr.mxu0 %v606
    %2221 = vmatpush1.msra.mxu0 %v605
    %2222 = vmatprep.subr.mxu0 %v602
    %2223 = vmatpush1.msra.mxu0 %v601
    %2224 = vmatprep.subr.mxu0 %v598
    %2225 = vmatpush1.msra.mxu0 %v597
    %2226 = vmatprep.subr.mxu0 %v594
    %2227 = vmatpush1.msra.mxu0 %v593
    %2228 = vmatprep.subr.mxu0 %v590
    %2229 = vmatpush1.msra.mxu0 %v589
    %2230 = vmatprep.subr.mxu0 %v586
    %2231 = vmatpush1.msra.mxu0 %v585
    %2232 = vmatprep.subr.mxu0 %v582
    %2233 = vmatpush1.msra.mxu0 %v581
    %2234 = vmatprep.subr.mxu0 %v578
    %2235 = vmatpush1.msra.mxu0 %v577
    %2236 = vmatprep.subr.mxu0 %v574
    %2237 = vmatpush1.msra.mxu0 %v573
    %2238 = vmatprep.subr.mxu0 %v570
    %2239 = vmatpush1.msra.mxu0 %v569
    %2240 = vmatprep.subr.mxu0 %v566
    %2241 = vmatpush1.msra.mxu0 %v565
    %2242 = vmatprep.subr.mxu0 %v562
    %2243 = vmatpush1.msra.mxu0 %v561
    %2244 = vmatprep.subr.mxu0 %v686
    %2245 = vmatpush2.msra.mxu0 %v685
    %2246 = vmatprep.subr.mxu0 %v682
    %2247 = vmatpush2.msra.mxu0 %v681
    %2248 = vmatprep.subr.mxu0 %v678
    %2249 = vmatpush2.msra.mxu0 %v677
    %2250 = vmatprep.subr.mxu0 %v674
    %2251 = vmatpush2.msra.mxu0 %v673
    %2252 = vmatprep.subr.mxu0 %v670
    %2253 = vmatpush2.msra.mxu0 %v669
    %2254 = vmatprep.subr.mxu0 %v666
    %2255 = vmatpush2.msra.mxu0 %v665
    %2256 = vmatprep.subr.mxu0 %v662
    %2257 = vmatpush2.msra.mxu0 %v661
    %2258 = vmatprep.subr.mxu0 %v658
    %2259 = vmatpush2.msra.mxu0 %v657
    %2260 = vmatprep.subr.mxu0 %v654
    %2261 = vmatpush2.msra.mxu0 %v653
    %2262 = vmatprep.subr.mxu0 %v650
    %2263 = vmatpush2.msra.mxu0 %v649
    %2264 = vmatprep.subr.mxu0 %v646
    %2265 = vmatpush2.msra.mxu0 %v645
    %2266 = vmatprep.subr.mxu0 %v642
    %2267 = vmatpush2.msra.mxu0 %v641
    %2268 = vmatprep.subr.mxu0 %v638
    %2269 = vmatpush2.msra.mxu0 %v637
    %2270 = vmatprep.subr.mxu0 %v634
    %2271 = vmatpush2.msra.mxu0 %v633
    %2272 = vmatprep.subr.mxu0 %v630
    %2273 = vmatpush2.msra.mxu0 %v629
    %2274 = vmatprep.subr.mxu0 %v626
    %2275 = vmatpush2.msra.mxu0 %v625
    %2276 = vmatprep.mubr.f32.mxu0 %v2138
    %2277 = vmatmul.mubr.f32.gmra.mxu0 %v2137
    %v2278 = vpop.f32.mrf.mxu0
    %v2279 = vadd.f32 %v700, %v2278
    %v2280 = vpop.f32.mrf.mxu0
    %v2281 = vadd.f32 %v704, %v2280
    %2282 = vdwg.mxu0
    %2283 = vmatprep.subr.mxu0 %v386
    %2284 = vmatpush1.msra.mxu0 %v385
    %2285 = vmatprep.subr.mxu0 %v382
    %2286 = vmatpush1.msra.mxu0 %v381
    %2287 = vmatprep.subr.mxu0 %v378
    %2288 = vmatpush1.msra.mxu0 %v377
    %2289 = vmatprep.subr.mxu0 %v374
    %2290 = vmatpush1.msra.mxu0 %v373
    %2291 = vmatprep.subr.mxu0 %v370
    %2292 = vmatpush1.msra.mxu0 %v369
    %2293 = vmatprep.subr.mxu0 %v366
    %2294 = vmatpush1.msra.mxu0 %v365
    %2295 = vmatprep.subr.mxu0 %v362
    %2296 = vmatpush1.msra.mxu0 %v361
    %2297 = vmatprep.subr.mxu0 %v358
    %2298 = vmatpush1.msra.mxu0 %v357
    %2299 = vmatprep.subr.mxu0 %v354
    %2300 = vmatpush1.msra.mxu0 %v353
    %2301 = vmatprep.subr.mxu0 %v350
    %2302 = vmatpush1.msra.mxu0 %v349
    %2303 = vmatprep.subr.mxu0 %v346
    %2304 = vmatpush1.msra.mxu0 %v345
    %2305 = vmatprep.subr.mxu0 %v342
    %2306 = vmatpush1.msra.mxu0 %v341
    %2307 = vmatprep.subr.mxu0 %v338
    %2308 = vmatpush1.msra.mxu0 %v337
    %2309 = vmatprep.subr.mxu0 %v334
    %2310 = vmatpush1.msra.mxu0 %v333
    %2311 = vmatprep.subr.mxu0 %v330
    %2312 = vmatpush1.msra.mxu0 %v329
    %2313 = vmatprep.subr.mxu0 %v326
    %2314 = vmatpush1.msra.mxu0 %v325
    %2315 = vmatprep.subr.mxu0 0.0
    %2316 = vmatpush2.msra.mxu0 0.0
    %2317 = vmatprep.subr.mxu0 0.0
    %2318 = vmatpush2.msra.mxu0 0.0
    %2319 = vmatprep.subr.mxu0 0.0
    %2320 = vmatpush2.msra.mxu0 0.0
    %2321 = vmatprep.subr.mxu0 0.0
    %2322 = vmatpush2.msra.mxu0 0.0
    %2323 = vmatprep.subr.mxu0 0.0
    %2324 = vmatpush2.msra.mxu0 0.0
    %2325 = vmatprep.subr.mxu0 0.0
    %2326 = vmatpush2.msra.mxu0 0.0
    %2327 = vmatprep.subr.mxu0 0.0
    %2328 = vmatpush2.msra.mxu0 0.0
    %2329 = vmatprep.subr.mxu0 0.0
    %2330 = vmatpush2.msra.mxu0 0.0
    %2331 = vmatprep.subr.mxu0 0.0
    %2332 = vmatpush2.msra.mxu0 0.0
    %2333 = vmatprep.subr.mxu0 0.0
    %2334 = vmatpush2.msra.mxu0 0.0
    %2335 = vmatprep.subr.mxu0 0.0
    %2336 = vmatpush2.msra.mxu0 0.0
    %2337 = vmatprep.subr.mxu0 0.0
    %2338 = vmatpush2.msra.mxu0 0.0
    %2339 = vmatprep.subr.mxu0 0.0
    %2340 = vmatpush2.msra.mxu0 0.0
    %2341 = vmatprep.subr.mxu0 0.0
    %2342 = vmatpush2.msra.mxu0 0.0
    %2343 = vmatprep.subr.mxu0 0.0
    %2344 = vmatpush2.msra.mxu0 0.0
    %2345 = vmatprep.subr.mxu0 0.0
    %2346 = vmatpush2.msra.mxu0 0.0
    %2347 = vmatprep.mubr.f32.mxu0 0.0
    %2348 = vmatmul.mubr.f32.gmra.mxu0 %v2137
    %v2349 = vpop.f32.mrf.mxu0
    %v2350 = vadd.f32 0.0, %v2349
    %v2351 = vpop.f32.mrf.mxu0
    %v2352 = vadd.f32 0.0, %v2351
    %2353 = vdwg.mxu0
    %2354 = vmatprep.subr.mxu0 %v388
    %2355 = vmatpush1.msra.mxu0 %v387
    %2356 = vmatprep.subr.mxu0 %v384
    %2357 = vmatpush1.msra.mxu0 %v383
    %2358 = vmatprep.subr.mxu0 %v380
    %2359 = vmatpush1.msra.mxu0 %v379
    %2360 = vmatprep.subr.mxu0 %v376
    %2361 = vmatpush1.msra.mxu0 %v375
    %2362 = vmatprep.subr.mxu0 %v372
    %2363 = vmatpush1.msra.mxu0 %v371
    %2364 = vmatprep.subr.mxu0 %v368
    %2365 = vmatpush1.msra.mxu0 %v367
    %2366 = vmatprep.subr.mxu0 %v364
    %2367 = vmatpush1.msra.mxu0 %v363
    %2368 = vmatprep.subr.mxu0 %v360
    %2369 = vmatpush1.msra.mxu0 %v359
    %2370 = vmatprep.subr.mxu0 %v356
    %2371 = vmatpush1.msra.mxu0 %v355
    %2372 = vmatprep.subr.mxu0 %v352
    %2373 = vmatpush1.msra.mxu0 %v351
    %2374 = vmatprep.subr.mxu0 %v348
    %2375 = vmatpush1.msra.mxu0 %v347
    %2376 = vmatprep.subr.mxu0 %v344
    %2377 = vmatpush1.msra.mxu0 %v343
    %2378 = vmatprep.subr.mxu0 %v340
    %2379 = vmatpush1.msra.mxu0 %v339
    %2380 = vmatprep.subr.mxu0 %v336
    %2381 = vmatpush1.msra.mxu0 %v335
    %2382 = vmatprep.subr.mxu0 %v332
    %2383 = vmatpush1.msra.mxu0 %v331
    %2384 = vmatprep.subr.mxu0 %v328
    %2385 = vmatpush1.msra.mxu0 %v327
    %2386 = vmatprep.subr.mxu0 0.0
    %2387 = vmatpush2.msra.mxu0 0.0
    %2388 = vmatprep.subr.mxu0 0.0
    %2389 = vmatpush2.msra.mxu0 0.0
    %2390 = vmatprep.subr.mxu0 0.0
    %2391 = vmatpush2.msra.mxu0 0.0
    %2392 = vmatprep.subr.mxu0 0.0
    %2393 = vmatpush2.msra.mxu0 0.0
    %2394 = vmatprep.subr.mxu0 0.0
    %2395 = vmatpush2.msra.mxu0 0.0
    %2396 = vmatprep.subr.mxu0 0.0
    %2397 = vmatpush2.msra.mxu0 0.0
    %2398 = vmatprep.subr.mxu0 0.0
    %2399 = vmatpush2.msra.mxu0 0.0
    %2400 = vmatprep.subr.mxu0 0.0
    %2401 = vmatpush2.msra.mxu0 0.0
    %2402 = vmatprep.subr.mxu0 0.0
    %2403 = vmatpush2.msra.mxu0 0.0
    %2404 = vmatprep.subr.mxu0 0.0
    %2405 = vmatpush2.msra.mxu0 0.0
    %2406 = vmatprep.subr.mxu0 0.0
    %2407 = vmatpush2.msra.mxu0 0.0
    %2408 = vmatprep.subr.mxu0 0.0
    %2409 = vmatpush2.msra.mxu0 0.0
    %2410 = vmatprep.subr.mxu0 0.0
    %2411 = vmatpush2.msra.mxu0 0.0
    %2412 = vmatprep.subr.mxu0 0.0
    %2413 = vmatpush2.msra.mxu0 0.0
    %2414 = vmatprep.subr.mxu0 0.0
    %2415 = vmatpush2.msra.mxu0 0.0
    %2416 = vmatprep.subr.mxu0 0.0
    %2417 = vmatpush2.msra.mxu0 0.0
    %2418 = vmatprep.mubr.f32.mxu0 0.0
    %2419 = vmatmul.mubr.f32.gmra.mxu0 %v2137
    %v2420 = vpop.f32.mrf.mxu0
    %v2421 = vadd.f32 0.0, %v2420
    %v2422 = vpop.f32.mrf.mxu0
    %v2423 = vadd.f32 0.0, %v2422
    %2424 = vdwg.mxu0
    %v2429 = vrot.slane %v2350, 3
    %v2430 = vrot.slane %v2352, 3
    %v2431 = vrot.slane %v2421, 3
    %v2432 = vrot.slane %v2423, 3
    %v2437 = vadd.f32 %v250, %v2429
    %v2438 = vadd.f32 %v252, %v2430
    %v2439 = vadd.f32 %v321, %v2431
    %v2440 = vadd.f32 %v323, %v2432
    %v2441 = vxor.u32 %v2437, 2147483648
    %v2442 = vxor.u32 %v2438, 2147483648
    %v2443 = vxor.u32 %v2439, 2147483648
    %v2444 = vmul.f32 %v2441, 1.442695
    %v2445 = vpow.pop %v2444
    %v2446 = vmul.f32 %v2442, 1.442695
    %v2447 = vpow.pop %v2446
    %v2448 = vmul.f32 %v2443, 1.442695
    %v2449 = vpow.pop %v2448
    %v2450 = vadd.f32 %v2445, 1.0
    %v2451 = vadd.f32 %v2447, 1.0
    %v2452 = vadd.f32 %v2449, 1.0
    %v2453 = vrcp.pop %v2450
    %v2454 = vmul.f32 1.0, %v2453
    %v2455 = vrcp.pop %v2451
    %v2456 = vmul.f32 1.0, %v2455
    %v2457 = vrcp.pop %v2452
    %v2458 = vmul.f32 1.0, %v2457
    %v2459 = vtanh.pop %v2440
    %v2461 = vrot.slane %v2107, 7
    %v2463 = vmul.f32 %v2456, %v2461
    %v2464 = vmul.f32 %v2454, %v2459
    %v2465 = vadd.f32 %v2463, %v2464
    %v2466 = vtanh.pop %v2465
    %v2467 = vmul.f32 %v2458, %v2466
    %v2468 = vxor.u32 %v2208, 2147483648
    %v2469 = vxor.u32 %v2210, 2147483648
    %v2470 = vxor.u32 %v2279, 2147483648
    %v2471 = vmul.f32 %v2468, 1.442695
    %v2472 = vpow.pop %v2471
    %v2473 = vmul.f32 %v2469, 1.442695
    %v2474 = vpow.pop %v2473
    %v2475 = vmul.f32 %v2470, 1.442695
    %v2476 = vpow.pop %v2475
    %v2477 = vadd.f32 %v2472, 1.0
    %v2478 = vadd.f32 %v2474, 1.0
    %v2479 = vadd.f32 %v2476, 1.0
    %v2480 = vrcp.pop %v2477
    %v2481 = vmul.f32 1.0, %v2480
    %v2482 = vrcp.pop %v2478
    %v2483 = vmul.f32 1.0, %v2482
    %v2484 = vrcp.pop %v2479
    %v2485 = vmul.f32 1.0, %v2484
    %v2486 = vtanh.pop %v2281
    %v2487 = vmul.f32 %v2483, %v2131
    %v2488 = vmul.f32 %v2481, %v2486
    %v2489 = vadd.f32 %v2487, %v2488
    %v2490 = vtanh.pop %v2489
    %v2491 = vmul.f32 %v2485, %v2490
    %v2493 = vrot.slane %v2491, 3
    %v2495 = vrot.slane %v2467, 5
    %v2496 = vrot.slane %v2493, 5
    %2499 = vmatprep.subr.mxu0 %v620
    %2500 = vmatpush1.msra.mxu0 %v619
    %2501 = vmatprep.subr.mxu0 %v616
    %2502 = vmatpush1.msra.mxu0 %v615
    %2503 = vmatprep.subr.mxu0 %v612
    %2504 = vmatpush1.msra.mxu0 %v611
    %2505 = vmatprep.subr.mxu0 %v608
    %2506 = vmatpush1.msra.mxu0 %v607
    %2507 = vmatprep.subr.mxu0 %v604
    %2508 = vmatpush1.msra.mxu0 %v603
    %2509 = vmatprep.subr.mxu0 %v600
    %2510 = vmatpush1.msra.mxu0 %v599
    %2511 = vmatprep.subr.mxu0 %v596
    %2512 = vmatpush1.msra.mxu0 %v595
    %2513 = vmatprep.subr.mxu0 %v592
    %2514 = vmatpush1.msra.mxu0 %v591
    %2515 = vmatprep.subr.mxu0 %v588
    %2516 = vmatpush1.msra.mxu0 %v587
    %2517 = vmatprep.subr.mxu0 %v584
    %2518 = vmatpush1.msra.mxu0 %v583
    %2519 = vmatprep.subr.mxu0 %v580
    %2520 = vmatpush1.msra.mxu0 %v579
    %2521 = vmatprep.subr.mxu0 %v576
    %2522 = vmatpush1.msra.mxu0 %v575
    %2523 = vmatprep.subr.mxu0 %v572
    %2524 = vmatpush1.msra.mxu0 %v571
    %2525 = vmatprep.subr.mxu0 %v568
    %2526 = vmatpush1.msra.mxu0 %v567
    %2527 = vmatprep.subr.mxu0 %v564
    %2528 = vmatpush1.msra.mxu0 %v563
    %2529 = vmatprep.subr.mxu0 %v560
    %2530 = vmatpush1.msra.mxu0 %v559
    %2531 = vmatprep.subr.mxu0 %v684
    %2532 = vmatpush2.msra.mxu0 %v683
    %2533 = vmatprep.subr.mxu0 %v680
    %2534 = vmatpush2.msra.mxu0 %v679
    %2535 = vmatprep.subr.mxu0 %v676
    %2536 = vmatpush2.msra.mxu0 %v675
    %2537 = vmatprep.subr.mxu0 %v672
    %2538 = vmatpush2.msra.mxu0 %v671
    %2539 = vmatprep.subr.mxu0 %v668
    %2540 = vmatpush2.msra.mxu0 %v667
    %2541 = vmatprep.subr.mxu0 %v664
    %2542 = vmatpush2.msra.mxu0 %v663
    %2543 = vmatprep.subr.mxu0 %v660
    %2544 = vmatpush2.msra.mxu0 %v659
    %2545 = vmatprep.subr.mxu0 %v656
    %2546 = vmatpush2.msra.mxu0 %v655
    %2547 = vmatprep.subr.mxu0 %v652
    %2548 = vmatpush2.msra.mxu0 %v651
    %2549 = vmatprep.subr.mxu0 %v648
    %2550 = vmatpush2.msra.mxu0 %v647
    %2551 = vmatprep.subr.mxu0 %v644
    %2552 = vmatpush2.msra.mxu0 %v643
    %2553 = vmatprep.subr.mxu0 %v640
    %2554 = vmatpush2.msra.mxu0 %v639
    %2555 = vmatprep.subr.mxu0 %v636
    %2556 = vmatpush2.msra.mxu0 %v635
    %2557 = vmatprep.subr.mxu0 %v632
    %2558 = vmatpush2.msra.mxu0 %v631
    %2559 = vmatprep.subr.mxu0 %v628
    %2560 = vmatpush2.msra.mxu0 %v627
    %2561 = vmatprep.subr.mxu0 %v624
    %2562 = vmatpush2.msra.mxu0 %v623
    %2563 = vmatprep.mubr.f32.mxu0 %v2496
    %2564 = vmatmul.mubr.f32.gmra.mxu0 %v2495
    %v2565 = vpop.f32.mrf.mxu0
    %v2566 = vadd.f32 %v692, %v2565
    %v2567 = vpop.f32.mrf.mxu0
    %v2568 = vadd.f32 %v696, %v2567
    %2569 = vdwg.mxu0
    %2570 = vmatprep.subr.mxu0 %v622
    %2571 = vmatpush1.msra.mxu0 %v621
    %2572 = vmatprep.subr.mxu0 %v618
    %2573 = vmatpush1.msra.mxu0 %v617
    %2574 = vmatprep.subr.mxu0 %v614
    %2575 = vmatpush1.msra.mxu0 %v613
    %2576 = vmatprep.subr.mxu0 %v610
    %2577 = vmatpush1.msra.mxu0 %v609
    %2578 = vmatprep.subr.mxu0 %v606
    %2579 = vmatpush1.msra.mxu0 %v605
    %2580 = vmatprep.subr.mxu0 %v602
    %2581 = vmatpush1.msra.mxu0 %v601
    %2582 = vmatprep.subr.mxu0 %v598
    %2583 = vmatpush1.msra.mxu0 %v597
    %2584 = vmatprep.subr.mxu0 %v594
    %2585 = vmatpush1.msra.mxu0 %v593
    %2586 = vmatprep.subr.mxu0 %v590
    %2587 = vmatpush1.msra.mxu0 %v589
    %2588 = vmatprep.subr.mxu0 %v586
    %2589 = vmatpush1.msra.mxu0 %v585
    %2590 = vmatprep.subr.mxu0 %v582
    %2591 = vmatpush1.msra.mxu0 %v581
    %2592 = vmatprep.subr.mxu0 %v578
    %2593 = vmatpush1.msra.mxu0 %v577
    %2594 = vmatprep.subr.mxu0 %v574
    %2595 = vmatpush1.msra.mxu0 %v573
    %2596 = vmatprep.subr.mxu0 %v570
    %2597 = vmatpush1.msra.mxu0 %v569
    %2598 = vmatprep.subr.mxu0 %v566
    %2599 = vmatpush1.msra.mxu0 %v565
    %2600 = vmatprep.subr.mxu0 %v562
    %2601 = vmatpush1.msra.mxu0 %v561
    %2602 = vmatprep.subr.mxu0 %v686
    %2603 = vmatpush2.msra.mxu0 %v685
    %2604 = vmatprep.subr.mxu0 %v682
    %2605 = vmatpush2.msra.mxu0 %v681
    %2606 = vmatprep.subr.mxu0 %v678
    %2607 = vmatpush2.msra.mxu0 %v677
    %2608 = vmatprep.subr.mxu0 %v674
    %2609 = vmatpush2.msra.mxu0 %v673
    %2610 = vmatprep.subr.mxu0 %v670
    %2611 = vmatpush2.msra.mxu0 %v669
    %2612 = vmatprep.subr.mxu0 %v666
    %2613 = vmatpush2.msra.mxu0 %v665
    %2614 = vmatprep.subr.mxu0 %v662
    %2615 = vmatpush2.msra.mxu0 %v661
    %2616 = vmatprep.subr.mxu0 %v658
    %2617 = vmatpush2.msra.mxu0 %v657
    %2618 = vmatprep.subr.mxu0 %v654
    %2619 = vmatpush2.msra.mxu0 %v653
    %2620 = vmatprep.subr.mxu0 %v650
    %2621 = vmatpush2.msra.mxu0 %v649
    %2622 = vmatprep.subr.mxu0 %v646
    %2623 = vmatpush2.msra.mxu0 %v645
    %2624 = vmatprep.subr.mxu0 %v642
    %2625 = vmatpush2.msra.mxu0 %v641
    %2626 = vmatprep.subr.mxu0 %v638
    %2627 = vmatpush2.msra.mxu0 %v637
    %2628 = vmatprep.subr.mxu0 %v634
    %2629 = vmatpush2.msra.mxu0 %v633
    %2630 = vmatprep.subr.mxu0 %v630
    %2631 = vmatpush2.msra.mxu0 %v629
    %2632 = vmatprep.subr.mxu0 %v626
    %2633 = vmatpush2.msra.mxu0 %v625
    %2634 = vmatprep.mubr.f32.mxu0 %v2496
    %2635 = vmatmul.mubr.f32.gmra.mxu0 %v2495
    %v2636 = vpop.f32.mrf.mxu0
    %v2637 = vadd.f32 %v700, %v2636
    %v2638 = vpop.f32.mrf.mxu0
    %v2639 = vadd.f32 %v704, %v2638
    %2640 = vdwg.mxu0
    %2641 = vmatprep.subr.mxu0 %v386
    %2642 = vmatpush1.msra.mxu0 %v385
    %2643 = vmatprep.subr.mxu0 %v382
    %2644 = vmatpush1.msra.mxu0 %v381
    %2645 = vmatprep.subr.mxu0 %v378
    %2646 = vmatpush1.msra.mxu0 %v377
    %2647 = vmatprep.subr.mxu0 %v374
    %2648 = vmatpush1.msra.mxu0 %v373
    %2649 = vmatprep.subr.mxu0 %v370
    %2650 = vmatpush1.msra.mxu0 %v369
    %2651 = vmatprep.subr.mxu0 %v366
    %2652 = vmatpush1.msra.mxu0 %v365
    %2653 = vmatprep.subr.mxu0 %v362
    %2654 = vmatpush1.msra.mxu0 %v361
    %2655 = vmatprep.subr.mxu0 %v358
    %2656 = vmatpush1.msra.mxu0 %v357
    %2657 = vmatprep.subr.mxu0 %v354
    %2658 = vmatpush1.msra.mxu0 %v353
    %2659 = vmatprep.subr.mxu0 %v350
    %2660 = vmatpush1.msra.mxu0 %v349
    %2661 = vmatprep.subr.mxu0 %v346
    %2662 = vmatpush1.msra.mxu0 %v345
    %2663 = vmatprep.subr.mxu0 %v342
    %2664 = vmatpush1.msra.mxu0 %v341
    %2665 = vmatprep.subr.mxu0 %v338
    %2666 = vmatpush1.msra.mxu0 %v337
    %2667 = vmatprep.subr.mxu0 %v334
    %2668 = vmatpush1.msra.mxu0 %v333
    %2669 = vmatprep.subr.mxu0 %v330
    %2670 = vmatpush1.msra.mxu0 %v329
    %2671 = vmatprep.subr.mxu0 %v326
    %2672 = vmatpush1.msra.mxu0 %v325
    %2673 = vmatprep.subr.mxu0 0.0
    %2674 = vmatpush2.msra.mxu0 0.0
    %2675 = vmatprep.subr.mxu0 0.0
    %2676 = vmatpush2.msra.mxu0 0.0
    %2677 = vmatprep.subr.mxu0 0.0
    %2678 = vmatpush2.msra.mxu0 0.0
    %2679 = vmatprep.subr.mxu0 0.0
    %2680 = vmatpush2.msra.mxu0 0.0
    %2681 = vmatprep.subr.mxu0 0.0
    %2682 = vmatpush2.msra.mxu0 0.0
    %2683 = vmatprep.subr.mxu0 0.0
    %2684 = vmatpush2.msra.mxu0 0.0
    %2685 = vmatprep.subr.mxu0 0.0
    %2686 = vmatpush2.msra.mxu0 0.0
    %2687 = vmatprep.subr.mxu0 0.0
    %2688 = vmatpush2.msra.mxu0 0.0
    %2689 = vmatprep.subr.mxu0 0.0
    %2690 = vmatpush2.msra.mxu0 0.0
    %2691 = vmatprep.subr.mxu0 0.0
    %2692 = vmatpush2.msra.mxu0 0.0
    %2693 = vmatprep.subr.mxu0 0.0
    %2694 = vmatpush2.msra.mxu0 0.0
    %2695 = vmatprep.subr.mxu0 0.0
    %2696 = vmatpush2.msra.mxu0 0.0
    %2697 = vmatprep.subr.mxu0 0.0
    %2698 = vmatpush2.msra.mxu0 0.0
    %2699 = vmatprep.subr.mxu0 0.0
    %2700 = vmatpush2.msra.mxu0 0.0
    %2701 = vmatprep.subr.mxu0 0.0
    %2702 = vmatpush2.msra.mxu0 0.0
    %2703 = vmatprep.subr.mxu0 0.0
    %2704 = vmatpush2.msra.mxu0 0.0
    %2705 = vmatprep.mubr.f32.mxu0 0.0
    %2706 = vmatmul.mubr.f32.gmra.mxu0 %v2495
    %v2707 = vpop.f32.mrf.mxu0
    %v2708 = vadd.f32 0.0, %v2707
    %v2709 = vpop.f32.mrf.mxu0
    %v2710 = vadd.f32 0.0, %v2709
    %2711 = vdwg.mxu0
    %2712 = vmatprep.subr.mxu0 %v388
    %2713 = vmatpush1.msra.mxu0 %v387
    %2714 = vmatprep.subr.mxu0 %v384
    %2715 = vmatpush1.msra.mxu0 %v383
    %2716 = vmatprep.subr.mxu0 %v380
    %2717 = vmatpush1.msra.mxu0 %v379
    %2718 = vmatprep.subr.mxu0 %v376
    %2719 = vmatpush1.msra.mxu0 %v375
    %2720 = vmatprep.subr.mxu0 %v372
    %2721 = vmatpush1.msra.mxu0 %v371
    %2722 = vmatprep.subr.mxu0 %v368
    %2723 = vmatpush1.msra.mxu0 %v367
    %2724 = vmatprep.subr.mxu0 %v364
    %2725 = vmatpush1.msra.mxu0 %v363
    %2726 = vmatprep.subr.mxu0 %v360
    %2727 = vmatpush1.msra.mxu0 %v359
    %2728 = vmatprep.subr.mxu0 %v356
    %2729 = vmatpush1.msra.mxu0 %v355
    %2730 = vmatprep.subr.mxu0 %v352
    %2731 = vmatpush1.msra.mxu0 %v351
    %2732 = vmatprep.subr.mxu0 %v348
    %2733 = vmatpush1.msra.mxu0 %v347
    %2734 = vmatprep.subr.mxu0 %v344
    %2735 = vmatpush1.msra.mxu0 %v343
    %2736 = vmatprep.subr.mxu0 %v340
    %2737 = vmatpush1.msra.mxu0 %v339
    %2738 = vmatprep.subr.mxu0 %v336
    %2739 = vmatpush1.msra.mxu0 %v335
    %2740 = vmatprep.subr.mxu0 %v332
    %2741 = vmatpush1.msra.mxu0 %v331
    %2742 = vmatprep.subr.mxu0 %v328
    %2743 = vmatpush1.msra.mxu0 %v327
    %2744 = vmatprep.subr.mxu0 0.0
    %2745 = vmatpush2.msra.mxu0 0.0
    %2746 = vmatprep.subr.mxu0 0.0
    %2747 = vmatpush2.msra.mxu0 0.0
    %2748 = vmatprep.subr.mxu0 0.0
    %2749 = vmatpush2.msra.mxu0 0.0
    %2750 = vmatprep.subr.mxu0 0.0
    %2751 = vmatpush2.msra.mxu0 0.0
    %2752 = vmatprep.subr.mxu0 0.0
    %2753 = vmatpush2.msra.mxu0 0.0
    %2754 = vmatprep.subr.mxu0 0.0
    %2755 = vmatpush2.msra.mxu0 0.0
    %2756 = vmatprep.subr.mxu0 0.0
    %2757 = vmatpush2.msra.mxu0 0.0
    %2758 = vmatprep.subr.mxu0 0.0
    %2759 = vmatpush2.msra.mxu0 0.0
    %2760 = vmatprep.subr.mxu0 0.0
    %2761 = vmatpush2.msra.mxu0 0.0
    %2762 = vmatprep.subr.mxu0 0.0
    %2763 = vmatpush2.msra.mxu0 0.0
    %2764 = vmatprep.subr.mxu0 0.0
    %2765 = vmatpush2.msra.mxu0 0.0
    %2766 = vmatprep.subr.mxu0 0.0
    %2767 = vmatpush2.msra.mxu0 0.0
    %2768 = vmatprep.subr.mxu0 0.0
    %2769 = vmatpush2.msra.mxu0 0.0
    %2770 = vmatprep.subr.mxu0 0.0
    %2771 = vmatpush2.msra.mxu0 0.0
    %2772 = vmatprep.subr.mxu0 0.0
    %2773 = vmatpush2.msra.mxu0 0.0
    %2774 = vmatprep.subr.mxu0 0.0
    %2775 = vmatpush2.msra.mxu0 0.0
    %2776 = vmatprep.mubr.f32.mxu0 0.0
    %2777 = vmatmul.mubr.f32.gmra.mxu0 %v2495
    %v2778 = vpop.f32.mrf.mxu0
    %v2779 = vadd.f32 0.0, %v2778
    %v2780 = vpop.f32.mrf.mxu0
    %v2781 = vadd.f32 0.0, %v2780
    %2782 = vdwg.mxu0
    %v2787 = vrot.slane %v2708, 2
    %v2788 = vrot.slane %v2710, 2
    %v2789 = vrot.slane %v2779, 2
    %v2790 = vrot.slane %v2781, 2
    %v2795 = vadd.f32 %v250, %v2787
    %v2796 = vadd.f32 %v252, %v2788
    %v2797 = vadd.f32 %v321, %v2789
    %v2798 = vadd.f32 %v323, %v2790
    %v2799 = vxor.u32 %v2795, 2147483648
    %v2800 = vxor.u32 %v2796, 2147483648
    %v2801 = vxor.u32 %v2797, 2147483648
    %v2802 = vmul.f32 %v2799, 1.442695
    %v2803 = vpow.pop %v2802
    %v2804 = vmul.f32 %v2800, 1.442695
    %v2805 = vpow.pop %v2804
    %v2806 = vmul.f32 %v2801, 1.442695
    %v2807 = vpow.pop %v2806
    %v2808 = vadd.f32 %v2803, 1.0
    %v2809 = vadd.f32 %v2805, 1.0
    %v2810 = vadd.f32 %v2807, 1.0
    %v2811 = vrcp.pop %v2808
    %v2812 = vmul.f32 1.0, %v2811
    %v2813 = vrcp.pop %v2809
    %v2814 = vmul.f32 1.0, %v2813
    %v2815 = vrcp.pop %v2810
    %v2816 = vmul.f32 1.0, %v2815
    %v2817 = vtanh.pop %v2798
    %v2819 = vrot.slane %v2465, 7
    %v2821 = vmul.f32 %v2814, %v2819
    %v2822 = vmul.f32 %v2812, %v2817
    %v2823 = vadd.f32 %v2821, %v2822
    %v2824 = vtanh.pop %v2823
    %v2825 = vmul.f32 %v2816, %v2824
    %v2826 = vxor.u32 %v2566, 2147483648
    %v2827 = vxor.u32 %v2568, 2147483648
    %v2828 = vxor.u32 %v2637, 2147483648
    %v2829 = vmul.f32 %v2826, 1.442695
    %v2830 = vpow.pop %v2829
    %v2831 = vmul.f32 %v2827, 1.442695
    %v2832 = vpow.pop %v2831
    %v2833 = vmul.f32 %v2828, 1.442695
    %v2834 = vpow.pop %v2833
    %v2835 = vadd.f32 %v2830, 1.0
    %v2836 = vadd.f32 %v2832, 1.0
    %v2837 = vadd.f32 %v2834, 1.0
    %v2838 = vrcp.pop %v2835
    %v2839 = vmul.f32 1.0, %v2838
    %v2840 = vrcp.pop %v2836
    %v2841 = vmul.f32 1.0, %v2840
    %v2842 = vrcp.pop %v2837
    %v2843 = vmul.f32 1.0, %v2842
    %v2844 = vtanh.pop %v2639
    %v2845 = vmul.f32 %v2841, %v2489
    %v2846 = vmul.f32 %v2839, %v2844
    %v2847 = vadd.f32 %v2845, %v2846
    %v2848 = vtanh.pop %v2847
    %v2849 = vmul.f32 %v2843, %v2848
    %v2851 = vrot.slane %v2849, 2
    %v2853 = vrot.slane %v2825, 6
    %v2854 = vrot.slane %v2851, 6
    %2857 = vmatprep.subr.mxu0 %v620
    %2858 = vmatpush1.msra.mxu0 %v619
    %2859 = vmatprep.subr.mxu0 %v616
    %2860 = vmatpush1.msra.mxu0 %v615
    %2861 = vmatprep.subr.mxu0 %v612
    %2862 = vmatpush1.msra.mxu0 %v611
    %2863 = vmatprep.subr.mxu0 %v608
    %2864 = vmatpush1.msra.mxu0 %v607
    %2865 = vmatprep.subr.mxu0 %v604
    %2866 = vmatpush1.msra.mxu0 %v603
    %2867 = vmatprep.subr.mxu0 %v600
    %2868 = vmatpush1.msra.mxu0 %v599
    %2869 = vmatprep.subr.mxu0 %v596
    %2870 = vmatpush1.msra.mxu0 %v595
    %2871 = vmatprep.subr.mxu0 %v592
    %2872 = vmatpush1.msra.mxu0 %v591
    %2873 = vmatprep.subr.mxu0 %v588
    %2874 = vmatpush1.msra.mxu0 %v587
    %2875 = vmatprep.subr.mxu0 %v584
    %2876 = vmatpush1.msra.mxu0 %v583
    %2877 = vmatprep.subr.mxu0 %v580
    %2878 = vmatpush1.msra.mxu0 %v579
    %2879 = vmatprep.subr.mxu0 %v576
    %2880 = vmatpush1.msra.mxu0 %v575
    %2881 = vmatprep.subr.mxu0 %v572
    %2882 = vmatpush1.msra.mxu0 %v571
    %2883 = vmatprep.subr.mxu0 %v568
    %2884 = vmatpush1.msra.mxu0 %v567
    %2885 = vmatprep.subr.mxu0 %v564
    %2886 = vmatpush1.msra.mxu0 %v563
    %2887 = vmatprep.subr.mxu0 %v560
    %2888 = vmatpush1.msra.mxu0 %v559
    %2889 = vmatprep.subr.mxu0 %v684
    %2890 = vmatpush2.msra.mxu0 %v683
    %2891 = vmatprep.subr.mxu0 %v680
    %2892 = vmatpush2.msra.mxu0 %v679
    %2893 = vmatprep.subr.mxu0 %v676
    %2894 = vmatpush2.msra.mxu0 %v675
    %2895 = vmatprep.subr.mxu0 %v672
    %2896 = vmatpush2.msra.mxu0 %v671
    %2897 = vmatprep.subr.mxu0 %v668
    %2898 = vmatpush2.msra.mxu0 %v667
    %2899 = vmatprep.subr.mxu0 %v664
    %2900 = vmatpush2.msra.mxu0 %v663
    %2901 = vmatprep.subr.mxu0 %v660
    %2902 = vmatpush2.msra.mxu0 %v659
    %2903 = vmatprep.subr.mxu0 %v656
    %2904 = vmatpush2.msra.mxu0 %v655
    %2905 = vmatprep.subr.mxu0 %v652
    %2906 = vmatpush2.msra.mxu0 %v651
    %2907 = vmatprep.subr.mxu0 %v648
    %2908 = vmatpush2.msra.mxu0 %v647
    %2909 = vmatprep.subr.mxu0 %v644
    %2910 = vmatpush2.msra.mxu0 %v643
    %2911 = vmatprep.subr.mxu0 %v640
    %2912 = vmatpush2.msra.mxu0 %v639
    %2913 = vmatprep.subr.mxu0 %v636
    %2914 = vmatpush2.msra.mxu0 %v635
    %2915 = vmatprep.subr.mxu0 %v632
    %2916 = vmatpush2.msra.mxu0 %v631
    %2917 = vmatprep.subr.mxu0 %v628
    %2918 = vmatpush2.msra.mxu0 %v627
    %2919 = vmatprep.subr.mxu0 %v624
    %2920 = vmatpush2.msra.mxu0 %v623
    %2921 = vmatprep.mubr.f32.mxu0 %v2854
    %2922 = vmatmul.mubr.f32.gmra.mxu0 %v2853
    %v2923 = vpop.f32.mrf.mxu0
    %v2924 = vadd.f32 %v692, %v2923
    %v2925 = vpop.f32.mrf.mxu0
    %v2926 = vadd.f32 %v696, %v2925
    %2927 = vdwg.mxu0
    %2928 = vmatprep.subr.mxu0 %v622
    %2929 = vmatpush1.msra.mxu0 %v621
    %2930 = vmatprep.subr.mxu0 %v618
    %2931 = vmatpush1.msra.mxu0 %v617
    %2932 = vmatprep.subr.mxu0 %v614
    %2933 = vmatpush1.msra.mxu0 %v613
    %2934 = vmatprep.subr.mxu0 %v610
    %2935 = vmatpush1.msra.mxu0 %v609
    %2936 = vmatprep.subr.mxu0 %v606
    %2937 = vmatpush1.msra.mxu0 %v605
    %2938 = vmatprep.subr.mxu0 %v602
    %2939 = vmatpush1.msra.mxu0 %v601
    %2940 = vmatprep.subr.mxu0 %v598
    %2941 = vmatpush1.msra.mxu0 %v597
    %2942 = vmatprep.subr.mxu0 %v594
    %2943 = vmatpush1.msra.mxu0 %v593
    %2944 = vmatprep.subr.mxu0 %v590
    %2945 = vmatpush1.msra.mxu0 %v589
    %2946 = vmatprep.subr.mxu0 %v586
    %2947 = vmatpush1.msra.mxu0 %v585
    %2948 = vmatprep.subr.mxu0 %v582
    %2949 = vmatpush1.msra.mxu0 %v581
    %2950 = vmatprep.subr.mxu0 %v578
    %2951 = vmatpush1.msra.mxu0 %v577
    %2952 = vmatprep.subr.mxu0 %v574
    %2953 = vmatpush1.msra.mxu0 %v573
    %2954 = vmatprep.subr.mxu0 %v570
    %2955 = vmatpush1.msra.mxu0 %v569
    %2956 = vmatprep.subr.mxu0 %v566
    %2957 = vmatpush1.msra.mxu0 %v565
    %2958 = vmatprep.subr.mxu0 %v562
    %2959 = vmatpush1.msra.mxu0 %v561
    %2960 = vmatprep.subr.mxu0 %v686
    %2961 = vmatpush2.msra.mxu0 %v685
    %2962 = vmatprep.subr.mxu0 %v682
    %2963 = vmatpush2.msra.mxu0 %v681
    %2964 = vmatprep.subr.mxu0 %v678
    %2965 = vmatpush2.msra.mxu0 %v677
    %2966 = vmatprep.subr.mxu0 %v674
    %2967 = vmatpush2.msra.mxu0 %v673
    %2968 = vmatprep.subr.mxu0 %v670
    %2969 = vmatpush2.msra.mxu0 %v669
    %2970 = vmatprep.subr.mxu0 %v666
    %2971 = vmatpush2.msra.mxu0 %v665
    %2972 = vmatprep.subr.mxu0 %v662
    %2973 = vmatpush2.msra.mxu0 %v661
    %2974 = vmatprep.subr.mxu0 %v658
    %2975 = vmatpush2.msra.mxu0 %v657
    %2976 = vmatprep.subr.mxu0 %v654
    %2977 = vmatpush2.msra.mxu0 %v653
    %2978 = vmatprep.subr.mxu0 %v650
    %2979 = vmatpush2.msra.mxu0 %v649
    %2980 = vmatprep.subr.mxu0 %v646
    %2981 = vmatpush2.msra.mxu0 %v645
    %2982 = vmatprep.subr.mxu0 %v642
    %2983 = vmatpush2.msra.mxu0 %v641
    %2984 = vmatprep.subr.mxu0 %v638
    %2985 = vmatpush2.msra.mxu0 %v637
    %2986 = vmatprep.subr.mxu0 %v634
    %2987 = vmatpush2.msra.mxu0 %v633
    %2988 = vmatprep.subr.mxu0 %v630
    %2989 = vmatpush2.msra.mxu0 %v629
    %2990 = vmatprep.subr.mxu0 %v626
    %2991 = vmatpush2.msra.mxu0 %v625
    %2992 = vmatprep.mubr.f32.mxu0 %v2854
    %2993 = vmatmul.mubr.f32.gmra.mxu0 %v2853
    %v2994 = vpop.f32.mrf.mxu0
    %v2995 = vadd.f32 %v700, %v2994
    %v2996 = vpop.f32.mrf.mxu0
    %v2997 = vadd.f32 %v704, %v2996
    %2998 = vdwg.mxu0
    %2999 = vmatprep.subr.mxu0 %v386
    %3000 = vmatpush1.msra.mxu0 %v385
    %3001 = vmatprep.subr.mxu0 %v382
    %3002 = vmatpush1.msra.mxu0 %v381
    %3003 = vmatprep.subr.mxu0 %v378
    %3004 = vmatpush1.msra.mxu0 %v377
    %3005 = vmatprep.subr.mxu0 %v374
    %3006 = vmatpush1.msra.mxu0 %v373
    %3007 = vmatprep.subr.mxu0 %v370
    %3008 = vmatpush1.msra.mxu0 %v369
    %3009 = vmatprep.subr.mxu0 %v366
    %3010 = vmatpush1.msra.mxu0 %v365
    %3011 = vmatprep.subr.mxu0 %v362
    %3012 = vmatpush1.msra.mxu0 %v361
    %3013 = vmatprep.subr.mxu0 %v358
    %3014 = vmatpush1.msra.mxu0 %v357
    %3015 = vmatprep.subr.mxu0 %v354
    %3016 = vmatpush1.msra.mxu0 %v353
    %3017 = vmatprep.subr.mxu0 %v350
    %3018 = vmatpush1.msra.mxu0 %v349
    %3019 = vmatprep.subr.mxu0 %v346
    %3020 = vmatpush1.msra.mxu0 %v345
    %3021 = vmatprep.subr.mxu0 %v342
    %3022 = vmatpush1.msra.mxu0 %v341
    %3023 = vmatprep.subr.mxu0 %v338
    %3024 = vmatpush1.msra.mxu0 %v337
    %3025 = vmatprep.subr.mxu0 %v334
    %3026 = vmatpush1.msra.mxu0 %v333
    %3027 = vmatprep.subr.mxu0 %v330
    %3028 = vmatpush1.msra.mxu0 %v329
    %3029 = vmatprep.subr.mxu0 %v326
    %3030 = vmatpush1.msra.mxu0 %v325
    %3031 = vmatprep.subr.mxu0 0.0
    %3032 = vmatpush2.msra.mxu0 0.0
    %3033 = vmatprep.subr.mxu0 0.0
    %3034 = vmatpush2.msra.mxu0 0.0
    %3035 = vmatprep.subr.mxu0 0.0
    %3036 = vmatpush2.msra.mxu0 0.0
    %3037 = vmatprep.subr.mxu0 0.0
    %3038 = vmatpush2.msra.mxu0 0.0
    %3039 = vmatprep.subr.mxu0 0.0
    %3040 = vmatpush2.msra.mxu0 0.0
    %3041 = vmatprep.subr.mxu0 0.0
    %3042 = vmatpush2.msra.mxu0 0.0
    %3043 = vmatprep.subr.mxu0 0.0
    %3044 = vmatpush2.msra.mxu0 0.0
    %3045 = vmatprep.subr.mxu0 0.0
    %3046 = vmatpush2.msra.mxu0 0.0
    %3047 = vmatprep.subr.mxu0 0.0
    %3048 = vmatpush2.msra.mxu0 0.0
    %3049 = vmatprep.subr.mxu0 0.0
    %3050 = vmatpush2.msra.mxu0 0.0
    %3051 = vmatprep.subr.mxu0 0.0
    %3052 = vmatpush2.msra.mxu0 0.0
    %3053 = vmatprep.subr.mxu0 0.0
    %3054 = vmatpush2.msra.mxu0 0.0
    %3055 = vmatprep.subr.mxu0 0.0
    %3056 = vmatpush2.msra.mxu0 0.0
    %3057 = vmatprep.subr.mxu0 0.0
    %3058 = vmatpush2.msra.mxu0 0.0
    %3059 = vmatprep.subr.mxu0 0.0
    %3060 = vmatpush2.msra.mxu0 0.0
    %3061 = vmatprep.subr.mxu0 0.0
    %3062 = vmatpush2.msra.mxu0 0.0
    %3063 = vmatprep.mubr.f32.mxu0 0.0
    %3064 = vmatmul.mubr.f32.gmra.mxu0 %v2853
    %v3065 = vpop.f32.mrf.mxu0
    %v3066 = vadd.f32 0.0, %v3065
    %v3067 = vpop.f32.mrf.mxu0
    %v3068 = vadd.f32 0.0, %v3067
    %3069 = vdwg.mxu0
    %3070 = vmatprep.subr.mxu0 %v388
    %3071 = vmatpush1.msra.mxu0 %v387
    %3072 = vmatprep.subr.mxu0 %v384
    %3073 = vmatpush1.msra.mxu0 %v383
    %3074 = vmatprep.subr.mxu0 %v380
    %3075 = vmatpush1.msra.mxu0 %v379
    %3076 = vmatprep.subr.mxu0 %v376
    %3077 = vmatpush1.msra.mxu0 %v375
    %3078 = vmatprep.subr.mxu0 %v372
    %3079 = vmatpush1.msra.mxu0 %v371
    %3080 = vmatprep.subr.mxu0 %v368
    %3081 = vmatpush1.msra.mxu0 %v367
    %3082 = vmatprep.subr.mxu0 %v364
    %3083 = vmatpush1.msra.mxu0 %v363
    %3084 = vmatprep.subr.mxu0 %v360
    %3085 = vmatpush1.msra.mxu0 %v359
    %3086 = vmatprep.subr.mxu0 %v356
    %3087 = vmatpush1.msra.mxu0 %v355
    %3088 = vmatprep.subr.mxu0 %v352
    %3089 = vmatpush1.msra.mxu0 %v351
    %3090 = vmatprep.subr.mxu0 %v348
    %3091 = vmatpush1.msra.mxu0 %v347
    %3092 = vmatprep.subr.mxu0 %v344
    %3093 = vmatpush1.msra.mxu0 %v343
    %3094 = vmatprep.subr.mxu0 %v340
    %3095 = vmatpush1.msra.mxu0 %v339
    %3096 = vmatprep.subr.mxu0 %v336
    %3097 = vmatpush1.msra.mxu0 %v335
    %3098 = vmatprep.subr.mxu0 %v332
    %3099 = vmatpush1.msra.mxu0 %v331
    %3100 = vmatprep.subr.mxu0 %v328
    %3101 = vmatpush1.msra.mxu0 %v327
    %3102 = vmatprep.subr.mxu0 0.0
    %3103 = vmatpush2.msra.mxu0 0.0
    %3104 = vmatprep.subr.mxu0 0.0
    %3105 = vmatpush2.msra.mxu0 0.0
    %3106 = vmatprep.subr.mxu0 0.0
    %3107 = vmatpush2.msra.mxu0 0.0
    %3108 = vmatprep.subr.mxu0 0.0
    %3109 = vmatpush2.msra.mxu0 0.0
    %3110 = vmatprep.subr.mxu0 0.0
    %3111 = vmatpush2.msra.mxu0 0.0
    %3112 = vmatprep.subr.mxu0 0.0
    %3113 = vmatpush2.msra.mxu0 0.0
    %3114 = vmatprep.subr.mxu0 0.0
    %3115 = vmatpush2.msra.mxu0 0.0
    %3116 = vmatprep.subr.mxu0 0.0
    %3117 = vmatpush2.msra.mxu0 0.0
    %3118 = vmatprep.subr.mxu0 0.0
    %3119 = vmatpush2.msra.mxu0 0.0
    %3120 = vmatprep.subr.mxu0 0.0
    %3121 = vmatpush2.msra.mxu0 0.0
    %3122 = vmatprep.subr.mxu0 0.0
    %3123 = vmatpush2.msra.mxu0 0.0
    %3124 = vmatprep.subr.mxu0 0.0
    %3125 = vmatpush2.msra.mxu0 0.0
    %3126 = vmatprep.subr.mxu0 0.0
    %3127 = vmatpush2.msra.mxu0 0.0
    %3128 = vmatprep.subr.mxu0 0.0
    %3129 = vmatpush2.msra.mxu0 0.0
    %3130 = vmatprep.subr.mxu0 0.0
    %3131 = vmatpush2.msra.mxu0 0.0
    %3132 = vmatprep.subr.mxu0 0.0
    %3133 = vmatpush2.msra.mxu0 0.0
    %3134 = vmatprep.mubr.f32.mxu0 0.0
    %3135 = vmatmul.mubr.f32.gmra.mxu0 %v2853
    %v3136 = vpop.f32.mrf.mxu0
    %v3137 = vadd.f32 0.0, %v3136
    %v3138 = vpop.f32.mrf.mxu0
    %v3139 = vadd.f32 0.0, %v3138
    %3140 = vdwg.mxu0
    %v3145 = vrot.slane %v3066, 1
    %v3146 = vrot.slane %v3068, 1
    %v3147 = vrot.slane %v3137, 1
    %v3148 = vrot.slane %v3139, 1
    %v3153 = vadd.f32 %v250, %v3145
    %v3154 = vadd.f32 %v252, %v3146
    %v3155 = vadd.f32 %v321, %v3147
    %v3156 = vadd.f32 %v323, %v3148
    %v3157 = vxor.u32 %v3153, 2147483648
    %v3158 = vxor.u32 %v3154, 2147483648
    %v3159 = vxor.u32 %v3155, 2147483648
    %v3160 = vmul.f32 %v3157, 1.442695
    %v3161 = vpow.pop %v3160
    %v3162 = vmul.f32 %v3158, 1.442695
    %v3163 = vpow.pop %v3162
    %v3164 = vmul.f32 %v3159, 1.442695
    %v3165 = vpow.pop %v3164
    %v3166 = vadd.f32 %v3161, 1.0
    %v3167 = vadd.f32 %v3163, 1.0
    %v3168 = vadd.f32 %v3165, 1.0
    %v3169 = vrcp.pop %v3166
    %v3170 = vmul.f32 1.0, %v3169
    %v3171 = vrcp.pop %v3167
    %v3172 = vmul.f32 1.0, %v3171
    %v3173 = vrcp.pop %v3168
    %v3174 = vmul.f32 1.0, %v3173
    %v3175 = vtanh.pop %v3156
    %v3177 = vrot.slane %v2823, 7
    %v3179 = vmul.f32 %v3172, %v3177
    %v3180 = vmul.f32 %v3170, %v3175
    %v3181 = vadd.f32 %v3179, %v3180
    %v3182 = vtanh.pop %v3181
    %v3183 = vmul.f32 %v3174, %v3182
    %v3184 = vxor.u32 %v2924, 2147483648
    %v3185 = vxor.u32 %v2926, 2147483648
    %v3186 = vxor.u32 %v2995, 2147483648
    %v3187 = vmul.f32 %v3184, 1.442695
    %v3188 = vpow.pop %v3187
    %v3189 = vmul.f32 %v3185, 1.442695
    %v3190 = vpow.pop %v3189
    %v3191 = vmul.f32 %v3186, 1.442695
    %v3192 = vpow.pop %v3191
    %v3193 = vadd.f32 %v3188, 1.0
    %v3194 = vadd.f32 %v3190, 1.0
    %v3195 = vadd.f32 %v3192, 1.0
    %v3196 = vrcp.pop %v3193
    %v3197 = vmul.f32 1.0, %v3196
    %v3198 = vrcp.pop %v3194
    %v3199 = vmul.f32 1.0, %v3198
    %v3200 = vrcp.pop %v3195
    %v3201 = vmul.f32 1.0, %v3200
    %v3202 = vtanh.pop %v2997
    %v3203 = vmul.f32 %v3199, %v2847
    %v3204 = vmul.f32 %v3197, %v3202
    %v3205 = vadd.f32 %v3203, %v3204
    %v3206 = vtanh.pop %v3205
    %v3207 = vmul.f32 %v3201, %v3206
    %v3209 = vrot.slane %v3207, 1
    %v3211 = vrot.slane %v3183, 7
    %v3212 = vrot.slane %v3209, 7
    %3215 = vmatprep.subr.mxu0 %v620
    %3216 = vmatpush1.msra.mxu0 %v619
    %3217 = vmatprep.subr.mxu0 %v616
    %3218 = vmatpush1.msra.mxu0 %v615
    %3219 = vmatprep.subr.mxu0 %v612
    %3220 = vmatpush1.msra.mxu0 %v611
    %3221 = vmatprep.subr.mxu0 %v608
    %3222 = vmatpush1.msra.mxu0 %v607
    %3223 = vmatprep.subr.mxu0 %v604
    %3224 = vmatpush1.msra.mxu0 %v603
    %3225 = vmatprep.subr.mxu0 %v600
    %3226 = vmatpush1.msra.mxu0 %v599
    %3227 = vmatprep.subr.mxu0 %v596
    %3228 = vmatpush1.msra.mxu0 %v595
    %3229 = vmatprep.subr.mxu0 %v592
    %3230 = vmatpush1.msra.mxu0 %v591
    %3231 = vmatprep.subr.mxu0 %v588
    %3232 = vmatpush1.msra.mxu0 %v587
    %3233 = vmatprep.subr.mxu0 %v584
    %3234 = vmatpush1.msra.mxu0 %v583
    %3235 = vmatprep.subr.mxu0 %v580
    %3236 = vmatpush1.msra.mxu0 %v579
    %3237 = vmatprep.subr.mxu0 %v576
    %3238 = vmatpush1.msra.mxu0 %v575
    %3239 = vmatprep.subr.mxu0 %v572
    %3240 = vmatpush1.msra.mxu0 %v571
    %3241 = vmatprep.subr.mxu0 %v568
    %3242 = vmatpush1.msra.mxu0 %v567
    %3243 = vmatprep.subr.mxu0 %v564
    %3244 = vmatpush1.msra.mxu0 %v563
    %3245 = vmatprep.subr.mxu0 %v560
    %3246 = vmatpush1.msra.mxu0 %v559
    %3247 = vmatprep.subr.mxu0 %v684
    %3248 = vmatpush2.msra.mxu0 %v683
    %3249 = vmatprep.subr.mxu0 %v680
    %3250 = vmatpush2.msra.mxu0 %v679
    %3251 = vmatprep.subr.mxu0 %v676
    %3252 = vmatpush2.msra.mxu0 %v675
    %3253 = vmatprep.subr.mxu0 %v672
    %3254 = vmatpush2.msra.mxu0 %v671
    %3255 = vmatprep.subr.mxu0 %v668
    %3256 = vmatpush2.msra.mxu0 %v667
    %3257 = vmatprep.subr.mxu0 %v664
    %3258 = vmatpush2.msra.mxu0 %v663
    %3259 = vmatprep.subr.mxu0 %v660
    %3260 = vmatpush2.msra.mxu0 %v659
    %3261 = vmatprep.subr.mxu0 %v656
    %3262 = vmatpush2.msra.mxu0 %v655
    %3263 = vmatprep.subr.mxu0 %v652
    %3264 = vmatpush2.msra.mxu0 %v651
    %3265 = vmatprep.subr.mxu0 %v648
    %3266 = vmatpush2.msra.mxu0 %v647
    %3267 = vmatprep.subr.mxu0 %v644
    %3268 = vmatpush2.msra.mxu0 %v643
    %3269 = vmatprep.subr.mxu0 %v640
    %3270 = vmatpush2.msra.mxu0 %v639
    %3271 = vmatprep.subr.mxu0 %v636
    %3272 = vmatpush2.msra.mxu0 %v635
    %3273 = vmatprep.subr.mxu0 %v632
    %3274 = vmatpush2.msra.mxu0 %v631
    %3275 = vmatprep.subr.mxu0 %v628
    %3276 = vmatpush2.msra.mxu0 %v627
    %3277 = vmatprep.subr.mxu0 %v624
    %3278 = vmatpush2.msra.mxu0 %v623
    %3279 = vmatprep.mubr.f32.mxu0 %v3212
    %3280 = vmatmul.mubr.f32.gmra.mxu0 %v3211
    %v3281 = vpop.f32.mrf.mxu0
    %v3282 = vadd.f32 %v692, %v3281
    %v3283 = vpop.f32.mrf.mxu0
    %v3284 = vadd.f32 %v696, %v3283
    %3285 = vdwg.mxu0
    %3286 = vmatprep.subr.mxu0 %v622
    %3287 = vmatpush1.msra.mxu0 %v621
    %3288 = vmatprep.subr.mxu0 %v618
    %3289 = vmatpush1.msra.mxu0 %v617
    %3290 = vmatprep.subr.mxu0 %v614
    %3291 = vmatpush1.msra.mxu0 %v613
    %3292 = vmatprep.subr.mxu0 %v610
    %3293 = vmatpush1.msra.mxu0 %v609
    %3294 = vmatprep.subr.mxu0 %v606
    %3295 = vmatpush1.msra.mxu0 %v605
    %3296 = vmatprep.subr.mxu0 %v602
    %3297 = vmatpush1.msra.mxu0 %v601
    %3298 = vmatprep.subr.mxu0 %v598
    %3299 = vmatpush1.msra.mxu0 %v597
    %3300 = vmatprep.subr.mxu0 %v594
    %3301 = vmatpush1.msra.mxu0 %v593
    %3302 = vmatprep.subr.mxu0 %v590
    %3303 = vmatpush1.msra.mxu0 %v589
    %3304 = vmatprep.subr.mxu0 %v586
    %3305 = vmatpush1.msra.mxu0 %v585
    %3306 = vmatprep.subr.mxu0 %v582
    %3307 = vmatpush1.msra.mxu0 %v581
    %3308 = vmatprep.subr.mxu0 %v578
    %3309 = vmatpush1.msra.mxu0 %v577
    %3310 = vmatprep.subr.mxu0 %v574
    %3311 = vmatpush1.msra.mxu0 %v573
    %3312 = vmatprep.subr.mxu0 %v570
    %3313 = vmatpush1.msra.mxu0 %v569
    %3314 = vmatprep.subr.mxu0 %v566
    %3315 = vmatpush1.msra.mxu0 %v565
    %3316 = vmatprep.subr.mxu0 %v562
    %3317 = vmatpush1.msra.mxu0 %v561
    %3318 = vmatprep.subr.mxu0 %v686
    %3319 = vmatpush2.msra.mxu0 %v685
    %3320 = vmatprep.subr.mxu0 %v682
    %3321 = vmatpush2.msra.mxu0 %v681
    %3322 = vmatprep.subr.mxu0 %v678
    %3323 = vmatpush2.msra.mxu0 %v677
    %3324 = vmatprep.subr.mxu0 %v674
    %3325 = vmatpush2.msra.mxu0 %v673
    %3326 = vmatprep.subr.mxu0 %v670
    %3327 = vmatpush2.msra.mxu0 %v669
    %3328 = vmatprep.subr.mxu0 %v666
    %3329 = vmatpush2.msra.mxu0 %v665
    %3330 = vmatprep.subr.mxu0 %v662
    %3331 = vmatpush2.msra.mxu0 %v661
    %3332 = vmatprep.subr.mxu0 %v658
    %3333 = vmatpush2.msra.mxu0 %v657
    %3334 = vmatprep.subr.mxu0 %v654
    %3335 = vmatpush2.msra.mxu0 %v653
    %3336 = vmatprep.subr.mxu0 %v650
    %3337 = vmatpush2.msra.mxu0 %v649
    %3338 = vmatprep.subr.mxu0 %v646
    %3339 = vmatpush2.msra.mxu0 %v645
    %3340 = vmatprep.subr.mxu0 %v642
    %3341 = vmatpush2.msra.mxu0 %v641
    %3342 = vmatprep.subr.mxu0 %v638
    %3343 = vmatpush2.msra.mxu0 %v637
    %3344 = vmatprep.subr.mxu0 %v634
    %3345 = vmatpush2.msra.mxu0 %v633
    %3346 = vmatprep.subr.mxu0 %v630
    %3347 = vmatpush2.msra.mxu0 %v629
    %3348 = vmatprep.subr.mxu0 %v626
    %3349 = vmatpush2.msra.mxu0 %v625
    %3350 = vmatprep.mubr.f32.mxu0 %v3212
    %3351 = vmatmul.mubr.f32.gmra.mxu0 %v3211
    %v3352 = vpop.f32.mrf.mxu0
    %v3353 = vadd.f32 %v700, %v3352
    %v3354 = vpop.f32.mrf.mxu0
    %v3355 = vadd.f32 %v704, %v3354
    %3356 = vdwg.mxu0
    %v3357 = vxor.u32 %v3282, 2147483648
    %v3358 = vxor.u32 %v3284, 2147483648
    %v3359 = vxor.u32 %v3353, 2147483648
    %v3360 = vmul.f32 %v3357, 1.442695
    %v3361 = vpow.pop %v3360
    %v3362 = vmul.f32 %v3358, 1.442695
    %v3363 = vpow.pop %v3362
    %v3364 = vmul.f32 %v3359, 1.442695
    %v3365 = vpow.pop %v3364
    %v3366 = vadd.f32 %v3361, 1.0
    %v3367 = vadd.f32 %v3363, 1.0
    %v3368 = vadd.f32 %v3365, 1.0
    %v3369 = vrcp.pop %v3366
    %v3370 = vmul.f32 1.0, %v3369
    %v3371 = vrcp.pop %v3367
    %v3372 = vmul.f32 1.0, %v3371
    %v3373 = vrcp.pop %v3368
    %v3374 = vmul.f32 1.0, %v3373
    %v3375 = vtanh.pop %v3355
    %v3376 = vmul.f32 %v3372, %v3205
    %v3377 = vmul.f32 %v3370, %v3375
    %v3378 = vadd.f32 %v3376, %v3377
    %v3379 = vtanh.pop %v3378
    %v3380 = vmul.f32 %v3374, %v3379
    %v3381 = vld [vmem:[#allocation10] sm:$0xff]
    %v3382 = vld [vmem:[#allocation10 + $0x8] sm:$0xff]
    %v3383 = vld [vmem:[#allocation10 + $0x10] sm:$0xff]
    %v3384 = vld [vmem:[#allocation10 + $0x18] sm:$0xff]
    %v3385 = vld [vmem:[#allocation10 + $0x20] sm:$0xff]
    %v3386 = vld [vmem:[#allocation10 + $0x28] sm:$0xff]
    %v3387 = vld [vmem:[#allocation10 + $0x30] sm:$0xff]
    %v3388 = vld [vmem:[#allocation10 + $0x38] sm:$0xff]
    %v3389 = vld [vmem:[#allocation10 + $0x40] sm:$0xff]
    %v3390 = vld [vmem:[#allocation10 + $0x48] sm:$0xff]
    %v3391 = vld [vmem:[#allocation10 + $0x50] sm:$0xff]
    %v3392 = vld [vmem:[#allocation10 + $0x58] sm:$0xff]
    %v3393 = vld [vmem:[#allocation10 + $0x60] sm:$0xff]
    %v3394 = vld [vmem:[#allocation10 + $0x68] sm:$0xff]
    %v3395 = vld [vmem:[#allocation10 + $0x70] sm:$0xff]
    %v3396 = vld [vmem:[#allocation10 + $0x78] sm:$0xff]
    %v3397 = vld [vmem:[%s7] sm:$0x1]
    %3398 = vmatprep.subr.mxu0 0.0
    %3399 = vmatpush1.msra.mxu0 %v3396
    %3400 = vmatprep.subr.mxu0 0.0
    %3401 = vmatpush1.msra.mxu0 %v3395
    %3402 = vmatprep.subr.mxu0 0.0
    %3403 = vmatpush1.msra.mxu0 %v3394
    %3404 = vmatprep.subr.mxu0 0.0
    %3405 = vmatpush1.msra.mxu0 %v3393
    %3406 = vmatprep.subr.mxu0 0.0
    %3407 = vmatpush1.msra.mxu0 %v3392
    %3408 = vmatprep.subr.mxu0 0.0
    %3409 = vmatpush1.msra.mxu0 %v3391
    %3410 = vmatprep.subr.mxu0 0.0
    %3411 = vmatpush1.msra.mxu0 %v3390
    %3412 = vmatprep.subr.mxu0 0.0
    %3413 = vmatpush1.msra.mxu0 %v3389
    %3414 = vmatprep.subr.mxu0 0.0
    %3415 = vmatpush1.msra.mxu0 %v3388
    %3416 = vmatprep.subr.mxu0 0.0
    %3417 = vmatpush1.msra.mxu0 %v3387
    %3418 = vmatprep.subr.mxu0 0.0
    %3419 = vmatpush1.msra.mxu0 %v3386
    %3420 = vmatprep.subr.mxu0 0.0
    %3421 = vmatpush1.msra.mxu0 %v3385
    %3422 = vmatprep.subr.mxu0 0.0
    %3423 = vmatpush1.msra.mxu0 %v3384
    %3424 = vmatprep.subr.mxu0 0.0
    %3425 = vmatpush1.msra.mxu0 %v3383
    %3426 = vmatprep.subr.mxu0 0.0
    %3427 = vmatpush1.msra.mxu0 %v3382
    %3428 = vmatprep.subr.mxu0 0.0
    %3429 = vmatpush1.msra.mxu0 %v3381
    %3430 = vmatprep.subr.mxu0 0.0
    %3431 = vmatpush2.msra.mxu0 0.0
    %3432 = vmatprep.subr.mxu0 0.0
    %3433 = vmatpush2.msra.mxu0 0.0
    %3434 = vmatprep.subr.mxu0 0.0
    %3435 = vmatpush2.msra.mxu0 0.0
    %3436 = vmatprep.subr.mxu0 0.0
    %3437 = vmatpush2.msra.mxu0 0.0
    %3438 = vmatprep.subr.mxu0 0.0
    %3439 = vmatpush2.msra.mxu0 0.0
    %3440 = vmatprep.subr.mxu0 0.0
    %3441 = vmatpush2.msra.mxu0 0.0
    %3442 = vmatprep.subr.mxu0 0.0
    %3443 = vmatpush2.msra.mxu0 0.0
    %3444 = vmatprep.subr.mxu0 0.0
    %3445 = vmatpush2.msra.mxu0 0.0
    %3446 = vmatprep.subr.mxu0 0.0
    %3447 = vmatpush2.msra.mxu0 0.0
    %3448 = vmatprep.subr.mxu0 0.0
    %3449 = vmatpush2.msra.mxu0 0.0
    %3450 = vmatprep.subr.mxu0 0.0
    %3451 = vmatpush2.msra.mxu0 0.0
    %3452 = vmatprep.subr.mxu0 0.0
    %3453 = vmatpush2.msra.mxu0 0.0
    %3454 = vmatprep.subr.mxu0 0.0
    %3455 = vmatpush2.msra.mxu0 0.0
    %3456 = vmatprep.subr.mxu0 0.0
    %3457 = vmatpush2.msra.mxu0 0.0
    %3458 = vmatprep.subr.mxu0 0.0
    %3459 = vmatpush2.msra.mxu0 0.0
    %3460 = vmatprep.subr.mxu0 0.0
    %3461 = vmatpush2.msra.mxu0 0.0
    %3462 = vmatprep.mubr.f32.mxu0 0.0
    %3463 = vmatmul.mubr.f32.gmra.mxu0 %v3380
    %v3464 = vpop.f32.mrf.mxu0
    %v3465 = vadd.f32 %v3397, %v3464
    %v3466 = vpop.f32.mrf.mxu0
    %3467 = vdwg.mxu0
    %3468 = vst [vmem:[#allocation11] sm:$0x1] %v3465
    // Predicated region
    $region54: #{tpu_custom_call.1} parent=1 // pred_check
      _
    $region55: #{tpu_custom_call.1} parent=1 // pred_check_branch
      %3470 = sbr.rel (0) target = $region57
    $region56: #{tpu_custom_call.1} parent=1 // pred_region
      %s3472 = ssub.s32 16, 16
      %3473 = vsyncadd [#allocation4], %s3472
      %s3475 = sshll.u32 [#allocation11], 4
      %s3476 = int_to_ptr.vmem [resolvable:$true] %s3475
      %3478 = dma.vmem_to_hbm [thread:$0]  %s3476, 16, %s8, [#allocation4]
    $region57: #{tpu_custom_call.1} parent=1 // pred_fallthru
      _
    // Predicated region
    $region58: #{tpu_custom_call.1} parent=1 // pred_check
      _
    $region59: #{tpu_custom_call.1} parent=1 // pred_check_branch
      %3480 = sbr.rel (0) target = $region61
    $region60: #{tpu_custom_call.1} parent=1 // pred_region
      %3481 = dma.done [#allocation4], 16
    $region61: #{tpu_custom_call.1} parent=1 // pred_fallthru
      _
    %3482 = vsyncpa [#allocation3], 1
    %3483 = vsyncpa [#allocation6], 1
    %3484 = vsyncpa [#allocation9], 1
    %3485 = vsyncpa [#allocation4], 1

</llo_original>
